<compile_context>
chip_gen: v6e
topology: v6e:2x2x1
jax: 0.10.0
libtpu: 0.0.40
codegen_flags: <defaults>
</compile_context>

<pallas_src>
import functools

import jax
import jax.numpy as jnp
from jax import lax
from jax.experimental import pallas as pl
from jax.experimental.pallas import tpu as pltpu


RH = 8  # output rows per in-kernel M-chunk: M = RH * W = 128 rows per MXU pass


def _round_up(x, m):
    return (x + m - 1) // m * m


# ----------------------------------------------------------------------------
# Fused kernel: one grid step == one image.
# ----------------------------------------------------------------------------
def _down_kernel(patches_ref, w1_ref, w2_ref, w3_ref, b1_ref, b2_ref, b3_ref,
                 o_ref, buf1, buf2, *, H, W):
    n_chunks = H // RH
    c1 = buf1.shape[-1]
    c2 = buf2.shape[-1]
    c3 = o_ref.shape[-1]

    # Halo-only zeroing (every grid step: under megacore sharding each core owns
    # its own scratch instance).  Only the top/bottom padding rows need zeros;
    # the left/right zero columns are produced by the shifted-plane stores and
    # the interior is fully overwritten every step.
    for p in range(3):
        buf1[p, 0, :, :] = jnp.zeros((W, c1), buf1.dtype)
        buf1[p, H + 1, :, :] = jnp.zeros((W, c1), buf1.dtype)
        buf2[p, 0, :, :] = jnp.zeros((W, c2), buf2.dtype)
        buf2[p, H + 1, :, :] = jnp.zeros((W, c2), buf2.dtype)

    # Bias rows loaded once (BN scale is already folded into the weights).
    b1 = b1_ref[...]
    b2 = b2_ref[...]
    b3 = b3_ref[...]

    def store_planes(buf, y, r0, c):
        # y: (RH, W, c) f32 layer output for rows r0..r0+RH-1.
        # Store three kw-pre-shifted bf16 copies so every 3x3-tap read of the
        # next layer is a start-of-tile, fully dense slice:
        #   plane[kw, i, col] == y_pad[i, col + kw]   (y_pad = 1px zero halo)
        yb = y.astype(buf.dtype)
        zcol = jnp.zeros((RH, 1, c), buf.dtype)
        y0 = jnp.concatenate([zcol, yb[:, :W - 1, :]], axis=1)   # shift right
        y2 = jnp.concatenate([yb[:, 1:, :], zcol], axis=1)       # shift left
        buf[0, pl.ds(r0 + 1, RH), :, :] = y0
        buf[1, pl.ds(r0 + 1, RH), :, :] = yb
        buf[2, pl.ds(r0 + 1, RH), :, :] = y2
        # TODO(synk): pltpu.roll (+ column mask) on the XLU could replace the
        # two sublane-shift concats if they show up hot in the bundle dump.

    def im2col_slab(buf, r0, c):
        # (RH*W, 9*c) slab; all nine tap reads are column-0 aligned slices on
        # leading (non-tiled) axes, so no relayout copies.
        return jnp.concatenate(
            [buf[kw, pl.ds(r0 + kh, RH), :, :].reshape(RH * W, c)
             for kh in range(3) for kw in range(3)], axis=-1)

    # -------------- layer 1: single im2col matmul (K padded to 128) ----------
    @pl.loop(0, n_chunks)
    def _(chunk):
        m0 = pl.multiple_of(chunk * (RH * W), RH * W)
        r0 = pl.multiple_of(chunk * RH, RH)
        p = patches_ref[0, pl.ds(m0, RH * W), :]
        acc = jnp.dot(p, w1_ref[...], preferred_element_type=jnp.float32)
        y = jnp.maximum(acc + b1, 0.0).reshape(RH, W, c1)
        store_planes(buf1, y, r0, c1)

    # --------- layer 2: 3x3 conv as ONE K-fused matmul (K = 9*C1p) -----------
    @pl.loop(0, n_chunks)
    def _(chunk):
        r0 = pl.multiple_of(chunk * RH, RH)
        slab = im2col_slab(buf1, r0, c1)
        acc = jnp.dot(slab, w2_ref[...], preferred_element_type=jnp.float32)
        y = jnp.maximum(acc + b2, 0.0).reshape(RH, W, c2)
        store_planes(buf2, y, r0, c2)

    # -------- layer 3: K-fused conv + fused 2x2 / stride-2 max-pool ----------
    @pl.loop(0, n_chunks)
    def _(chunk):
        r0 = pl.multiple_of(chunk * RH, RH)
        slab = im2col_slab(buf2, r0, c2)
        acc = jnp.dot(slab, w3_ref[...], preferred_element_type=jnp.float32)
        y = jnp.maximum(acc + b3, 0.0).reshape(RH, W, c3)
        y = y.reshape(RH // 2, 2, W, c3).max(axis=1)          # vertical pool
        y = y.reshape(RH // 2, W // 2, 2, c3).max(axis=2)     # horizontal pool
        po = pl.multiple_of(chunk * (RH // 2), RH // 2)
        o_ref[0, pl.ds(po, RH // 2), :, :] = y.astype(o_ref.dtype)


# ----------------------------------------------------------------------------
# Wrapper: BN-scale folding, channel/K padding to lane multiples, bf16 casts,
# layer-1 im2col.
# ----------------------------------------------------------------------------
def down_forward(x_nhwc, params, *, compute_dtype=jnp.bfloat16):
    """x_nhwc: (N, H, W, Cin) float32. Returns (N, H//2, W//2, Cout) float32."""
    (w1, s1, b1), (w2, s2, b2), (w3, s3, b3) = params
    N, H, W, Cin = x_nhwc.shape
    C1, C2, C3 = w1.shape[3], w2.shape[3], w3.shape[3]
    C1p, C2p, C3p = _round_up(C1, 128), _round_up(C2, 128), _round_up(C3, 128)
    K1 = 9 * Cin
    K1p = _round_up(K1, 128)
    assert H % RH == 0 and RH % 2 == 0 and W % 8 == 0

    # Layer-1 im2col patch matrix (K = 9*Cin), zero-padded to a full 128 lanes.
    x_pad = jnp.pad(x_nhwc, ((0, 0), (1, 1), (1, 1), (0, 0)))
    patches = jnp.concatenate(
        [x_pad[:, kh:kh + H, kw:kw + W, :] for kh in range(3) for kw in range(3)],
        axis=-1).reshape(N, H * W, K1)
    patches = jnp.pad(patches, ((0, 0), (0, 0), (0, K1p - K1))).astype(compute_dtype)

    # Fold BN scale into conv weights in f32 (exact: conv is linear in w), pad
    # channels to lane multiples of 128 (padded channels produce exact zeros),
    # then cast to bf16.  K order of the reshaped weights is (kh, kw, ci),
    # matching the kernel's slab concatenation order.
    def fold(w, s):
        return w * s.reshape(1, 1, 1, -1)

    w1m = jnp.pad(fold(w1, s1).reshape(K1, C1),
                  ((0, K1p - K1), (0, C1p - C1))).astype(compute_dtype)
    w2m = jnp.pad(fold(w2, s2), ((0, 0), (0, 0), (0, C1p - C1), (0, C2p - C2))
                  ).reshape(9 * C1p, C2p).astype(compute_dtype)
    w3m = jnp.pad(fold(w3, s3), ((0, 0), (0, 0), (0, C2p - C2), (0, C3p - C3))
                  ).reshape(9 * C2p, C3p).astype(compute_dtype)

    def pad_bias(b, n):
        return jnp.pad(b, (0, n - b.shape[0])).reshape(1, n)

    b1p, b2p, b3p = pad_bias(b1, C1p), pad_bias(b2, C2p), pad_bias(b3, C3p)

    flops = 2 * N * H * W * (K1p * C1p + 9 * C1p * C2p + 9 * C2p * C3p)
    bytes_accessed = (patches.size * 2 + w1m.size * 2 + w2m.size * 2 +
                      w3m.size * 2 + (C1p + C2p + C3p) * 4 +
                      N * (H // 2) * (W // 2) * C3p * 4)

    kernel = functools.partial(_down_kernel, H=H, W=W)
    out = pl.pallas_call(
        kernel,
        out_shape=jax.ShapeDtypeStruct((N, H // 2, W // 2, C3p), jnp.float32),
        grid=(N,),
        in_specs=[
            pl.BlockSpec((1, H * W, K1p), lambda n: (n, 0, 0)),
            pl.BlockSpec((K1p, C1p), lambda n: (0, 0)),
            pl.BlockSpec((9 * C1p, C2p), lambda n: (0, 0)),
            pl.BlockSpec((9 * C2p, C3p), lambda n: (0, 0)),
            pl.BlockSpec((1, C1p), lambda n: (0, 0)),
            pl.BlockSpec((1, C2p), lambda n: (0, 0)),
            pl.BlockSpec((1, C3p), lambda n: (0, 0)),
        ],
        out_specs=pl.BlockSpec((1, H // 2, W // 2, C3p), lambda n: (n, 0, 0, 0)),
        scratch_shapes=[
            pltpu.VMEM((3, H + 2, W, C1p), compute_dtype),  # kw-shifted layer-1 out
            pltpu.VMEM((3, H + 2, W, C2p), compute_dtype),  # kw-shifted layer-2 out
        ],
        compiler_params=pltpu.CompilerParams(
            dimension_semantics=("parallel",)),
        cost_estimate=pl.CostEstimate(flops=flops, transcendentals=0,
                                      bytes_accessed=bytes_accessed),
    )(patches, w1m, w2m, w3m, b1p, b2p, b3p)

    return out[..., :C3]


# ----------------------------------------------------------------------------
# Parameter construction (deterministic, synthetic -- no checkpoint load).
# ----------------------------------------------------------------------------
def make_layer_params(key, cin, cout):
    kw, kg, kb, km, kv = jax.random.split(key, 5)
    w = jax.random.normal(kw, (3, 3, cin, cout), jnp.float32) * 0.1
    gamma = 1.0 + 0.1 * jax.random.normal(kg, (cout,), jnp.float32)
    beta = 0.1 * jax.random.normal(kb, (cout,), jnp.float32)
    running_mean = 0.1 * jax.random.normal(km, (cout,), jnp.float32)
    running_var = 1.0 + 0.1 * jax.random.uniform(kv, (cout,), jnp.float32)
    eps = 1e-5
    scale = gamma / jnp.sqrt(running_var + eps)
    bias = beta - running_mean * scale
    return w, scale, bias


# ----------------------------------------------------------------------------
# Pure-JAX reference (same folded-bf16-weight / f32-accumulate path).
# ----------------------------------------------------------------------------
def _ref_layer(h, w, s, b, compute_dtype):
    wf = (w * s.reshape(1, 1, 1, -1)).astype(compute_dtype)
    y = lax.conv_general_dilated(
        h.astype(compute_dtype), wf,
        window_strides=(1, 1), padding="SAME",
        dimension_numbers=("NHWC", "HWIO", "NHWC"),
        preferred_element_type=jnp.float32)
    return jnp.maximum(y + b.reshape(1, 1, 1, -1), 0.0)


def ref_down(x, params, *, compute_dtype=jnp.bfloat16):
    (w1, s1, b1), (w2, s2, b2), (w3, s3, b3) = params
    h = _ref_layer(x, w1, s1, b1, compute_dtype)
    h = h.astype(compute_dtype).astype(jnp.float32)   # inter-layer storage dtype
    h = _ref_layer(h, w2, s2, b2, compute_dtype)
    h = h.astype(compute_dtype).astype(jnp.float32)
    h = _ref_layer(h, w3, s3, b3, compute_dtype)
    return lax.reduce_window(h, -jnp.inf, lax.max,
                             (1, 2, 2, 1), (1, 2, 2, 1), "VALID")


if __name__ == "__main__":
    N, H, W = 2, 16, 16
    in_channels, out_channels = 4, 64     # intermediate 128 and 196 fixed by module

    root = jax.random.PRNGKey(0)
    kx, k1, k2, k3 = jax.random.split(root, 4)

    # PyTorch input would be NCHW (2, 4, 16, 16); we use NHWC (2, 16, 16, 4).
    x = jax.random.normal(kx, (N, H, W, in_channels), jnp.float32)

    params = (
        make_layer_params(k1, in_channels, 128),
        make_layer_params(k2, 128, 196),
        make_layer_params(k3, 196, out_channels),
    )

    out = jax.block_until_ready(jax.jit(down_forward)(x, params))
    assert out.shape == (N, H // 2, W // 2, out_channels), out.shape

    ref = jax.block_until_ready(jax.jit(ref_down)(x, params))
    max_err = float(jnp.max(jnp.abs(out - ref)))
    assert jnp.allclose(out, ref, atol=5e-2, rtol=5e-2), max_err

    print("KERNEL_OK")
</pallas_src>

<mosaic_0001>
module attributes {stable_mosaic.version = 11 : i64} {
  func.func @_down_kernel(%arg0: i32, %arg1: memref<1x256x128xbf16, #tpu.memory_space<vmem>>, %arg2: memref<128x128xbf16, #tpu.memory_space<vmem>>, %arg3: memref<1152x256xbf16, #tpu.memory_space<vmem>>, %arg4: memref<2304x128xbf16, #tpu.memory_space<vmem>>, %arg5: memref<1x128xf32, #tpu.memory_space<vmem>>, %arg6: memref<1x256xf32, #tpu.memory_space<vmem>>, %arg7: memref<1x128xf32, #tpu.memory_space<vmem>>, %arg8: memref<1x8x8x128xf32, #tpu.memory_space<vmem>>, %arg9: memref<3x18x16x128xbf16, #tpu.memory_space<vmem>>, %arg10: memref<3x18x16x256xbf16, #tpu.memory_space<vmem>>) attributes {dimension_semantics = [#tpu.dimension_semantics<parallel>], iteration_bounds = array<i64: 2>, scalar_prefetch = 0 : i64, scratch_operands = 2 : i64, tpu.core_type = #tpu.core_type<tc>, window_params = [{transform_indices = @transform_0, window_bounds = array<i64: 1, 256, 128>}, {pipeline_mode = #tpu.pipeline_mode<synchronous>, transform_indices = @transform_1, window_bounds = array<i64: 128, 128>}, {pipeline_mode = #tpu.pipeline_mode<synchronous>, transform_indices = @transform_2, window_bounds = array<i64: 1152, 256>}, {pipeline_mode = #tpu.pipeline_mode<synchronous>, transform_indices = @transform_3, window_bounds = array<i64: 2304, 128>}, {pipeline_mode = #tpu.pipeline_mode<synchronous>, transform_indices = @transform_4, window_bounds = array<i64: 1, 128>}, {pipeline_mode = #tpu.pipeline_mode<synchronous>, transform_indices = @transform_5, window_bounds = array<i64: 1, 256>}, {pipeline_mode = #tpu.pipeline_mode<synchronous>, transform_indices = @transform_6, window_bounds = array<i64: 1, 128>}, {transform_indices = @transform_7, window_bounds = array<i64: 1, 8, 8, 128>}]} {
    %cst = arith.constant 0.000000e+00 : bf16
    %0 = vector.broadcast %cst : bf16 to vector<16x128xbf16>
    %c0 = arith.constant 0 : index
    %c0_0 = arith.constant 0 : index
    %c0_1 = arith.constant 0 : index
    %c0_2 = arith.constant 0 : index
    %1 = vector.load %arg9[%c0, %c0_0, %c0_1, %c0_2] : memref<3x18x16x128xbf16, #tpu.memory_space<vmem>>, vector<1x1x16x128xbf16>
    %2 = vector.shape_cast %1 : vector<1x1x16x128xbf16> to vector<16x128xbf16>
    %3 = vector.shape_cast %0 : vector<16x128xbf16> to vector<1x1x16x128xbf16>
    tpu.vector_store %arg9[%c0, %c0_0, %c0_1, %c0_2], %3 {strides = array<i32>} : memref<3x18x16x128xbf16, #tpu.memory_space<vmem>>, vector<1x1x16x128xbf16>,
    %cst_3 = arith.constant 0.000000e+00 : bf16
    %4 = vector.broadcast %cst_3 : bf16 to vector<16x128xbf16>
    %c0_4 = arith.constant 0 : index
    %c17 = arith.constant 17 : index
    %c0_5 = arith.constant 0 : index
    %c0_6 = arith.constant 0 : index
    %5 = vector.load %arg9[%c0_4, %c17, %c0_5, %c0_6] : memref<3x18x16x128xbf16, #tpu.memory_space<vmem>>, vector<1x1x16x128xbf16>
    %6 = vector.shape_cast %5 : vector<1x1x16x128xbf16> to vector<16x128xbf16>
    %7 = vector.shape_cast %4 : vector<16x128xbf16> to vector<1x1x16x128xbf16>
    tpu.vector_store %arg9[%c0_4, %c17, %c0_5, %c0_6], %7 {strides = array<i32>} : memref<3x18x16x128xbf16, #tpu.memory_space<vmem>>, vector<1x1x16x128xbf16>,
    %cst_7 = arith.constant 0.000000e+00 : bf16
    %8 = vector.broadcast %cst_7 : bf16 to vector<16x256xbf16>
    %c0_8 = arith.constant 0 : index
    %c0_9 = arith.constant 0 : index
    %c0_10 = arith.constant 0 : index
    %c0_11 = arith.constant 0 : index
    %9 = vector.load %arg10[%c0_8, %c0_9, %c0_10, %c0_11] : memref<3x18x16x256xbf16, #tpu.memory_space<vmem>>, vector<1x1x16x256xbf16>
    %10 = vector.shape_cast %9 : vector<1x1x16x256xbf16> to vector<16x256xbf16>
    %11 = vector.shape_cast %8 : vector<16x256xbf16> to vector<1x1x16x256xbf16>
    tpu.vector_store %arg10[%c0_8, %c0_9, %c0_10, %c0_11], %11 {strides = array<i32>} : memref<3x18x16x256xbf16, #tpu.memory_space<vmem>>, vector<1x1x16x256xbf16>,
    %cst_12 = arith.constant 0.000000e+00 : bf16
    %12 = vector.broadcast %cst_12 : bf16 to vector<16x256xbf16>
    %c0_13 = arith.constant 0 : index
    %c17_14 = arith.constant 17 : index
    %c0_15 = arith.constant 0 : index
    %c0_16 = arith.constant 0 : index
    %13 = vector.load %arg10[%c0_13, %c17_14, %c0_15, %c0_16] : memref<3x18x16x256xbf16, #tpu.memory_space<vmem>>, vector<1x1x16x256xbf16>
    %14 = vector.shape_cast %13 : vector<1x1x16x256xbf16> to vector<16x256xbf16>
    %15 = vector.shape_cast %12 : vector<16x256xbf16> to vector<1x1x16x256xbf16>
    tpu.vector_store %arg10[%c0_13, %c17_14, %c0_15, %c0_16], %15 {strides = array<i32>} : memref<3x18x16x256xbf16, #tpu.memory_space<vmem>>, vector<1x1x16x256xbf16>,
    %cst_17 = arith.constant 0.000000e+00 : bf16
    %16 = vector.broadcast %cst_17 : bf16 to vector<16x128xbf16>
    %c1 = arith.constant 1 : index
    %c0_18 = arith.constant 0 : index
    %c0_19 = arith.constant 0 : index
    %c0_20 = arith.constant 0 : index
    %17 = vector.load %arg9[%c1, %c0_18, %c0_19, %c0_20] : memref<3x18x16x128xbf16, #tpu.memory_space<vmem>>, vector<1x1x16x128xbf16>
    %18 = vector.shape_cast %17 : vector<1x1x16x128xbf16> to vector<16x128xbf16>
    %19 = vector.shape_cast %16 : vector<16x128xbf16> to vector<1x1x16x128xbf16>
    tpu.vector_store %arg9[%c1, %c0_18, %c0_19, %c0_20], %19 {strides = array<i32>} : memref<3x18x16x128xbf16, #tpu.memory_space<vmem>>, vector<1x1x16x128xbf16>,
    %cst_21 = arith.constant 0.000000e+00 : bf16
    %20 = vector.broadcast %cst_21 : bf16 to vector<16x128xbf16>
    %c1_22 = arith.constant 1 : index
    %c17_23 = arith.constant 17 : index
    %c0_24 = arith.constant 0 : index
    %c0_25 = arith.constant 0 : index
    %21 = vector.load %arg9[%c1_22, %c17_23, %c0_24, %c0_25] : memref<3x18x16x128xbf16, #tpu.memory_space<vmem>>, vector<1x1x16x128xbf16>
    %22 = vector.shape_cast %21 : vector<1x1x16x128xbf16> to vector<16x128xbf16>
    %23 = vector.shape_cast %20 : vector<16x128xbf16> to vector<1x1x16x128xbf16>
    tpu.vector_store %arg9[%c1_22, %c17_23, %c0_24, %c0_25], %23 {strides = array<i32>} : memref<3x18x16x128xbf16, #tpu.memory_space<vmem>>, vector<1x1x16x128xbf16>,
    %cst_26 = arith.constant 0.000000e+00 : bf16
    %24 = vector.broadcast %cst_26 : bf16 to vector<16x256xbf16>
    %c1_27 = arith.constant 1 : index
    %c0_28 = arith.constant 0 : index
    %c0_29 = arith.constant 0 : index
    %c0_30 = arith.constant 0 : index
    %25 = vector.load %arg10[%c1_27, %c0_28, %c0_29, %c0_30] : memref<3x18x16x256xbf16, #tpu.memory_space<vmem>>, vector<1x1x16x256xbf16>
    %26 = vector.shape_cast %25 : vector<1x1x16x256xbf16> to vector<16x256xbf16>
    %27 = vector.shape_cast %24 : vector<16x256xbf16> to vector<1x1x16x256xbf16>
    tpu.vector_store %arg10[%c1_27, %c0_28, %c0_29, %c0_30], %27 {strides = array<i32>} : memref<3x18x16x256xbf16, #tpu.memory_space<vmem>>, vector<1x1x16x256xbf16>,
    %cst_31 = arith.constant 0.000000e+00 : bf16
    %28 = vector.broadcast %cst_31 : bf16 to vector<16x256xbf16>
    %c1_32 = arith.constant 1 : index
    %c17_33 = arith.constant 17 : index
    %c0_34 = arith.constant 0 : index
    %c0_35 = arith.constant 0 : index
    %29 = vector.load %arg10[%c1_32, %c17_33, %c0_34, %c0_35] : memref<3x18x16x256xbf16, #tpu.memory_space<vmem>>, vector<1x1x16x256xbf16>
    %30 = vector.shape_cast %29 : vector<1x1x16x256xbf16> to vector<16x256xbf16>
    %31 = vector.shape_cast %28 : vector<16x256xbf16> to vector<1x1x16x256xbf16>
    tpu.vector_store %arg10[%c1_32, %c17_33, %c0_34, %c0_35], %31 {strides = array<i32>} : memref<3x18x16x256xbf16, #tpu.memory_space<vmem>>, vector<1x1x16x256xbf16>,
    %cst_36 = arith.constant 0.000000e+00 : bf16
    %32 = vector.broadcast %cst_36 : bf16 to vector<16x128xbf16>
    %c2 = arith.constant 2 : index
    %c0_37 = arith.constant 0 : index
    %c0_38 = arith.constant 0 : index
    %c0_39 = arith.constant 0 : index
    %33 = vector.load %arg9[%c2, %c0_37, %c0_38, %c0_39] : memref<3x18x16x128xbf16, #tpu.memory_space<vmem>>, vector<1x1x16x128xbf16>
    %34 = vector.shape_cast %33 : vector<1x1x16x128xbf16> to vector<16x128xbf16>
    %35 = vector.shape_cast %32 : vector<16x128xbf16> to vector<1x1x16x128xbf16>
    tpu.vector_store %arg9[%c2, %c0_37, %c0_38, %c0_39], %35 {strides = array<i32>} : memref<3x18x16x128xbf16, #tpu.memory_space<vmem>>, vector<1x1x16x128xbf16>,
    %cst_40 = arith.constant 0.000000e+00 : bf16
    %36 = vector.broadcast %cst_40 : bf16 to vector<16x128xbf16>
    %c2_41 = arith.constant 2 : index
    %c17_42 = arith.constant 17 : index
    %c0_43 = arith.constant 0 : index
    %c0_44 = arith.constant 0 : index
    %37 = vector.load %arg9[%c2_41, %c17_42, %c0_43, %c0_44] : memref<3x18x16x128xbf16, #tpu.memory_space<vmem>>, vector<1x1x16x128xbf16>
    %38 = vector.shape_cast %37 : vector<1x1x16x128xbf16> to vector<16x128xbf16>
    %39 = vector.shape_cast %36 : vector<16x128xbf16> to vector<1x1x16x128xbf16>
    tpu.vector_store %arg9[%c2_41, %c17_42, %c0_43, %c0_44], %39 {strides = array<i32>} : memref<3x18x16x128xbf16, #tpu.memory_space<vmem>>, vector<1x1x16x128xbf16>,
    %cst_45 = arith.constant 0.000000e+00 : bf16
    %40 = vector.broadcast %cst_45 : bf16 to vector<16x256xbf16>
    %c2_46 = arith.constant 2 : index
    %c0_47 = arith.constant 0 : index
    %c0_48 = arith.constant 0 : index
    %c0_49 = arith.constant 0 : index
    %41 = vector.load %arg10[%c2_46, %c0_47, %c0_48, %c0_49] : memref<3x18x16x256xbf16, #tpu.memory_space<vmem>>, vector<1x1x16x256xbf16>
    %42 = vector.shape_cast %41 : vector<1x1x16x256xbf16> to vector<16x256xbf16>
    %43 = vector.shape_cast %40 : vector<16x256xbf16> to vector<1x1x16x256xbf16>
    tpu.vector_store %arg10[%c2_46, %c0_47, %c0_48, %c0_49], %43 {strides = array<i32>} : memref<3x18x16x256xbf16, #tpu.memory_space<vmem>>, vector<1x1x16x256xbf16>,
    %cst_50 = arith.constant 0.000000e+00 : bf16
    %44 = vector.broadcast %cst_50 : bf16 to vector<16x256xbf16>
    %c2_51 = arith.constant 2 : index
    %c17_52 = arith.constant 17 : index
    %c0_53 = arith.constant 0 : index
    %c0_54 = arith.constant 0 : index
    %45 = vector.load %arg10[%c2_51, %c17_52, %c0_53, %c0_54] : memref<3x18x16x256xbf16, #tpu.memory_space<vmem>>, vector<1x1x16x256xbf16>
    %46 = vector.shape_cast %45 : vector<1x1x16x256xbf16> to vector<16x256xbf16>
    %47 = vector.shape_cast %44 : vector<16x256xbf16> to vector<1x1x16x256xbf16>
    tpu.vector_store %arg10[%c2_51, %c17_52, %c0_53, %c0_54], %47 {strides = array<i32>} : memref<3x18x16x256xbf16, #tpu.memory_space<vmem>>, vector<1x1x16x256xbf16>,
    %c0_55 = arith.constant 0 : index
    %c0_56 = arith.constant 0 : index
    %48 = vector.load %arg5[%c0_55, %c0_56] : memref<1x128xf32, #tpu.memory_space<vmem>>, vector<1x128xf32>
    %c0_57 = arith.constant 0 : index
    %c0_58 = arith.constant 0 : index
    %49 = vector.load %arg6[%c0_57, %c0_58] : memref<1x256xf32, #tpu.memory_space<vmem>>, vector<1x256xf32>
    %c0_59 = arith.constant 0 : index
    %c0_60 = arith.constant 0 : index
    %50 = vector.load %arg7[%c0_59, %c0_60] : memref<1x128xf32, #tpu.memory_space<vmem>>, vector<1x128xf32>
    %c0_i32 = arith.constant 0 : i32
    %c2_i32 = arith.constant 2 : i32
    %51 = arith.addi %c0_i32, %c2_i32 : i32
    %c1_i32 = arith.constant 1 : i32
    scf.for %arg11 = %c0_i32 to %51 step %c1_i32  : i32 {
      %c1_i32_70 = arith.constant 1 : i32
      %54 = arith.muli %arg11, %c1_i32_70 : i32
      %c0_i32_71 = arith.constant 0 : i32
      %55 = arith.addi %c0_i32_71, %54 : i32
      %c128_i32 = arith.constant 128 : i32
      %56 = arith.muli %55, %c128_i32 : i32
      %57 = tpu.assume_multiple %56, 128 : i32
      %c8_i32 = arith.constant 8 : i32
      %58 = arith.muli %55, %c8_i32 : i32
      %59 = tpu.assume_multiple %58, 8 : i32
      %c0_72 = arith.constant 0 : index
      %60 = arith.index_cast %57 : i32 to index
      %c0_73 = arith.constant 0 : index
      %61 = vector.load %arg1[%c0_72, %60, %c0_73] : memref<1x256x128xbf16, #tpu.memory_space<vmem>>, vector<1x128x128xbf16>
      %62 = vector.shape_cast %61 : vector<1x128x128xbf16> to vector<128x128xbf16>
      %c0_74 = arith.constant 0 : index
      %c0_75 = arith.constant 0 : index
      %63 = vector.load %arg2[%c0_74, %c0_75] : memref<128x128xbf16, #tpu.memory_space<vmem>>, vector<128x128xbf16>
      %cst_76 = arith.constant dense<0.000000e+00> : vector<128x128xf32>
      %64 = tpu.matmul %62, %63, %cst_76 {dimension_numbers = #tpu.dot_dimension_numbers<[1], [0], [0], [1], [0, 0, 1, 1], [], []>} : vector<128x128xbf16>, vector<128x128xbf16>, vector<128x128xf32> -> vector<128x128xf32>
      %65 = vector.broadcast %48 : vector<1x128xf32> to vector<128x128xf32>
      %66 = arith.addf %64, %65 : vector<128x128xf32>
      %cst_77 = arith.constant 0.000000e+00 : f32
      %67 = vector.broadcast %cst_77 : f32 to vector<128x128xf32>
      %68 = arith.maximumf %66, %67 : vector<128x128xf32>
      %69 = vector.shape_cast %68 : vector<128x128xf32> to vector<8x16x128xf32>
      %70 = arith.truncf %69 : vector<8x16x128xf32> to vector<8x16x128xbf16>
      %cst_78 = arith.constant 0.000000e+00 : bf16
      %71 = vector.broadcast %cst_78 : bf16 to vector<8x1x128xbf16>
      %72 = vector.extract_strided_slice %70 {offsets = [0, 0, 0], sizes = [8, 15, 128], strides = [1, 1, 1]} : vector<8x16x128xbf16> to vector<8x15x128xbf16>
      %73 = tpu.concatenate %71, %72 in 1 : vector<8x1x128xbf16>, vector<8x15x128xbf16> -> vector<8x16x128xbf16>
      %74 = vector.extract_strided_slice %70 {offsets = [0, 1, 0], sizes = [8, 15, 128], strides = [1, 1, 1]} : vector<8x16x128xbf16> to vector<8x15x128xbf16>
      %75 = tpu.concatenate %74, %71 in 1 : vector<8x15x128xbf16>, vector<8x1x128xbf16> -> vector<8x16x128xbf16>
      %c1_i32_79 = arith.constant 1 : i32
      %76 = arith.addi %59, %c1_i32_79 : i32
      %c0_80 = arith.constant 0 : index
      %77 = arith.index_cast %76 : i32 to index
      %c0_81 = arith.constant 0 : index
      %c0_82 = arith.constant 0 : index
      %78 = vector.load %arg9[%c0_80, %77, %c0_81, %c0_82] : memref<3x18x16x128xbf16, #tpu.memory_space<vmem>>, vector<1x8x16x128xbf16>
      %79 = vector.shape_cast %78 : vector<1x8x16x128xbf16> to vector<8x16x128xbf16>
      %80 = vector.shape_cast %73 : vector<8x16x128xbf16> to vector<1x8x16x128xbf16>
      tpu.vector_store %arg9[%c0_80, %77, %c0_81, %c0_82], %80 {strides = array<i32>} : memref<3x18x16x128xbf16, #tpu.memory_space<vmem>>, vector<1x8x16x128xbf16>,
      %c1_i32_83 = arith.constant 1 : i32
      %81 = arith.addi %59, %c1_i32_83 : i32
      %c1_84 = arith.constant 1 : index
      %82 = arith.index_cast %81 : i32 to index
      %c0_85 = arith.constant 0 : index
      %c0_86 = arith.constant 0 : index
      %83 = vector.load %arg9[%c1_84, %82, %c0_85, %c0_86] : memref<3x18x16x128xbf16, #tpu.memory_space<vmem>>, vector<1x8x16x128xbf16>
      %84 = vector.shape_cast %83 : vector<1x8x16x128xbf16> to vector<8x16x128xbf16>
      %85 = vector.shape_cast %70 : vector<8x16x128xbf16> to vector<1x8x16x128xbf16>
      tpu.vector_store %arg9[%c1_84, %82, %c0_85, %c0_86], %85 {strides = array<i32>} : memref<3x18x16x128xbf16, #tpu.memory_space<vmem>>, vector<1x8x16x128xbf16>,
      %c1_i32_87 = arith.constant 1 : i32
      %86 = arith.addi %59, %c1_i32_87 : i32
      %c2_88 = arith.constant 2 : index
      %87 = arith.index_cast %86 : i32 to index
      %c0_89 = arith.constant 0 : index
      %c0_90 = arith.constant 0 : index
      %88 = vector.load %arg9[%c2_88, %87, %c0_89, %c0_90] : memref<3x18x16x128xbf16, #tpu.memory_space<vmem>>, vector<1x8x16x128xbf16>
      %89 = vector.shape_cast %88 : vector<1x8x16x128xbf16> to vector<8x16x128xbf16>
      %90 = vector.shape_cast %75 : vector<8x16x128xbf16> to vector<1x8x16x128xbf16>
      tpu.vector_store %arg9[%c2_88, %87, %c0_89, %c0_90], %90 {strides = array<i32>} : memref<3x18x16x128xbf16, #tpu.memory_space<vmem>>, vector<1x8x16x128xbf16>,
    }
    %c2_i32_61 = arith.constant 2 : i32
    %c0_i32_62 = arith.constant 0 : i32
    %c2_i32_63 = arith.constant 2 : i32
    %52 = arith.addi %c0_i32_62, %c2_i32_63 : i32
    %c1_i32_64 = arith.constant 1 : i32
    scf.for %arg11 = %c0_i32_62 to %52 step %c1_i32_64  : i32 {
      %c1_i32_70 = arith.constant 1 : i32
      %54 = arith.muli %arg11, %c1_i32_70 : i32
      %c0_i32_71 = arith.constant 0 : i32
      %55 = arith.addi %c0_i32_71, %54 : i32
      %c8_i32 = arith.constant 8 : i32
      %56 = arith.muli %55, %c8_i32 : i32
      %57 = tpu.assume_multiple %56, 8 : i32
      %c0_i32_72 = arith.constant 0 : i32
      %58 = arith.addi %57, %c0_i32_72 : i32
      %c0_73 = arith.constant 0 : index
      %59 = arith.index_cast %58 : i32 to index
      %c0_74 = arith.constant 0 : index
      %c0_75 = arith.constant 0 : index
      %60 = vector.load %arg9[%c0_73, %59, %c0_74, %c0_75] : memref<3x18x16x128xbf16, #tpu.memory_space<vmem>>, vector<1x8x16x128xbf16>
      %61 = vector.shape_cast %60 : vector<1x8x16x128xbf16> to vector<8x16x128xbf16>
      %62 = vector.shape_cast %61 : vector<8x16x128xbf16> to vector<128x128xbf16>
      %c0_i32_76 = arith.constant 0 : i32
      %63 = arith.addi %57, %c0_i32_76 : i32
      %c1_77 = arith.constant 1 : index
      %64 = arith.index_cast %63 : i32 to index
      %c0_78 = arith.constant 0 : index
      %c0_79 = arith.constant 0 : index
      %65 = vector.load %arg9[%c1_77, %64, %c0_78, %c0_79] : memref<3x18x16x128xbf16, #tpu.memory_space<vmem>>, vector<1x8x16x128xbf16>
      %66 = vector.shape_cast %65 : vector<1x8x16x128xbf16> to vector<8x16x128xbf16>
      %67 = vector.shape_cast %66 : vector<8x16x128xbf16> to vector<128x128xbf16>
      %c0_i32_80 = arith.constant 0 : i32
      %68 = arith.addi %57, %c0_i32_80 : i32
      %c2_81 = arith.constant 2 : index
      %69 = arith.index_cast %68 : i32 to index
      %c0_82 = arith.constant 0 : index
      %c0_83 = arith.constant 0 : index
      %70 = vector.load %arg9[%c2_81, %69, %c0_82, %c0_83] : memref<3x18x16x128xbf16, #tpu.memory_space<vmem>>, vector<1x8x16x128xbf16>
      %71 = vector.shape_cast %70 : vector<1x8x16x128xbf16> to vector<8x16x128xbf16>
      %72 = vector.shape_cast %71 : vector<8x16x128xbf16> to vector<128x128xbf16>
      %c1_i32_84 = arith.constant 1 : i32
      %73 = arith.addi %57, %c1_i32_84 : i32
      %c0_85 = arith.constant 0 : index
      %74 = arith.index_cast %73 : i32 to index
      %c0_86 = arith.constant 0 : index
      %c0_87 = arith.constant 0 : index
      %75 = vector.load %arg9[%c0_85, %74, %c0_86, %c0_87] : memref<3x18x16x128xbf16, #tpu.memory_space<vmem>>, vector<1x8x16x128xbf16>
      %76 = vector.shape_cast %75 : vector<1x8x16x128xbf16> to vector<8x16x128xbf16>
      %77 = vector.shape_cast %76 : vector<8x16x128xbf16> to vector<128x128xbf16>
      %c1_i32_88 = arith.constant 1 : i32
      %78 = arith.addi %57, %c1_i32_88 : i32
      %c1_89 = arith.constant 1 : index
      %79 = arith.index_cast %78 : i32 to index
      %c0_90 = arith.constant 0 : index
      %c0_91 = arith.constant 0 : index
      %80 = vector.load %arg9[%c1_89, %79, %c0_90, %c0_91] : memref<3x18x16x128xbf16, #tpu.memory_space<vmem>>, vector<1x8x16x128xbf16>
      %81 = vector.shape_cast %80 : vector<1x8x16x128xbf16> to vector<8x16x128xbf16>
      %82 = vector.shape_cast %81 : vector<8x16x128xbf16> to vector<128x128xbf16>
      %c1_i32_92 = arith.constant 1 : i32
      %83 = arith.addi %57, %c1_i32_92 : i32
      %c2_93 = arith.constant 2 : index
      %84 = arith.index_cast %83 : i32 to index
      %c0_94 = arith.constant 0 : index
      %c0_95 = arith.constant 0 : index
      %85 = vector.load %arg9[%c2_93, %84, %c0_94, %c0_95] : memref<3x18x16x128xbf16, #tpu.memory_space<vmem>>, vector<1x8x16x128xbf16>
      %86 = vector.shape_cast %85 : vector<1x8x16x128xbf16> to vector<8x16x128xbf16>
      %87 = vector.shape_cast %86 : vector<8x16x128xbf16> to vector<128x128xbf16>
      %c2_i32_96 = arith.constant 2 : i32
      %88 = arith.addi %57, %c2_i32_96 : i32
      %c0_97 = arith.constant 0 : index
      %89 = arith.index_cast %88 : i32 to index
      %c0_98 = arith.constant 0 : index
      %c0_99 = arith.constant 0 : index
      %90 = vector.load %arg9[%c0_97, %89, %c0_98, %c0_99] : memref<3x18x16x128xbf16, #tpu.memory_space<vmem>>, vector<1x8x16x128xbf16>
      %91 = vector.shape_cast %90 : vector<1x8x16x128xbf16> to vector<8x16x128xbf16>
      %92 = vector.shape_cast %91 : vector<8x16x128xbf16> to vector<128x128xbf16>
      %c2_i32_100 = arith.constant 2 : i32
      %93 = arith.addi %57, %c2_i32_100 : i32
      %c1_101 = arith.constant 1 : index
      %94 = arith.index_cast %93 : i32 to index
      %c0_102 = arith.constant 0 : index
      %c0_103 = arith.constant 0 : index
      %95 = vector.load %arg9[%c1_101, %94, %c0_102, %c0_103] : memref<3x18x16x128xbf16, #tpu.memory_space<vmem>>, vector<1x8x16x128xbf16>
      %96 = vector.shape_cast %95 : vector<1x8x16x128xbf16> to vector<8x16x128xbf16>
      %97 = vector.shape_cast %96 : vector<8x16x128xbf16> to vector<128x128xbf16>
      %c2_i32_104 = arith.constant 2 : i32
      %98 = arith.addi %57, %c2_i32_104 : i32
      %c2_105 = arith.constant 2 : index
      %99 = arith.index_cast %98 : i32 to index
      %c0_106 = arith.constant 0 : index
      %c0_107 = arith.constant 0 : index
      %100 = vector.load %arg9[%c2_105, %99, %c0_106, %c0_107] : memref<3x18x16x128xbf16, #tpu.memory_space<vmem>>, vector<1x8x16x128xbf16>
      %101 = vector.shape_cast %100 : vector<1x8x16x128xbf16> to vector<8x16x128xbf16>
      %102 = vector.shape_cast %101 : vector<8x16x128xbf16> to vector<128x128xbf16>
      %103 = tpu.concatenate %62, %67, %72, %77, %82, %87, %92, %97, %102 in 1 : vector<128x128xbf16>, vector<128x128xbf16>, vector<128x128xbf16>, vector<128x128xbf16>, vector<128x128xbf16>, vector<128x128xbf16>, vector<128x128xbf16>, vector<128x128xbf16>, vector<128x128xbf16> -> vector<128x1152xbf16>
      %c0_108 = arith.constant 0 : index
      %c0_109 = arith.constant 0 : index
      %104 = vector.load %arg3[%c0_108, %c0_109] : memref<1152x256xbf16, #tpu.memory_space<vmem>>, vector<1152x256xbf16>
      %cst_110 = arith.constant dense<0.000000e+00> : vector<128x256xf32>
      %105 = tpu.matmul %103, %104, %cst_110 {dimension_numbers = #tpu.dot_dimension_numbers<[1], [0], [0], [1], [0, 0, 1, 1], [], []>} : vector<128x1152xbf16>, vector<1152x256xbf16>, vector<128x256xf32> -> vector<128x256xf32>
      %106 = vector.broadcast %49 : vector<1x256xf32> to vector<128x256xf32>
      %107 = arith.addf %105, %106 : vector<128x256xf32>
      %cst_111 = arith.constant 0.000000e+00 : f32
      %108 = vector.broadcast %cst_111 : f32 to vector<128x256xf32>
      %109 = arith.maximumf %107, %108 : vector<128x256xf32>
      %110 = vector.shape_cast %109 : vector<128x256xf32> to vector<8x16x256xf32>
      %111 = arith.truncf %110 : vector<8x16x256xf32> to vector<8x16x256xbf16>
      %cst_112 = arith.constant 0.000000e+00 : bf16
      %112 = vector.broadcast %cst_112 : bf16 to vector<8x1x256xbf16>
      %113 = vector.extract_strided_slice %111 {offsets = [0, 0, 0], sizes = [8, 15, 256], strides = [1, 1, 1]} : vector<8x16x256xbf16> to vector<8x15x256xbf16>
      %114 = tpu.concatenate %112, %113 in 1 : vector<8x1x256xbf16>, vector<8x15x256xbf16> -> vector<8x16x256xbf16>
      %115 = vector.extract_strided_slice %111 {offsets = [0, 1, 0], sizes = [8, 15, 256], strides = [1, 1, 1]} : vector<8x16x256xbf16> to vector<8x15x256xbf16>
      %116 = tpu.concatenate %115, %112 in 1 : vector<8x15x256xbf16>, vector<8x1x256xbf16> -> vector<8x16x256xbf16>
      %c1_i32_113 = arith.constant 1 : i32
      %117 = arith.addi %57, %c1_i32_113 : i32
      %c0_114 = arith.constant 0 : index
      %118 = arith.index_cast %117 : i32 to index
      %c0_115 = arith.constant 0 : index
      %c0_116 = arith.constant 0 : index
      %119 = vector.load %arg10[%c0_114, %118, %c0_115, %c0_116] : memref<3x18x16x256xbf16, #tpu.memory_space<vmem>>, vector<1x8x16x256xbf16>
      %120 = vector.shape_cast %119 : vector<1x8x16x256xbf16> to vector<8x16x256xbf16>
      %121 = vector.shape_cast %114 : vector<8x16x256xbf16> to vector<1x8x16x256xbf16>
      tpu.vector_store %arg10[%c0_114, %118, %c0_115, %c0_116], %121 {strides = array<i32>} : memref<3x18x16x256xbf16, #tpu.memory_space<vmem>>, vector<1x8x16x256xbf16>,
      %c1_i32_117 = arith.constant 1 : i32
      %122 = arith.addi %57, %c1_i32_117 : i32
      %c1_118 = arith.constant 1 : index
      %123 = arith.index_cast %122 : i32 to index
      %c0_119 = arith.constant 0 : index
      %c0_120 = arith.constant 0 : index
      %124 = vector.load %arg10[%c1_118, %123, %c0_119, %c0_120] : memref<3x18x16x256xbf16, #tpu.memory_space<vmem>>, vector<1x8x16x256xbf16>
      %125 = vector.shape_cast %124 : vector<1x8x16x256xbf16> to vector<8x16x256xbf16>
      %126 = vector.shape_cast %111 : vector<8x16x256xbf16> to vector<1x8x16x256xbf16>
      tpu.vector_store %arg10[%c1_118, %123, %c0_119, %c0_120], %126 {strides = array<i32>} : memref<3x18x16x256xbf16, #tpu.memory_space<vmem>>, vector<1x8x16x256xbf16>,
      %c1_i32_121 = arith.constant 1 : i32
      %127 = arith.addi %57, %c1_i32_121 : i32
      %c2_122 = arith.constant 2 : index
      %128 = arith.index_cast %127 : i32 to index
      %c0_123 = arith.constant 0 : index
      %c0_124 = arith.constant 0 : index
      %129 = vector.load %arg10[%c2_122, %128, %c0_123, %c0_124] : memref<3x18x16x256xbf16, #tpu.memory_space<vmem>>, vector<1x8x16x256xbf16>
      %130 = vector.shape_cast %129 : vector<1x8x16x256xbf16> to vector<8x16x256xbf16>
      %131 = vector.shape_cast %116 : vector<8x16x256xbf16> to vector<1x8x16x256xbf16>
      tpu.vector_store %arg10[%c2_122, %128, %c0_123, %c0_124], %131 {strides = array<i32>} : memref<3x18x16x256xbf16, #tpu.memory_space<vmem>>, vector<1x8x16x256xbf16>,
    }
    %c2_i32_65 = arith.constant 2 : i32
    %c0_i32_66 = arith.constant 0 : i32
    %c2_i32_67 = arith.constant 2 : i32
    %53 = arith.addi %c0_i32_66, %c2_i32_67 : i32
    %c1_i32_68 = arith.constant 1 : i32
    scf.for %arg11 = %c0_i32_66 to %53 step %c1_i32_68  : i32 {
      %c1_i32_70 = arith.constant 1 : i32
      %54 = arith.muli %arg11, %c1_i32_70 : i32
      %c0_i32_71 = arith.constant 0 : i32
      %55 = arith.addi %c0_i32_71, %54 : i32
      %c8_i32 = arith.constant 8 : i32
      %56 = arith.muli %55, %c8_i32 : i32
      %57 = tpu.assume_multiple %56, 8 : i32
      %c0_i32_72 = arith.constant 0 : i32
      %58 = arith.addi %57, %c0_i32_72 : i32
      %c0_73 = arith.constant 0 : index
      %59 = arith.index_cast %58 : i32 to index
      %c0_74 = arith.constant 0 : index
      %c0_75 = arith.constant 0 : index
      %60 = vector.load %arg10[%c0_73, %59, %c0_74, %c0_75] : memref<3x18x16x256xbf16, #tpu.memory_space<vmem>>, vector<1x8x16x256xbf16>
      %61 = vector.shape_cast %60 : vector<1x8x16x256xbf16> to vector<8x16x256xbf16>
      %62 = vector.shape_cast %61 : vector<8x16x256xbf16> to vector<128x256xbf16>
      %c0_i32_76 = arith.constant 0 : i32
      %63 = arith.addi %57, %c0_i32_76 : i32
      %c1_77 = arith.constant 1 : index
      %64 = arith.index_cast %63 : i32 to index
      %c0_78 = arith.constant 0 : index
      %c0_79 = arith.constant 0 : index
      %65 = vector.load %arg10[%c1_77, %64, %c0_78, %c0_79] : memref<3x18x16x256xbf16, #tpu.memory_space<vmem>>, vector<1x8x16x256xbf16>
      %66 = vector.shape_cast %65 : vector<1x8x16x256xbf16> to vector<8x16x256xbf16>
      %67 = vector.shape_cast %66 : vector<8x16x256xbf16> to vector<128x256xbf16>
      %c0_i32_80 = arith.constant 0 : i32
      %68 = arith.addi %57, %c0_i32_80 : i32
      %c2_81 = arith.constant 2 : index
      %69 = arith.index_cast %68 : i32 to index
      %c0_82 = arith.constant 0 : index
      %c0_83 = arith.constant 0 : index
      %70 = vector.load %arg10[%c2_81, %69, %c0_82, %c0_83] : memref<3x18x16x256xbf16, #tpu.memory_space<vmem>>, vector<1x8x16x256xbf16>
      %71 = vector.shape_cast %70 : vector<1x8x16x256xbf16> to vector<8x16x256xbf16>
      %72 = vector.shape_cast %71 : vector<8x16x256xbf16> to vector<128x256xbf16>
      %c1_i32_84 = arith.constant 1 : i32
      %73 = arith.addi %57, %c1_i32_84 : i32
      %c0_85 = arith.constant 0 : index
      %74 = arith.index_cast %73 : i32 to index
      %c0_86 = arith.constant 0 : index
      %c0_87 = arith.constant 0 : index
      %75 = vector.load %arg10[%c0_85, %74, %c0_86, %c0_87] : memref<3x18x16x256xbf16, #tpu.memory_space<vmem>>, vector<1x8x16x256xbf16>
      %76 = vector.shape_cast %75 : vector<1x8x16x256xbf16> to vector<8x16x256xbf16>
      %77 = vector.shape_cast %76 : vector<8x16x256xbf16> to vector<128x256xbf16>
      %c1_i32_88 = arith.constant 1 : i32
      %78 = arith.addi %57, %c1_i32_88 : i32
      %c1_89 = arith.constant 1 : index
      %79 = arith.index_cast %78 : i32 to index
      %c0_90 = arith.constant 0 : index
      %c0_91 = arith.constant 0 : index
      %80 = vector.load %arg10[%c1_89, %79, %c0_90, %c0_91] : memref<3x18x16x256xbf16, #tpu.memory_space<vmem>>, vector<1x8x16x256xbf16>
      %81 = vector.shape_cast %80 : vector<1x8x16x256xbf16> to vector<8x16x256xbf16>
      %82 = vector.shape_cast %81 : vector<8x16x256xbf16> to vector<128x256xbf16>
      %c1_i32_92 = arith.constant 1 : i32
      %83 = arith.addi %57, %c1_i32_92 : i32
      %c2_93 = arith.constant 2 : index
      %84 = arith.index_cast %83 : i32 to index
      %c0_94 = arith.constant 0 : index
      %c0_95 = arith.constant 0 : index
      %85 = vector.load %arg10[%c2_93, %84, %c0_94, %c0_95] : memref<3x18x16x256xbf16, #tpu.memory_space<vmem>>, vector<1x8x16x256xbf16>
      %86 = vector.shape_cast %85 : vector<1x8x16x256xbf16> to vector<8x16x256xbf16>
      %87 = vector.shape_cast %86 : vector<8x16x256xbf16> to vector<128x256xbf16>
      %c2_i32_96 = arith.constant 2 : i32
      %88 = arith.addi %57, %c2_i32_96 : i32
      %c0_97 = arith.constant 0 : index
      %89 = arith.index_cast %88 : i32 to index
      %c0_98 = arith.constant 0 : index
      %c0_99 = arith.constant 0 : index
      %90 = vector.load %arg10[%c0_97, %89, %c0_98, %c0_99] : memref<3x18x16x256xbf16, #tpu.memory_space<vmem>>, vector<1x8x16x256xbf16>
      %91 = vector.shape_cast %90 : vector<1x8x16x256xbf16> to vector<8x16x256xbf16>
      %92 = vector.shape_cast %91 : vector<8x16x256xbf16> to vector<128x256xbf16>
      %c2_i32_100 = arith.constant 2 : i32
      %93 = arith.addi %57, %c2_i32_100 : i32
      %c1_101 = arith.constant 1 : index
      %94 = arith.index_cast %93 : i32 to index
      %c0_102 = arith.constant 0 : index
      %c0_103 = arith.constant 0 : index
      %95 = vector.load %arg10[%c1_101, %94, %c0_102, %c0_103] : memref<3x18x16x256xbf16, #tpu.memory_space<vmem>>, vector<1x8x16x256xbf16>
      %96 = vector.shape_cast %95 : vector<1x8x16x256xbf16> to vector<8x16x256xbf16>
      %97 = vector.shape_cast %96 : vector<8x16x256xbf16> to vector<128x256xbf16>
      %c2_i32_104 = arith.constant 2 : i32
      %98 = arith.addi %57, %c2_i32_104 : i32
      %c2_105 = arith.constant 2 : index
      %99 = arith.index_cast %98 : i32 to index
      %c0_106 = arith.constant 0 : index
      %c0_107 = arith.constant 0 : index
      %100 = vector.load %arg10[%c2_105, %99, %c0_106, %c0_107] : memref<3x18x16x256xbf16, #tpu.memory_space<vmem>>, vector<1x8x16x256xbf16>
      %101 = vector.shape_cast %100 : vector<1x8x16x256xbf16> to vector<8x16x256xbf16>
      %102 = vector.shape_cast %101 : vector<8x16x256xbf16> to vector<128x256xbf16>
      %103 = tpu.concatenate %62, %67, %72, %77, %82, %87, %92, %97, %102 in 1 : vector<128x256xbf16>, vector<128x256xbf16>, vector<128x256xbf16>, vector<128x256xbf16>, vector<128x256xbf16>, vector<128x256xbf16>, vector<128x256xbf16>, vector<128x256xbf16>, vector<128x256xbf16> -> vector<128x2304xbf16>
      %c0_108 = arith.constant 0 : index
      %c0_109 = arith.constant 0 : index
      %104 = vector.load %arg4[%c0_108, %c0_109] : memref<2304x128xbf16, #tpu.memory_space<vmem>>, vector<2304x128xbf16>
      %cst_110 = arith.constant dense<0.000000e+00> : vector<128x128xf32>
      %105 = tpu.matmul %103, %104, %cst_110 {dimension_numbers = #tpu.dot_dimension_numbers<[1], [0], [0], [1], [0, 0, 1, 1], [], []>} : vector<128x2304xbf16>, vector<2304x128xbf16>, vector<128x128xf32> -> vector<128x128xf32>
      %106 = vector.broadcast %50 : vector<1x128xf32> to vector<128x128xf32>
      %107 = arith.addf %105, %106 : vector<128x128xf32>
      %cst_111 = arith.constant 0.000000e+00 : f32
      %108 = vector.broadcast %cst_111 : f32 to vector<128x128xf32>
      %109 = arith.maximumf %107, %108 : vector<128x128xf32>
      %110 = vector.shape_cast %109 : vector<128x128xf32> to vector<8x16x128xf32>
      %111 = vector.shape_cast %110 : vector<8x16x128xf32> to vector<4x2x16x128xf32>
      %cst_112 = arith.constant dense<0xFF800000> : vector<4x16x128xf32>
      %112 = vector.multi_reduction <maximumf>, %111, %cst_112 [1] : vector<4x2x16x128xf32> to vector<4x16x128xf32>
      %113 = vector.shape_cast %112 : vector<4x16x128xf32> to vector<4x8x2x128xf32>
      %cst_113 = arith.constant dense<0xFF800000> : vector<4x8x128xf32>
      %114 = vector.multi_reduction <maximumf>, %113, %cst_113 [2] : vector<4x8x2x128xf32> to vector<4x8x128xf32>
      %c4_i32 = arith.constant 4 : i32
      %115 = arith.muli %55, %c4_i32 : i32
      %116 = tpu.assume_multiple %115, 4 : i32
      %c0_114 = arith.constant 0 : index
      %117 = arith.index_cast %116 : i32 to index
      %c0_115 = arith.constant 0 : index
      %c0_116 = arith.constant 0 : index
      %118 = vector.load %arg8[%c0_114, %117, %c0_115, %c0_116] : memref<1x8x8x128xf32, #tpu.memory_space<vmem>>, vector<1x4x8x128xf32>
      %119 = vector.shape_cast %118 : vector<1x4x8x128xf32> to vector<4x8x128xf32>
      %120 = vector.shape_cast %114 : vector<4x8x128xf32> to vector<1x4x8x128xf32>
      tpu.vector_store %arg8[%c0_114, %117, %c0_115, %c0_116], %120 {strides = array<i32>} : memref<1x8x8x128xf32, #tpu.memory_space<vmem>>, vector<1x4x8x128xf32>,
    }
    %c2_i32_69 = arith.constant 2 : i32
    return
  }
  func.func @transform_0(%arg0: i32) -> (i32, i32, i32) {
    %c0_i32 = arith.constant 0 : i32
    %c0_i32_0 = arith.constant 0 : i32
    %c0_i32_1 = arith.constant 0 : i32
    return %arg0, %c0_i32, %c0_i32_0 : i32, i32, i32
  }
  func.func @transform_1(%arg0: i32) -> (i32, i32) {
    %c0_i32 = arith.constant 0 : i32
    %c0_i32_0 = arith.constant 0 : i32
    %c0_i32_1 = arith.constant 0 : i32
    return %c0_i32, %c0_i32_0 : i32, i32
  }
  func.func @transform_2(%arg0: i32) -> (i32, i32) {
    %c0_i32 = arith.constant 0 : i32
    %c0_i32_0 = arith.constant 0 : i32
    %c0_i32_1 = arith.constant 0 : i32
    return %c0_i32, %c0_i32_0 : i32, i32
  }
  func.func @transform_3(%arg0: i32) -> (i32, i32) {
    %c0_i32 = arith.constant 0 : i32
    %c0_i32_0 = arith.constant 0 : i32
    %c0_i32_1 = arith.constant 0 : i32
    return %c0_i32, %c0_i32_0 : i32, i32
  }
  func.func @transform_4(%arg0: i32) -> (i32, i32) {
    %c0_i32 = arith.constant 0 : i32
    %c0_i32_0 = arith.constant 0 : i32
    %c0_i32_1 = arith.constant 0 : i32
    return %c0_i32, %c0_i32_0 : i32, i32
  }
  func.func @transform_5(%arg0: i32) -> (i32, i32) {
    %c0_i32 = arith.constant 0 : i32
    %c0_i32_0 = arith.constant 0 : i32
    %c0_i32_1 = arith.constant 0 : i32
    return %c0_i32, %c0_i32_0 : i32, i32
  }
  func.func @transform_6(%arg0: i32) -> (i32, i32) {
    %c0_i32 = arith.constant 0 : i32
    %c0_i32_0 = arith.constant 0 : i32
    %c0_i32_1 = arith.constant 0 : i32
    return %c0_i32, %c0_i32_0 : i32, i32
  }
  func.func @transform_7(%arg0: i32) -> (i32, i32, i32, i32) {
    %c0_i32 = arith.constant 0 : i32
    %c0_i32_0 = arith.constant 0 : i32
    %c0_i32_1 = arith.constant 0 : i32
    %c0_i32_2 = arith.constant 0 : i32
    return %arg0, %c0_i32, %c0_i32_0, %c0_i32_1 : i32, i32, i32, i32
  }
}

</mosaic_0001>

<llo_original>
// kernel: down_forward.1
$region0: #{down_forward.1}
  #allocation0 [shape = 'u32[]', space=smem, size = 0x4, offset = 0x4, fixed_abs, tag = 'smem constant byte address 0x4 - core index']
  #allocation1 [shape = 'u32[144,128]{1,0:T(1,128)}', space=vmem, size = 0x12000, scoped, tag = 'internal scratch']
  #allocation2 [shape = 'bf16[3,18,16,128]{3,2,1,0:T(8,128)(2,1)}', space=vmem, size = 0x36000, scoped, tag = 'scratch operand']
  #allocation3 [shape = 'bf16[3,18,16,256]{3,2,1,0:T(8,128)(2,1)}', space=vmem, size = 0x6c000, scoped, tag = 'scratch operand']
  %s0 = inlined_call_operand.vmem [shape: bf16[2,256,128], index: 0, kind: input, shape index: {}]
  %s1 = inlined_call_operand.vmem [shape: bf16[128,128], index: 1, kind: input, shape index: {}]
  %s2 = inlined_call_operand.vmem [shape: bf16[1152,256], index: 2, kind: input, shape index: {}]
  %s3 = inlined_call_operand.vmem [shape: bf16[2304,128], index: 3, kind: input, shape index: {}]
  %s4 = inlined_call_operand.vmem [shape: f32[1,128], index: 4, kind: input, shape index: {}]
  %s5 = inlined_call_operand.vmem [shape: f32[1,256], index: 5, kind: input, shape index: {}]
  %s6 = inlined_call_operand.vmem [shape: f32[1,128], index: 6, kind: input, shape index: {}]
  %s7 = inlined_call_operand.hbm [shape: f32[2,8,8,128], index: 7, kind: output, shape index: {}]
  %s8 = sld [smem:[#allocation0]]
  $region82: #{down_forward.1} parent=0
    _
  %s10 = ssub.s32 1, %s8
  %s11 = scalar_select 0, %s10, %s8
  $region1: #{down_forward.1} parent=0
    #allocation4 [shape = 'u8[65536]{0}', space=vmem, size = 0x10000, scoped, tag = 'output window, operand 0']
    #allocation5 [shape = 's32[2]{0}', space=sflag, size = 0x8, scoped, tag = 'scoped memory for down_forward.1']
    %12 = vsyncpa [#allocation5], 0
    %s13 = scalar_lea.sflag [#allocation5], 1
    %14 = vsyncpa %s13, 0
    loop: start=0, step=1, limit=4
    $region2: #{down_forward.1} parent=1 // loop_pre_header
      _
    $region3: #{down_forward.1} parent=1 // loop_header
      %s16 = sphi 0, %s20
      %p17 = scmp.ge.s32.totalorder %s16, 4
      %s26 = sphi 0, %s28
      %s29 = sphi 0, %s26
      %s30 = sphi 0, %s29
      %s46 = sphi 0, %s30
      %s50 = sphi 0, %s50
      %s52 = sphi 0, %s50
      %s53 = sphi 0, %s52
      %s67 = sphi 0, %s53
      %s71 = sphi 0, %s71
      %s73 = sphi 0, %s71
      %s74 = sphi 0, %s73
      %s88 = sphi 0, %s74
      %s92 = sphi 0, %s92
      %s94 = sphi 0, %s92
      %s95 = sphi 0, %s94
      %s109 = sphi 0, %s95
      %s113 = sphi 0, %s113
      %s115 = sphi 0, %s113
      %s116 = sphi 0, %s115
      %s130 = sphi 0, %s116
      %s134 = sphi 0, %s134
      %s136 = sphi 0, %s134
      %s137 = sphi 0, %s136
      %s151 = sphi 0, %s137
      %s155 = sphi 0, %s155
      %s157 = sphi 0, %s155
      %s158 = sphi 0, %s157
      %s172 = sphi 0, %s158
      %s178 = sphi 0, %s180
      %s181 = sphi 0, %s178
      %s182 = sphi 0, %s181
      %s198 = sphi 0, %s182
    $region4: #{down_forward.1} parent=1 // loop_header_branch
      %19 = sbr.rel (%p17) target = $region8
    $region5: #{down_forward.1} parent=1 // loop_body
      %s21 = ssub.s32 %s16, 1
      %s22 = ssub.s32 %s16, 2
      %s23 = sadd.s32 %s16, 1
      %s24 = ssub.s32 %s16, %s23
      %p25 = scmp.eq.s32.totalorder %s24, 0
      %s27 = sadd.s32 %s26, 1
      %s28 = scalar_select %p25, %s26, %s27
      %p31 = pneg %p25
      %p32 = scmp.eq.s32.totalorder %s16, 1
      %p33 = por %p31, %p32
      %p34 = scmp.ne.s32.totalorder %s26, %s29
      %p35 = scmp.eq.s32.totalorder %s16, 0
      %p36 = por %p34, %p35
      %p37 = scmp.ne.s32.totalorder %s26, %s29
      %p38 = scmp.eq.s32.totalorder %s21, 1
      %p39 = por %p37, %p38
      %p40 = scmp.ne.s32.totalorder %s29, %s30
      %p41 = scmp.eq.s32.totalorder %s21, 0
      %p42 = por %p40, %p41
      %p43 = scmp.ne.s32.totalorder %s29, %s30
      %p44 = scmp.eq.s32.totalorder %s22, 1
      %p45 = por %p43, %p44
      %p47 = scmp.ne.s32.totalorder %s30, %s46
      %p48 = scmp.eq.s32.totalorder %s22, 0
      %p49 = por %p47, %p48
      %s51 = sadd.s32 %s50, 1
      %p54 = scmp.eq.s32.totalorder %s16, 1
      %p55 = scmp.ne.s32.totalorder %s50, %s52
      %p56 = scmp.eq.s32.totalorder %s16, 0
      %p57 = por %p55, %p56
      %p58 = scmp.ne.s32.totalorder %s50, %s52
      %p59 = scmp.eq.s32.totalorder %s21, 1
      %p60 = por %p58, %p59
      %p61 = scmp.ne.s32.totalorder %s52, %s53
      %p62 = scmp.eq.s32.totalorder %s21, 0
      %p63 = por %p61, %p62
      %p64 = scmp.ne.s32.totalorder %s52, %s53
      %p65 = scmp.eq.s32.totalorder %s22, 1
      %p66 = por %p64, %p65
      %p68 = scmp.ne.s32.totalorder %s53, %s67
      %p69 = scmp.eq.s32.totalorder %s22, 0
      %p70 = por %p68, %p69
      %s72 = sadd.s32 %s71, 1
      %p75 = scmp.eq.s32.totalorder %s16, 1
      %p76 = scmp.ne.s32.totalorder %s71, %s73
      %p77 = scmp.eq.s32.totalorder %s16, 0
      %p78 = por %p76, %p77
      %p79 = scmp.ne.s32.totalorder %s71, %s73
      %p80 = scmp.eq.s32.totalorder %s21, 1
      %p81 = por %p79, %p80
      %p82 = scmp.ne.s32.totalorder %s73, %s74
      %p83 = scmp.eq.s32.totalorder %s21, 0
      %p84 = por %p82, %p83
      %p85 = scmp.ne.s32.totalorder %s73, %s74
      %p86 = scmp.eq.s32.totalorder %s22, 1
      %p87 = por %p85, %p86
      %p89 = scmp.ne.s32.totalorder %s74, %s88
      %p90 = scmp.eq.s32.totalorder %s22, 0
      %p91 = por %p89, %p90
      %s93 = sadd.s32 %s92, 1
      %p96 = scmp.eq.s32.totalorder %s16, 1
      %p97 = scmp.ne.s32.totalorder %s92, %s94
      %p98 = scmp.eq.s32.totalorder %s16, 0
      %p99 = por %p97, %p98
      %p100 = scmp.ne.s32.totalorder %s92, %s94
      %p101 = scmp.eq.s32.totalorder %s21, 1
      %p102 = por %p100, %p101
      %p103 = scmp.ne.s32.totalorder %s94, %s95
      %p104 = scmp.eq.s32.totalorder %s21, 0
      %p105 = por %p103, %p104
      %p106 = scmp.ne.s32.totalorder %s94, %s95
      %p107 = scmp.eq.s32.totalorder %s22, 1
      %p108 = por %p106, %p107
      %p110 = scmp.ne.s32.totalorder %s95, %s109
      %p111 = scmp.eq.s32.totalorder %s22, 0
      %p112 = por %p110, %p111
      %s114 = sadd.s32 %s113, 1
      %p117 = scmp.eq.s32.totalorder %s16, 1
      %p118 = scmp.ne.s32.totalorder %s113, %s115
      %p119 = scmp.eq.s32.totalorder %s16, 0
      %p120 = por %p118, %p119
      %p121 = scmp.ne.s32.totalorder %s113, %s115
      %p122 = scmp.eq.s32.totalorder %s21, 1
      %p123 = por %p121, %p122
      %p124 = scmp.ne.s32.totalorder %s115, %s116
      %p125 = scmp.eq.s32.totalorder %s21, 0
      %p126 = por %p124, %p125
      %p127 = scmp.ne.s32.totalorder %s115, %s116
      %p128 = scmp.eq.s32.totalorder %s22, 1
      %p129 = por %p127, %p128
      %p131 = scmp.ne.s32.totalorder %s116, %s130
      %p132 = scmp.eq.s32.totalorder %s22, 0
      %p133 = por %p131, %p132
      %s135 = sadd.s32 %s134, 1
      %p138 = scmp.eq.s32.totalorder %s16, 1
      %p139 = scmp.ne.s32.totalorder %s134, %s136
      %p140 = scmp.eq.s32.totalorder %s16, 0
      %p141 = por %p139, %p140
      %p142 = scmp.ne.s32.totalorder %s134, %s136
      %p143 = scmp.eq.s32.totalorder %s21, 1
      %p144 = por %p142, %p143
      %p145 = scmp.ne.s32.totalorder %s136, %s137
      %p146 = scmp.eq.s32.totalorder %s21, 0
      %p147 = por %p145, %p146
      %p148 = scmp.ne.s32.totalorder %s136, %s137
      %p149 = scmp.eq.s32.totalorder %s22, 1
      %p150 = por %p148, %p149
      %p152 = scmp.ne.s32.totalorder %s137, %s151
      %p153 = scmp.eq.s32.totalorder %s22, 0
      %p154 = por %p152, %p153
      %s156 = sadd.s32 %s155, 1
      %p159 = scmp.eq.s32.totalorder %s16, 1
      %p160 = scmp.ne.s32.totalorder %s155, %s157
      %p161 = scmp.eq.s32.totalorder %s16, 0
      %p162 = por %p160, %p161
      %p163 = scmp.ne.s32.totalorder %s155, %s157
      %p164 = scmp.eq.s32.totalorder %s21, 1
      %p165 = por %p163, %p164
      %p166 = scmp.ne.s32.totalorder %s157, %s158
      %p167 = scmp.eq.s32.totalorder %s21, 0
      %p168 = por %p166, %p167
      %p169 = scmp.ne.s32.totalorder %s157, %s158
      %p170 = scmp.eq.s32.totalorder %s22, 1
      %p171 = por %p169, %p170
      %p173 = scmp.ne.s32.totalorder %s158, %s172
      %p174 = scmp.eq.s32.totalorder %s22, 0
      %p175 = por %p173, %p174
      %s176 = ssub.s32 %s16, %s23
      %p177 = scmp.eq.s32.totalorder %s176, 0
      %s179 = sadd.s32 %s178, 1
      %s180 = scalar_select %p177, %s178, %s179
      %p183 = pneg %p177
      %p184 = scmp.eq.s32.totalorder %s16, 1
      %p185 = por %p183, %p184
      %p186 = scmp.ne.s32.totalorder %s178, %s181
      %p187 = scmp.eq.s32.totalorder %s16, 0
      %p188 = por %p186, %p187
      %p189 = scmp.ne.s32.totalorder %s178, %s181
      %p190 = scmp.eq.s32.totalorder %s21, 1
      %p191 = por %p189, %p190
      %p192 = scmp.ne.s32.totalorder %s181, %s182
      %p193 = scmp.eq.s32.totalorder %s21, 0
      %p194 = por %p192, %p193
      %p195 = scmp.ne.s32.totalorder %s181, %s182
      %p196 = scmp.eq.s32.totalorder %s22, 1
      %p197 = por %p195, %p196
      %p199 = scmp.ne.s32.totalorder %s182, %s198
      %p200 = scmp.eq.s32.totalorder %s22, 0
      %p201 = por %p199, %p200
      %p202 = scmp.le.s32.totalorder 1, %s16
      %p203 = scmp.lt.s32.totalorder %s16, 3
      %p204 = pnand %p202, %p203
      %p205 = pneg %p204
      // Predicated region
      $region9: #{down_forward.1} parent=5 // pred_check
        _
      $region10: #{down_forward.1} parent=5 // pred_check_branch
        %207 = sbr.rel (%p204) target = $region12
      $region11: #{down_forward.1} parent=5 // pred_region
        %s208 = ssub.s32 %s16, 1
        // Predicated region
        $region13: #{down_forward.1} parent=11 // pred_check
          %p209 = pneg %p63
        $region14: #{down_forward.1} parent=11 // pred_check_branch
          %211 = sbr.rel (%p209) target = $region16
        $region15: #{down_forward.1} parent=11 // pred_region
          _
        $region16: #{down_forward.1} parent=11 // pred_fallthru
          _
        // Predicated region
        $region17: #{down_forward.1} parent=11 // pred_check
          %p212 = pneg %p84
        $region18: #{down_forward.1} parent=11 // pred_check_branch
          %214 = sbr.rel (%p212) target = $region20
        $region19: #{down_forward.1} parent=11 // pred_region
          _
        $region20: #{down_forward.1} parent=11 // pred_fallthru
          _
        // Predicated region
        $region21: #{down_forward.1} parent=11 // pred_check
          %p215 = pneg %p105
        $region22: #{down_forward.1} parent=11 // pred_check_branch
          %217 = sbr.rel (%p215) target = $region24
        $region23: #{down_forward.1} parent=11 // pred_region
          _
        $region24: #{down_forward.1} parent=11 // pred_fallthru
          _
        // Predicated region
        $region25: #{down_forward.1} parent=11 // pred_check
          %p218 = pneg %p126
        $region26: #{down_forward.1} parent=11 // pred_check_branch
          %220 = sbr.rel (%p218) target = $region28
        $region27: #{down_forward.1} parent=11 // pred_region
          _
        $region28: #{down_forward.1} parent=11 // pred_fallthru
          _
        // Predicated region
        $region29: #{down_forward.1} parent=11 // pred_check
          %p221 = pneg %p147
        $region30: #{down_forward.1} parent=11 // pred_check_branch
          %223 = sbr.rel (%p221) target = $region32
        $region31: #{down_forward.1} parent=11 // pred_region
          _
        $region32: #{down_forward.1} parent=11 // pred_fallthru
          _
        // Predicated region
        $region33: #{down_forward.1} parent=11 // pred_check
          %p224 = pneg %p168
        $region34: #{down_forward.1} parent=11 // pred_check_branch
          %226 = sbr.rel (%p224) target = $region36
        $region35: #{down_forward.1} parent=11 // pred_region
          _
        $region36: #{down_forward.1} parent=11 // pred_fallthru
          _
      $region12: #{down_forward.1} parent=5 // pred_fallthru
        _
      %p227 = scmp.lt.s32.totalorder %s16, 2
      // Predicated region
      $region37: #{down_forward.1} parent=5 // pred_check
        %p228 = pneg %p227
      $region38: #{down_forward.1} parent=5 // pred_check_branch
        %230 = sbr.rel (%p228) target = $region40
      $region39: #{down_forward.1} parent=5 // pred_region
        // Predicated region
        $region41: #{down_forward.1} parent=39 // pred_check
          %p231 = pneg %p36
        $region42: #{down_forward.1} parent=39 // pred_check_branch
          %233 = sbr.rel (%p231) target = $region44
        $region43: #{down_forward.1} parent=39 // pred_region
          %p234 = scmp.lt.s32.totalorder %s16, 1
          %s235 = scalar_select %p234, %s16, 1
          %s236 = smul.addr %s235, 32
          %s237 = smul.addr %s236, 4
          %s238 = scalar_lea.vmem %s0, %s237
        $region44: #{down_forward.1} parent=39 // pred_fallthru
          _
      $region40: #{down_forward.1} parent=5 // pred_fallthru
        _
      %p239 = scmp.le.s32.totalorder 1, %s16
      %p240 = scmp.lt.s32.totalorder %s16, 3
      %p241 = pnand %p239, %p240
      %p242 = pneg %p241
      // Predicated region
      $region45: #{down_forward.1} parent=5 // pred_check
        _
      $region46: #{down_forward.1} parent=5 // pred_check_branch
        %244 = sbr.rel (%p241) target = $region48
      $region47: #{down_forward.1} parent=5 // pred_region
        %s245 = ssub.s32 %s16, 1
        %p246 = scmp.lt.s32.totalorder %s21, 1
        %s247 = scalar_select %p246, %s21, 1
        %s248 = smul.addr %s247, 32
        %s249 = smul.addr %s248, 4
        %s250 = scalar_lea.vmem %s0, %s249
        %p251 = pneg %p42
        %p252 = pneg %p39
        %p253 = pneg %p63
        %p254 = pneg %p60
        %p255 = pneg %p84
        %p256 = pneg %p81
        %p257 = pneg %p105
        %p258 = pneg %p102
        %p259 = pneg %p126
        %p260 = pneg %p123
        %p261 = pneg %p147
        %p262 = pneg %p144
        %p263 = pneg %p168
        %p264 = pneg %p165
        %p265 = pneg %p194
        %p266 = pneg %p191
        %s267 = sand.u32 %s181, 1
        %s268 = scalar_lea.sflag [#allocation5], %s267
        %s269 = sand.u32 %s181, 1
        %s270 = smul.addr %s269, 64
        %s271 = scalar_lea.vmem [#allocation4], %s270
        %p272 = scmp.lt.s32.totalorder %s21, 1
        %s273 = scalar_select %p272, %s21, 1
        %s274 = smul.addr %s273, 32
        %s275 = smul.addr %s274, 4
        %s276 = scalar_lea.vmem %s0, %s275
        %278 = vst [vmem:[#allocation2] sm:$0xf] 0
        %279 = vst [vmem:[#allocation2 + $0x4] sm:$0xf] 0
        %s280 = scalar_lea.vmem [#allocation2], 136
        %281 = vst [vmem:[%s280] sm:$0xf] 0
        %282 = vst [vmem:[%s280 + $0x4] sm:$0xf] 0
        %283 = vst [vmem:[#allocation3] sm:$0xff] 0
        %284 = vst [vmem:[#allocation3 + $0x8] sm:$0xff] 0
        %s285 = scalar_lea.vmem [#allocation3], 272
        %286 = vst [vmem:[%s285] sm:$0xff] 0
        %287 = vst [vmem:[%s285 + $0x8] sm:$0xff] 0
        %s288 = scalar_lea.vmem [#allocation2], 144
        %289 = vst [vmem:[%s288] sm:$0xf] 0
        %290 = vst [vmem:[%s288 + $0x4] sm:$0xf] 0
        %s291 = scalar_lea.vmem [#allocation2], 280
        %292 = vst [vmem:[%s291] sm:$0xf] 0
        %293 = vst [vmem:[%s291 + $0x4] sm:$0xf] 0
        %s294 = scalar_lea.vmem [#allocation3], 288
        %295 = vst [vmem:[%s294] sm:$0xff] 0
        %296 = vst [vmem:[%s294 + $0x8] sm:$0xff] 0
        %s297 = scalar_lea.vmem [#allocation3], 560
        %298 = vst [vmem:[%s297] sm:$0xff] 0
        %299 = vst [vmem:[%s297 + $0x8] sm:$0xff] 0
        %s300 = scalar_lea.vmem [#allocation2], 288
        %301 = vst [vmem:[%s300] sm:$0xf] 0
        %302 = vst [vmem:[%s300 + $0x4] sm:$0xf] 0
        %s303 = scalar_lea.vmem [#allocation2], 424
        %304 = vst [vmem:[%s303] sm:$0xf] 0
        %305 = vst [vmem:[%s303 + $0x4] sm:$0xf] 0
        %s306 = scalar_lea.vmem [#allocation3], 576
        %307 = vst [vmem:[%s306] sm:$0xff] 0
        %308 = vst [vmem:[%s306 + $0x8] sm:$0xff] 0
        %s309 = scalar_lea.vmem [#allocation3], 848
        %310 = vst [vmem:[%s309] sm:$0xff] 0
        %311 = vst [vmem:[%s309 + $0x8] sm:$0xff] 0
        %v312 = vld [vmem:[%s4] sm:$0x1]
        %v313 = vld [vmem:[%s5] sm:$0x3]
        %v314 = vld [vmem:[%s6] sm:$0x1]
        loop: start=0, step=1, limit=2
        $region49: #{down_forward.1} parent=47 // loop_pre_header
          _
        $region50: #{down_forward.1} parent=47 // loop_header
          %s316 = sphi 0, %s320
          %p317 = scmp.ge.s32.totalorder %s316, 2
        $region51: #{down_forward.1} parent=47 // loop_header_branch
          %319 = sbr.rel (%p317) target = $region55
        $region52: #{down_forward.1} parent=47 // loop_body
          %s321 = smul.u32 %s316, 128
          %s322 = smul.u32 %s316, 8
          %s323 = sshra.s32 %s321, 3
          %s324 = sand.u32 %s321, 7
          %s325 = smul.addr %s323, 4
          %s326 = scalar_lea.vmem %s276, %s325
          %v327 = vld [vmem:[%s326] sm:$0xf]
          %v328 = vld [vmem:[%s326 + $0x4] sm:$0xf]
          %v329 = vld [vmem:[%s326 + $0x8] sm:$0xf]
          %v330 = vld [vmem:[%s326 + $0xc] sm:$0xf]
          %v331 = vld [vmem:[%s326 + $0x10] sm:$0xf]
          %v332 = vld [vmem:[%s326 + $0x14] sm:$0xf]
          %v333 = vld [vmem:[%s326 + $0x18] sm:$0xf]
          %v334 = vld [vmem:[%s326 + $0x1c] sm:$0xf]
          %v335 = vld [vmem:[%s326 + $0x20] sm:$0xf]
          %v336 = vld [vmem:[%s326 + $0x24] sm:$0xf]
          %v337 = vld [vmem:[%s326 + $0x28] sm:$0xf]
          %v338 = vld [vmem:[%s326 + $0x2c] sm:$0xf]
          %v339 = vld [vmem:[%s326 + $0x30] sm:$0xf]
          %v340 = vld [vmem:[%s326 + $0x34] sm:$0xf]
          %v341 = vld [vmem:[%s326 + $0x38] sm:$0xf]
          %v342 = vld [vmem:[%s326 + $0x3c] sm:$0xf]
          %v343 = vld [vmem:[%s1] sm:$0xf]
          %v344 = vld [vmem:[%s1 + $0x4] sm:$0xf]
          %v345 = vld [vmem:[%s1 + $0x8] sm:$0xf]
          %v346 = vld [vmem:[%s1 + $0xc] sm:$0xf]
          %v347 = vld [vmem:[%s1 + $0x10] sm:$0xf]
          %v348 = vld [vmem:[%s1 + $0x14] sm:$0xf]
          %v349 = vld [vmem:[%s1 + $0x18] sm:$0xf]
          %v350 = vld [vmem:[%s1 + $0x1c] sm:$0xf]
          %v351 = vld [vmem:[%s1 + $0x20] sm:$0xf]
          %v352 = vld [vmem:[%s1 + $0x24] sm:$0xf]
          %v353 = vld [vmem:[%s1 + $0x28] sm:$0xf]
          %v354 = vld [vmem:[%s1 + $0x2c] sm:$0xf]
          %v355 = vld [vmem:[%s1 + $0x30] sm:$0xf]
          %v356 = vld [vmem:[%s1 + $0x34] sm:$0xf]
          %v357 = vld [vmem:[%s1 + $0x38] sm:$0xf]
          %v358 = vld [vmem:[%s1 + $0x3c] sm:$0xf]
          %v360 = vlaneseq
          %v361 = vshrl.u32 %v360, 7
          %v362 = vsub.s32 0, %v361
          %v363 = vrot.slane %v312, %v362
          %v381 = vunpack.c.l.b16 %v327
          %v382 = vunpack.c.l.b16 %v328
          %v383 = vunpack.c.l.b16 %v329
          %v384 = vunpack.c.l.b16 %v330
          %v385 = vunpack.c.l.b16 %v331
          %v386 = vunpack.c.l.b16 %v332
          %v387 = vunpack.c.l.b16 %v333
          %v388 = vunpack.c.l.b16 %v334
          %v389 = vunpack.c.l.b16 %v335
          %v390 = vunpack.c.l.b16 %v336
          %v391 = vunpack.c.l.b16 %v337
          %v392 = vunpack.c.l.b16 %v338
          %v393 = vunpack.c.l.b16 %v339
          %v394 = vunpack.c.l.b16 %v340
          %v395 = vunpack.c.l.b16 %v341
          %v396 = vunpack.c.l.b16 %v342
          %v397 = vpack.c.b16 %v382, %v381
          %v398 = vpack.c.b16 %v384, %v383
          %v399 = vpack.c.b16 %v386, %v385
          %v400 = vpack.c.b16 %v388, %v387
          %v401 = vpack.c.b16 %v390, %v389
          %v402 = vpack.c.b16 %v392, %v391
          %v403 = vpack.c.b16 %v394, %v393
          %v404 = vpack.c.b16 %v396, %v395
          %v429 = vunpack.c.l.b16 %v343
          %v430 = vunpack.c.l.b16 %v344
          %v431 = vunpack.c.l.b16 %v345
          %v432 = vunpack.c.l.b16 %v346
          %v433 = vunpack.c.l.b16 %v347
          %v434 = vunpack.c.l.b16 %v348
          %v435 = vunpack.c.l.b16 %v349
          %v436 = vunpack.c.l.b16 %v350
          %v437 = vunpack.c.l.b16 %v351
          %v438 = vunpack.c.l.b16 %v352
          %v439 = vunpack.c.l.b16 %v353
          %v440 = vunpack.c.l.b16 %v354
          %v441 = vunpack.c.l.b16 %v355
          %v442 = vunpack.c.l.b16 %v356
          %v443 = vunpack.c.l.b16 %v357
          %v444 = vunpack.c.l.b16 %v358
          %v445 = vpack.c.b16 %v430, %v429
          %v446 = vpack.c.b16 %v432, %v431
          %v447 = vpack.c.b16 %v434, %v433
          %v448 = vpack.c.b16 %v436, %v435
          %v449 = vpack.c.b16 %v438, %v437
          %v450 = vpack.c.b16 %v440, %v439
          %v451 = vpack.c.b16 %v442, %v441
          %v452 = vpack.c.b16 %v444, %v443
          %461 = vmatprep.subr.bf16.mxu0 0
          %462 = vmatpush1.bf16.msra.mxu0 %v452
          %463 = vmatprep.subr.bf16.mxu0 0
          %464 = vmatpush1.bf16.msra.mxu0 %v451
          %465 = vmatprep.subr.bf16.mxu0 0
          %466 = vmatpush1.bf16.msra.mxu0 %v450
          %467 = vmatprep.subr.bf16.mxu0 0
          %468 = vmatpush1.bf16.msra.mxu0 %v449
          %469 = vmatprep.subr.bf16.mxu0 0
          %470 = vmatpush1.bf16.msra.mxu0 %v448
          %471 = vmatprep.subr.bf16.mxu0 0
          %472 = vmatpush1.bf16.msra.mxu0 %v447
          %473 = vmatprep.subr.bf16.mxu0 0
          %474 = vmatpush1.bf16.msra.mxu0 %v446
          %475 = vmatprep.subr.bf16.mxu0 0
          %476 = vmatpush1.bf16.msra.mxu0 %v445
          %477 = vmatprep.subr.bf16.mxu0 0
          %478 = vmatpush2.bf16.msra.mxu0 0
          %479 = vmatprep.subr.bf16.mxu0 0
          %480 = vmatpush2.bf16.msra.mxu0 0
          %481 = vmatprep.subr.bf16.mxu0 0
          %482 = vmatpush2.bf16.msra.mxu0 0
          %483 = vmatprep.subr.bf16.mxu0 0
          %484 = vmatpush2.bf16.msra.mxu0 0
          %485 = vmatprep.subr.bf16.mxu0 0
          %486 = vmatpush2.bf16.msra.mxu0 0
          %487 = vmatprep.subr.bf16.mxu0 0
          %488 = vmatpush2.bf16.msra.mxu0 0
          %489 = vmatprep.subr.bf16.mxu0 0
          %490 = vmatpush2.bf16.msra.mxu0 0
          %491 = vmatprep.subr.bf16.mxu0 0
          %492 = vmatpush2.bf16.msra.mxu0 0
          %493 = vmatprep.mubr.bf16.mxu0 0
          %494 = vmatmul.mubr.bf16.gmra.mxu0 %v397
          %v495 = vpop.f32.mrf.mxu0
          %v496 = vadd.f32 %v363, %v495
          %v497 = vpop.f32.mrf.mxu0
          %v498 = vpop.f32.mrf.mxu0
          %v499 = vadd.f32 %v363, %v498
          %v500 = vpop.f32.mrf.mxu0
          %501 = vmatprep.mubr.bf16.mxu0 0
          %502 = vmatmul.mubr.bf16.gmra.mxu0 %v398
          %v503 = vpop.f32.mrf.mxu0
          %v504 = vadd.f32 %v363, %v503
          %v505 = vpop.f32.mrf.mxu0
          %v506 = vpop.f32.mrf.mxu0
          %v507 = vadd.f32 %v363, %v506
          %v508 = vpop.f32.mrf.mxu0
          %509 = vmatprep.mubr.bf16.mxu0 0
          %510 = vmatmul.mubr.bf16.gmra.mxu0 %v399
          %v511 = vpop.f32.mrf.mxu0
          %v512 = vadd.f32 %v363, %v511
          %v513 = vpop.f32.mrf.mxu0
          %v514 = vpop.f32.mrf.mxu0
          %v515 = vadd.f32 %v363, %v514
          %v516 = vpop.f32.mrf.mxu0
          %517 = vmatprep.mubr.bf16.mxu0 0
          %518 = vmatmul.mubr.bf16.gmra.mxu0 %v400
          %v519 = vpop.f32.mrf.mxu0
          %v520 = vadd.f32 %v363, %v519
          %v521 = vpop.f32.mrf.mxu0
          %v522 = vpop.f32.mrf.mxu0
          %v523 = vadd.f32 %v363, %v522
          %v524 = vpop.f32.mrf.mxu0
          %525 = vmatprep.mubr.bf16.mxu0 0
          %526 = vmatmul.mubr.bf16.gmra.mxu0 %v401
          %v527 = vpop.f32.mrf.mxu0
          %v528 = vadd.f32 %v363, %v527
          %v529 = vpop.f32.mrf.mxu0
          %v530 = vpop.f32.mrf.mxu0
          %v531 = vadd.f32 %v363, %v530
          %v532 = vpop.f32.mrf.mxu0
          %533 = vmatprep.mubr.bf16.mxu0 0
          %534 = vmatmul.mubr.bf16.gmra.mxu0 %v402
          %v535 = vpop.f32.mrf.mxu0
          %v536 = vadd.f32 %v363, %v535
          %v537 = vpop.f32.mrf.mxu0
          %v538 = vpop.f32.mrf.mxu0
          %v539 = vadd.f32 %v363, %v538
          %v540 = vpop.f32.mrf.mxu0
          %541 = vmatprep.mubr.bf16.mxu0 0
          %542 = vmatmul.mubr.bf16.gmra.mxu0 %v403
          %v543 = vpop.f32.mrf.mxu0
          %v544 = vadd.f32 %v363, %v543
          %v545 = vpop.f32.mrf.mxu0
          %v546 = vpop.f32.mrf.mxu0
          %v547 = vadd.f32 %v363, %v546
          %v548 = vpop.f32.mrf.mxu0
          %549 = vmatprep.mubr.bf16.mxu0 0
          %550 = vmatmul.mubr.bf16.gmra.mxu0 %v404
          %v551 = vpop.f32.mrf.mxu0
          %v552 = vadd.f32 %v363, %v551
          %v553 = vpop.f32.mrf.mxu0
          %v554 = vpop.f32.mrf.mxu0
          %v555 = vadd.f32 %v363, %v554
          %v556 = vpop.f32.mrf.mxu0
          %557 = vdwg.mxu0
          %v558 = vmax.f32 %v496, 0.0
          %v559 = vmax.f32 %v499, 0.0
          %v560 = vmax.f32 %v504, 0.0
          %v561 = vmax.f32 %v507, 0.0
          %v562 = vmax.f32 %v512, 0.0
          %v563 = vmax.f32 %v515, 0.0
          %v564 = vmax.f32 %v520, 0.0
          %v565 = vmax.f32 %v523, 0.0
          %v566 = vmax.f32 %v528, 0.0
          %v567 = vmax.f32 %v531, 0.0
          %v568 = vmax.f32 %v536, 0.0
          %v569 = vmax.f32 %v539, 0.0
          %v570 = vmax.f32 %v544, 0.0
          %v571 = vmax.f32 %v547, 0.0
          %v572 = vmax.f32 %v552, 0.0
          %v573 = vmax.f32 %v555, 0.0
          %v574 = vpack.c.bf16 %v559, %v558
          %v575 = vpack.c.bf16 %v561, %v560
          %v576 = vpack.c.bf16 %v563, %v562
          %v577 = vpack.c.bf16 %v565, %v564
          %v578 = vpack.c.bf16 %v567, %v566
          %v579 = vpack.c.bf16 %v569, %v568
          %v580 = vpack.c.bf16 %v571, %v570
          %v581 = vpack.c.bf16 %v573, %v572
          %v583 = vshrl.u32 %v574, 16
          %v585 = vrot.slane %v583, 7
          %v586 = vshll.u32 %v574, 16
          %v588 = vor.u32 %v585, %v586
          %v590 = vshrl.u32 %v575, 16
          %v592 = vrot.slane %v590, 7
          %v593 = vshll.u32 %v575, 16
          %v595 = vor.u32 %v592, %v593
          %v597 = vshrl.u32 %v576, 16
          %v599 = vrot.slane %v597, 7
          %v600 = vshll.u32 %v576, 16
          %v602 = vor.u32 %v599, %v600
          %v604 = vshrl.u32 %v577, 16
          %v606 = vrot.slane %v604, 7
          %v607 = vshll.u32 %v577, 16
          %v609 = vor.u32 %v606, %v607
          %v611 = vshrl.u32 %v578, 16
          %v613 = vrot.slane %v611, 7
          %v614 = vshll.u32 %v578, 16
          %v616 = vor.u32 %v613, %v614
          %v618 = vshrl.u32 %v579, 16
          %v620 = vrot.slane %v618, 7
          %v621 = vshll.u32 %v579, 16
          %v623 = vor.u32 %v620, %v621
          %v625 = vshrl.u32 %v580, 16
          %v627 = vrot.slane %v625, 7
          %v628 = vshll.u32 %v580, 16
          %v630 = vor.u32 %v627, %v628
          %v632 = vshrl.u32 %v581, 16
          %v634 = vrot.slane %v632, 7
          %v635 = vshll.u32 %v581, 16
          %v637 = vor.u32 %v634, %v635
          %vm646 = vcmask 1040384
          %vm647 = vsmask.f32 256
          %vm648 = vmand %vm646, %vm647
          %v649 = vsel %vm648, 0, %v588
          %v650 = vsel %vm648, 0, %v595
          %v651 = vsel %vm648, 0, %v602
          %v652 = vsel %vm648, 0, %v609
          %v653 = vsel %vm648, 0, %v616
          %v654 = vsel %vm648, 0, %v623
          %v655 = vsel %vm648, 0, %v630
          %v656 = vsel %vm648, 0, %v637
          %v657 = vrot.slane %v586, 1
          %v658 = vor.u32 %v583, %v657
          %v659 = vrot.slane %v593, 1
          %v660 = vor.u32 %v590, %v659
          %v661 = vrot.slane %v600, 1
          %v662 = vor.u32 %v597, %v661
          %v663 = vrot.slane %v607, 1
          %v664 = vor.u32 %v604, %v663
          %v665 = vrot.slane %v614, 1
          %v666 = vor.u32 %v611, %v665
          %v667 = vrot.slane %v621, 1
          %v668 = vor.u32 %v618, %v667
          %v669 = vrot.slane %v628, 1
          %v670 = vor.u32 %v625, %v669
          %v671 = vrot.slane %v635, 1
          %v672 = vor.u32 %v632, %v671
          %vm681 = vcmask 1047552
          %vm682 = vsmask.f32 7424
          %vm683 = vmand %vm681, %vm682
          %v684 = vsel %vm683, %v658, 0
          %v685 = vsel %vm683, %v660, 0
          %v686 = vsel %vm683, %v662, 0
          %v687 = vsel %vm683, %v664, 0
          %v688 = vsel %vm683, %v666, 0
          %v689 = vsel %vm683, %v668, 0
          %v690 = vsel %vm683, %v670, 0
          %v691 = vsel %vm683, %v672, 0
          %s692 = sadd.s32 %s322, 1
          %v701 = vunpack.c.l.b16 %v649
          %v702 = vunpack.c.h.b16 %v649
          %v703 = vunpack.c.l.b16 %v650
          %v704 = vunpack.c.h.b16 %v650
          %v705 = vunpack.c.l.b16 %v651
          %v706 = vunpack.c.h.b16 %v651
          %v707 = vunpack.c.l.b16 %v652
          %v708 = vunpack.c.h.b16 %v652
          %v709 = vunpack.c.l.b16 %v653
          %v710 = vunpack.c.h.b16 %v653
          %v711 = vunpack.c.l.b16 %v654
          %v712 = vunpack.c.h.b16 %v654
          %v713 = vunpack.c.l.b16 %v655
          %v714 = vunpack.c.h.b16 %v655
          %v715 = vunpack.c.l.b16 %v656
          %v716 = vunpack.c.h.b16 %v656
          %v717 = vpack.c.b16 %v701, %v701
          %v718 = vpack.c.b16 %v702, %v702
          %v719 = vpack.c.b16 %v703, %v703
          %v720 = vpack.c.b16 %v704, %v704
          %v721 = vpack.c.b16 %v705, %v705
          %v722 = vpack.c.b16 %v706, %v706
          %v723 = vpack.c.b16 %v707, %v707
          %v724 = vpack.c.b16 %v708, %v708
          %v725 = vpack.c.b16 %v709, %v709
          %v726 = vpack.c.b16 %v710, %v710
          %v727 = vpack.c.b16 %v711, %v711
          %v728 = vpack.c.b16 %v712, %v712
          %v729 = vpack.c.b16 %v713, %v713
          %v730 = vpack.c.b16 %v714, %v714
          %v731 = vpack.c.b16 %v715, %v715
          %v732 = vpack.c.b16 %v716, %v716
          %s749 = smul.u32 %s692, 2
          %s750 = smul.addr %s749, 4
          %s751 = scalar_lea.vmem [#allocation2], %s750
          %752 = vst [vmem:[%s751] sm:$0xf] %v717
          %753 = vst [vmem:[%s751 + $0x4] sm:$0xf] %v718
          %754 = vst [vmem:[%s751 + $0x8] sm:$0xf] %v719
          %755 = vst [vmem:[%s751 + $0xc] sm:$0xf] %v720
          %756 = vst [vmem:[%s751 + $0x10] sm:$0xf] %v721
          %757 = vst [vmem:[%s751 + $0x14] sm:$0xf] %v722
          %758 = vst [vmem:[%s751 + $0x18] sm:$0xf] %v723
          %759 = vst [vmem:[%s751 + $0x1c] sm:$0xf] %v724
          %760 = vst [vmem:[%s751 + $0x20] sm:$0xf] %v725
          %761 = vst [vmem:[%s751 + $0x24] sm:$0xf] %v726
          %762 = vst [vmem:[%s751 + $0x28] sm:$0xf] %v727
          %763 = vst [vmem:[%s751 + $0x2c] sm:$0xf] %v728
          %764 = vst [vmem:[%s751 + $0x30] sm:$0xf] %v729
          %765 = vst [vmem:[%s751 + $0x34] sm:$0xf] %v730
          %766 = vst [vmem:[%s751 + $0x38] sm:$0xf] %v731
          %767 = vst [vmem:[%s751 + $0x3c] sm:$0xf] %v732
          %v776 = vunpack.c.l.b16 %v574
          %v777 = vunpack.c.h.b16 %v574
          %v778 = vunpack.c.l.b16 %v575
          %v779 = vunpack.c.h.b16 %v575
          %v780 = vunpack.c.l.b16 %v576
          %v781 = vunpack.c.h.b16 %v576
          %v782 = vunpack.c.l.b16 %v577
          %v783 = vunpack.c.h.b16 %v577
          %v784 = vunpack.c.l.b16 %v578
          %v785 = vunpack.c.h.b16 %v578
          %v786 = vunpack.c.l.b16 %v579
          %v787 = vunpack.c.h.b16 %v579
          %v788 = vunpack.c.l.b16 %v580
          %v789 = vunpack.c.h.b16 %v580
          %v790 = vunpack.c.l.b16 %v581
          %v791 = vunpack.c.h.b16 %v581
          %v792 = vpack.c.b16 %v776, %v776
          %v793 = vpack.c.b16 %v777, %v777
          %v794 = vpack.c.b16 %v778, %v778
          %v795 = vpack.c.b16 %v779, %v779
          %v796 = vpack.c.b16 %v780, %v780
          %v797 = vpack.c.b16 %v781, %v781
          %v798 = vpack.c.b16 %v782, %v782
          %v799 = vpack.c.b16 %v783, %v783
          %v800 = vpack.c.b16 %v784, %v784
          %v801 = vpack.c.b16 %v785, %v785
          %v802 = vpack.c.b16 %v786, %v786
          %v803 = vpack.c.b16 %v787, %v787
          %v804 = vpack.c.b16 %v788, %v788
          %v805 = vpack.c.b16 %v789, %v789
          %v806 = vpack.c.b16 %v790, %v790
          %v807 = vpack.c.b16 %v791, %v791
          %s824 = sadd.s32 %s749, 36
          %s825 = smul.addr %s824, 4
          %s826 = scalar_lea.vmem [#allocation2], %s825
          %827 = vst [vmem:[%s826] sm:$0xf] %v792
          %828 = vst [vmem:[%s826 + $0x4] sm:$0xf] %v793
          %829 = vst [vmem:[%s826 + $0x8] sm:$0xf] %v794
          %830 = vst [vmem:[%s826 + $0xc] sm:$0xf] %v795
          %831 = vst [vmem:[%s826 + $0x10] sm:$0xf] %v796
          %832 = vst [vmem:[%s826 + $0x14] sm:$0xf] %v797
          %833 = vst [vmem:[%s826 + $0x18] sm:$0xf] %v798
          %834 = vst [vmem:[%s826 + $0x1c] sm:$0xf] %v799
          %835 = vst [vmem:[%s826 + $0x20] sm:$0xf] %v800
          %836 = vst [vmem:[%s826 + $0x24] sm:$0xf] %v801
          %837 = vst [vmem:[%s826 + $0x28] sm:$0xf] %v802
          %838 = vst [vmem:[%s826 + $0x2c] sm:$0xf] %v803
          %839 = vst [vmem:[%s826 + $0x30] sm:$0xf] %v804
          %840 = vst [vmem:[%s826 + $0x34] sm:$0xf] %v805
          %841 = vst [vmem:[%s826 + $0x38] sm:$0xf] %v806
          %842 = vst [vmem:[%s826 + $0x3c] sm:$0xf] %v807
          %v851 = vunpack.c.l.b16 %v684
          %v852 = vunpack.c.h.b16 %v684
          %v853 = vunpack.c.l.b16 %v685
          %v854 = vunpack.c.h.b16 %v685
          %v855 = vunpack.c.l.b16 %v686
          %v856 = vunpack.c.h.b16 %v686
          %v857 = vunpack.c.l.b16 %v687
          %v858 = vunpack.c.h.b16 %v687
          %v859 = vunpack.c.l.b16 %v688
          %v860 = vunpack.c.h.b16 %v688
          %v861 = vunpack.c.l.b16 %v689
          %v862 = vunpack.c.h.b16 %v689
          %v863 = vunpack.c.l.b16 %v690
          %v864 = vunpack.c.h.b16 %v690
          %v865 = vunpack.c.l.b16 %v691
          %v866 = vunpack.c.h.b16 %v691
          %v867 = vpack.c.b16 %v851, %v851
          %v868 = vpack.c.b16 %v852, %v852
          %v869 = vpack.c.b16 %v853, %v853
          %v870 = vpack.c.b16 %v854, %v854
          %v871 = vpack.c.b16 %v855, %v855
          %v872 = vpack.c.b16 %v856, %v856
          %v873 = vpack.c.b16 %v857, %v857
          %v874 = vpack.c.b16 %v858, %v858
          %v875 = vpack.c.b16 %v859, %v859
          %v876 = vpack.c.b16 %v860, %v860
          %v877 = vpack.c.b16 %v861, %v861
          %v878 = vpack.c.b16 %v862, %v862
          %v879 = vpack.c.b16 %v863, %v863
          %v880 = vpack.c.b16 %v864, %v864
          %v881 = vpack.c.b16 %v865, %v865
          %v882 = vpack.c.b16 %v866, %v866
          %s899 = sadd.s32 %s749, 72
          %s900 = smul.addr %s899, 4
          %s901 = scalar_lea.vmem [#allocation2], %s900
          %902 = vst [vmem:[%s901] sm:$0xf] %v867
          %903 = vst [vmem:[%s901 + $0x4] sm:$0xf] %v868
          %904 = vst [vmem:[%s901 + $0x8] sm:$0xf] %v869
          %905 = vst [vmem:[%s901 + $0xc] sm:$0xf] %v870
          %906 = vst [vmem:[%s901 + $0x10] sm:$0xf] %v871
          %907 = vst [vmem:[%s901 + $0x14] sm:$0xf] %v872
          %908 = vst [vmem:[%s901 + $0x18] sm:$0xf] %v873
          %909 = vst [vmem:[%s901 + $0x1c] sm:$0xf] %v874
          %910 = vst [vmem:[%s901 + $0x20] sm:$0xf] %v875
          %911 = vst [vmem:[%s901 + $0x24] sm:$0xf] %v876
          %912 = vst [vmem:[%s901 + $0x28] sm:$0xf] %v877
          %913 = vst [vmem:[%s901 + $0x2c] sm:$0xf] %v878
          %914 = vst [vmem:[%s901 + $0x30] sm:$0xf] %v879
          %915 = vst [vmem:[%s901 + $0x34] sm:$0xf] %v880
          %916 = vst [vmem:[%s901 + $0x38] sm:$0xf] %v881
          %917 = vst [vmem:[%s901 + $0x3c] sm:$0xf] %v882
        $region53: #{down_forward.1} parent=47 // loop_footer
          %s320 = sadd.s32 1, %s316
        $region54: #{down_forward.1} parent=47 // loop_footer_branch
          %315 = sbr.rel target = $region50
        $region55: #{down_forward.1} parent=47 // loop_exit
          _
        loop: start=0, step=1, limit=2
        $region56: #{down_forward.1} parent=47 // loop_pre_header
          _
        $region57: #{down_forward.1} parent=47 // loop_header
          %s919 = sphi 0, %s923
          %p920 = scmp.ge.s32.totalorder %s919, 2
        $region58: #{down_forward.1} parent=47 // loop_header_branch
          %922 = sbr.rel (%p920) target = $region62
        $region59: #{down_forward.1} parent=47 // loop_body
          %s924 = smul.u32 %s919, 8
          %s925 = smul.u32 %s924, 2
          %s926 = smul.addr %s925, 4
          %s927 = scalar_lea.vmem [#allocation2], %s926
          %v928 = vld [vmem:[%s927] sm:$0xf]
          %v929 = vld [vmem:[%s927 + $0x4] sm:$0xf]
          %v930 = vld [vmem:[%s927 + $0x8] sm:$0xf]
          %v931 = vld [vmem:[%s927 + $0xc] sm:$0xf]
          %v932 = vld [vmem:[%s927 + $0x10] sm:$0xf]
          %v933 = vld [vmem:[%s927 + $0x14] sm:$0xf]
          %v934 = vld [vmem:[%s927 + $0x18] sm:$0xf]
          %v935 = vld [vmem:[%s927 + $0x1c] sm:$0xf]
          %v936 = vld [vmem:[%s927 + $0x20] sm:$0xf]
          %v937 = vld [vmem:[%s927 + $0x24] sm:$0xf]
          %v938 = vld [vmem:[%s927 + $0x28] sm:$0xf]
          %v939 = vld [vmem:[%s927 + $0x2c] sm:$0xf]
          %v940 = vld [vmem:[%s927 + $0x30] sm:$0xf]
          %v941 = vld [vmem:[%s927 + $0x34] sm:$0xf]
          %v942 = vld [vmem:[%s927 + $0x38] sm:$0xf]
          %v943 = vld [vmem:[%s927 + $0x3c] sm:$0xf]
          %s944 = sadd.s32 %s925, 36
          %s945 = smul.addr %s944, 4
          %s946 = scalar_lea.vmem [#allocation2], %s945
          %v947 = vld [vmem:[%s946] sm:$0xf]
          %v948 = vld [vmem:[%s946 + $0x4] sm:$0xf]
          %v949 = vld [vmem:[%s946 + $0x8] sm:$0xf]
          %v950 = vld [vmem:[%s946 + $0xc] sm:$0xf]
          %v951 = vld [vmem:[%s946 + $0x10] sm:$0xf]
          %v952 = vld [vmem:[%s946 + $0x14] sm:$0xf]
          %v953 = vld [vmem:[%s946 + $0x18] sm:$0xf]
          %v954 = vld [vmem:[%s946 + $0x1c] sm:$0xf]
          %v955 = vld [vmem:[%s946 + $0x20] sm:$0xf]
          %v956 = vld [vmem:[%s946 + $0x24] sm:$0xf]
          %v957 = vld [vmem:[%s946 + $0x28] sm:$0xf]
          %v958 = vld [vmem:[%s946 + $0x2c] sm:$0xf]
          %v959 = vld [vmem:[%s946 + $0x30] sm:$0xf]
          %v960 = vld [vmem:[%s946 + $0x34] sm:$0xf]
          %v961 = vld [vmem:[%s946 + $0x38] sm:$0xf]
          %v962 = vld [vmem:[%s946 + $0x3c] sm:$0xf]
          %s963 = sadd.s32 %s925, 72
          %s964 = smul.addr %s963, 4
          %s965 = scalar_lea.vmem [#allocation2], %s964
          %v966 = vld [vmem:[%s965] sm:$0xf]
          %v967 = vld [vmem:[%s965 + $0x4] sm:$0xf]
          %v968 = vld [vmem:[%s965 + $0x8] sm:$0xf]
          %v969 = vld [vmem:[%s965 + $0xc] sm:$0xf]
          %v970 = vld [vmem:[%s965 + $0x10] sm:$0xf]
          %v971 = vld [vmem:[%s965 + $0x14] sm:$0xf]
          %v972 = vld [vmem:[%s965 + $0x18] sm:$0xf]
          %v973 = vld [vmem:[%s965 + $0x1c] sm:$0xf]
          %v974 = vld [vmem:[%s965 + $0x20] sm:$0xf]
          %v975 = vld [vmem:[%s965 + $0x24] sm:$0xf]
          %v976 = vld [vmem:[%s965 + $0x28] sm:$0xf]
          %v977 = vld [vmem:[%s965 + $0x2c] sm:$0xf]
          %v978 = vld [vmem:[%s965 + $0x30] sm:$0xf]
          %v979 = vld [vmem:[%s965 + $0x34] sm:$0xf]
          %v980 = vld [vmem:[%s965 + $0x38] sm:$0xf]
          %v981 = vld [vmem:[%s965 + $0x3c] sm:$0xf]
          %s982 = sadd.s32 %s924, 1
          %s983 = smul.u32 %s982, 2
          %s984 = smul.addr %s983, 4
          %s985 = scalar_lea.vmem [#allocation2], %s984
          %v986 = vld [vmem:[%s985] sm:$0xf]
          %v987 = vld [vmem:[%s985 + $0x4] sm:$0xf]
          %v988 = vld [vmem:[%s985 + $0x8] sm:$0xf]
          %v989 = vld [vmem:[%s985 + $0xc] sm:$0xf]
          %v990 = vld [vmem:[%s985 + $0x10] sm:$0xf]
          %v991 = vld [vmem:[%s985 + $0x14] sm:$0xf]
          %v992 = vld [vmem:[%s985 + $0x18] sm:$0xf]
          %v993 = vld [vmem:[%s985 + $0x1c] sm:$0xf]
          %v994 = vld [vmem:[%s985 + $0x20] sm:$0xf]
          %v995 = vld [vmem:[%s985 + $0x24] sm:$0xf]
          %v996 = vld [vmem:[%s985 + $0x28] sm:$0xf]
          %v997 = vld [vmem:[%s985 + $0x2c] sm:$0xf]
          %v998 = vld [vmem:[%s985 + $0x30] sm:$0xf]
          %v999 = vld [vmem:[%s985 + $0x34] sm:$0xf]
          %v1000 = vld [vmem:[%s985 + $0x38] sm:$0xf]
          %v1001 = vld [vmem:[%s985 + $0x3c] sm:$0xf]
          %s1002 = sadd.s32 %s983, 36
          %s1003 = smul.addr %s1002, 4
          %s1004 = scalar_lea.vmem [#allocation2], %s1003
          %v1005 = vld [vmem:[%s1004] sm:$0xf]
          %v1006 = vld [vmem:[%s1004 + $0x4] sm:$0xf]
          %v1007 = vld [vmem:[%s1004 + $0x8] sm:$0xf]
          %v1008 = vld [vmem:[%s1004 + $0xc] sm:$0xf]
          %v1009 = vld [vmem:[%s1004 + $0x10] sm:$0xf]
          %v1010 = vld [vmem:[%s1004 + $0x14] sm:$0xf]
          %v1011 = vld [vmem:[%s1004 + $0x18] sm:$0xf]
          %v1012 = vld [vmem:[%s1004 + $0x1c] sm:$0xf]
          %v1013 = vld [vmem:[%s1004 + $0x20] sm:$0xf]
          %v1014 = vld [vmem:[%s1004 + $0x24] sm:$0xf]
          %v1015 = vld [vmem:[%s1004 + $0x28] sm:$0xf]
          %v1016 = vld [vmem:[%s1004 + $0x2c] sm:$0xf]
          %v1017 = vld [vmem:[%s1004 + $0x30] sm:$0xf]
          %v1018 = vld [vmem:[%s1004 + $0x34] sm:$0xf]
          %v1019 = vld [vmem:[%s1004 + $0x38] sm:$0xf]
          %v1020 = vld [vmem:[%s1004 + $0x3c] sm:$0xf]
          %s1021 = sadd.s32 %s983, 72
          %s1022 = smul.addr %s1021, 4
          %s1023 = scalar_lea.vmem [#allocation2], %s1022
          %v1024 = vld [vmem:[%s1023] sm:$0xf]
          %v1025 = vld [vmem:[%s1023 + $0x4] sm:$0xf]
          %v1026 = vld [vmem:[%s1023 + $0x8] sm:$0xf]
          %v1027 = vld [vmem:[%s1023 + $0xc] sm:$0xf]
          %v1028 = vld [vmem:[%s1023 + $0x10] sm:$0xf]
          %v1029 = vld [vmem:[%s1023 + $0x14] sm:$0xf]
          %v1030 = vld [vmem:[%s1023 + $0x18] sm:$0xf]
          %v1031 = vld [vmem:[%s1023 + $0x1c] sm:$0xf]
          %v1032 = vld [vmem:[%s1023 + $0x20] sm:$0xf]
          %v1033 = vld [vmem:[%s1023 + $0x24] sm:$0xf]
          %v1034 = vld [vmem:[%s1023 + $0x28] sm:$0xf]
          %v1035 = vld [vmem:[%s1023 + $0x2c] sm:$0xf]
          %v1036 = vld [vmem:[%s1023 + $0x30] sm:$0xf]
          %v1037 = vld [vmem:[%s1023 + $0x34] sm:$0xf]
          %v1038 = vld [vmem:[%s1023 + $0x38] sm:$0xf]
          %v1039 = vld [vmem:[%s1023 + $0x3c] sm:$0xf]
          %s1040 = sadd.s32 %s924, 2
          %s1041 = smul.u32 %s1040, 2
          %s1042 = smul.addr %s1041, 4
          %s1043 = scalar_lea.vmem [#allocation2], %s1042
          %v1044 = vld [vmem:[%s1043] sm:$0xf]
          %v1045 = vld [vmem:[%s1043 + $0x4] sm:$0xf]
          %v1046 = vld [vmem:[%s1043 + $0x8] sm:$0xf]
          %v1047 = vld [vmem:[%s1043 + $0xc] sm:$0xf]
          %v1048 = vld [vmem:[%s1043 + $0x10] sm:$0xf]
          %v1049 = vld [vmem:[%s1043 + $0x14] sm:$0xf]
          %v1050 = vld [vmem:[%s1043 + $0x18] sm:$0xf]
          %v1051 = vld [vmem:[%s1043 + $0x1c] sm:$0xf]
          %v1052 = vld [vmem:[%s1043 + $0x20] sm:$0xf]
          %v1053 = vld [vmem:[%s1043 + $0x24] sm:$0xf]
          %v1054 = vld [vmem:[%s1043 + $0x28] sm:$0xf]
          %v1055 = vld [vmem:[%s1043 + $0x2c] sm:$0xf]
          %v1056 = vld [vmem:[%s1043 + $0x30] sm:$0xf]
          %v1057 = vld [vmem:[%s1043 + $0x34] sm:$0xf]
          %v1058 = vld [vmem:[%s1043 + $0x38] sm:$0xf]
          %v1059 = vld [vmem:[%s1043 + $0x3c] sm:$0xf]
          %s1060 = sadd.s32 %s1041, 36
          %s1061 = smul.addr %s1060, 4
          %s1062 = scalar_lea.vmem [#allocation2], %s1061
          %v1063 = vld [vmem:[%s1062] sm:$0xf]
          %v1064 = vld [vmem:[%s1062 + $0x4] sm:$0xf]
          %v1065 = vld [vmem:[%s1062 + $0x8] sm:$0xf]
          %v1066 = vld [vmem:[%s1062 + $0xc] sm:$0xf]
          %v1067 = vld [vmem:[%s1062 + $0x10] sm:$0xf]
          %v1068 = vld [vmem:[%s1062 + $0x14] sm:$0xf]
          %v1069 = vld [vmem:[%s1062 + $0x18] sm:$0xf]
          %v1070 = vld [vmem:[%s1062 + $0x1c] sm:$0xf]
          %v1071 = vld [vmem:[%s1062 + $0x20] sm:$0xf]
          %v1072 = vld [vmem:[%s1062 + $0x24] sm:$0xf]
          %v1073 = vld [vmem:[%s1062 + $0x28] sm:$0xf]
          %v1074 = vld [vmem:[%s1062 + $0x2c] sm:$0xf]
          %v1075 = vld [vmem:[%s1062 + $0x30] sm:$0xf]
          %v1076 = vld [vmem:[%s1062 + $0x34] sm:$0xf]
          %v1077 = vld [vmem:[%s1062 + $0x38] sm:$0xf]
          %v1078 = vld [vmem:[%s1062 + $0x3c] sm:$0xf]
          %s1079 = sadd.s32 %s1041, 72
          %s1080 = smul.addr %s1079, 4
          %s1081 = scalar_lea.vmem [#allocation2], %s1080
          %v1082 = vld [vmem:[%s1081] sm:$0xf]
          %v1083 = vld [vmem:[%s1081 + $0x4] sm:$0xf]
          %v1084 = vld [vmem:[%s1081 + $0x8] sm:$0xf]
          %v1085 = vld [vmem:[%s1081 + $0xc] sm:$0xf]
          %v1086 = vld [vmem:[%s1081 + $0x10] sm:$0xf]
          %v1087 = vld [vmem:[%s1081 + $0x14] sm:$0xf]
          %v1088 = vld [vmem:[%s1081 + $0x18] sm:$0xf]
          %v1089 = vld [vmem:[%s1081 + $0x1c] sm:$0xf]
          %v1090 = vld [vmem:[%s1081 + $0x20] sm:$0xf]
          %v1091 = vld [vmem:[%s1081 + $0x24] sm:$0xf]
          %v1092 = vld [vmem:[%s1081 + $0x28] sm:$0xf]
          %v1093 = vld [vmem:[%s1081 + $0x2c] sm:$0xf]
          %v1094 = vld [vmem:[%s1081 + $0x30] sm:$0xf]
          %v1095 = vld [vmem:[%s1081 + $0x34] sm:$0xf]
          %v1096 = vld [vmem:[%s1081 + $0x38] sm:$0xf]
          %v1097 = vld [vmem:[%s1081 + $0x3c] sm:$0xf]
          %v1114 = vunpack.c.l.b16 %v928
          %v1115 = vunpack.c.l.b16 %v929
          %v1116 = vunpack.c.l.b16 %v930
          %v1117 = vunpack.c.l.b16 %v931
          %v1118 = vunpack.c.l.b16 %v932
          %v1119 = vunpack.c.l.b16 %v933
          %v1120 = vunpack.c.l.b16 %v934
          %v1121 = vunpack.c.l.b16 %v935
          %v1122 = vunpack.c.l.b16 %v936
          %v1123 = vunpack.c.l.b16 %v937
          %v1124 = vunpack.c.l.b16 %v938
          %v1125 = vunpack.c.l.b16 %v939
          %v1126 = vunpack.c.l.b16 %v940
          %v1127 = vunpack.c.l.b16 %v941
          %v1128 = vunpack.c.l.b16 %v942
          %v1129 = vunpack.c.l.b16 %v943
          %v1130 = vpack.c.b16 %v1115, %v1114
          %v1131 = vpack.c.b16 %v1117, %v1116
          %v1132 = vpack.c.b16 %v1119, %v1118
          %v1133 = vpack.c.b16 %v1121, %v1120
          %v1134 = vpack.c.b16 %v1123, %v1122
          %v1135 = vpack.c.b16 %v1125, %v1124
          %v1136 = vpack.c.b16 %v1127, %v1126
          %v1137 = vpack.c.b16 %v1129, %v1128
          %v1162 = vunpack.c.l.b16 %v947
          %v1163 = vunpack.c.l.b16 %v948
          %v1164 = vunpack.c.l.b16 %v949
          %v1165 = vunpack.c.l.b16 %v950
          %v1166 = vunpack.c.l.b16 %v951
          %v1167 = vunpack.c.l.b16 %v952
          %v1168 = vunpack.c.l.b16 %v953
          %v1169 = vunpack.c.l.b16 %v954
          %v1170 = vunpack.c.l.b16 %v955
          %v1171 = vunpack.c.l.b16 %v956
          %v1172 = vunpack.c.l.b16 %v957
          %v1173 = vunpack.c.l.b16 %v958
          %v1174 = vunpack.c.l.b16 %v959
          %v1175 = vunpack.c.l.b16 %v960
          %v1176 = vunpack.c.l.b16 %v961
          %v1177 = vunpack.c.l.b16 %v962
          %v1178 = vpack.c.b16 %v1163, %v1162
          %v1179 = vpack.c.b16 %v1165, %v1164
          %v1180 = vpack.c.b16 %v1167, %v1166
          %v1181 = vpack.c.b16 %v1169, %v1168
          %v1182 = vpack.c.b16 %v1171, %v1170
          %v1183 = vpack.c.b16 %v1173, %v1172
          %v1184 = vpack.c.b16 %v1175, %v1174
          %v1185 = vpack.c.b16 %v1177, %v1176
          %v1210 = vunpack.c.l.b16 %v966
          %v1211 = vunpack.c.l.b16 %v967
          %v1212 = vunpack.c.l.b16 %v968
          %v1213 = vunpack.c.l.b16 %v969
          %v1214 = vunpack.c.l.b16 %v970
          %v1215 = vunpack.c.l.b16 %v971
          %v1216 = vunpack.c.l.b16 %v972
          %v1217 = vunpack.c.l.b16 %v973
          %v1218 = vunpack.c.l.b16 %v974
          %v1219 = vunpack.c.l.b16 %v975
          %v1220 = vunpack.c.l.b16 %v976
          %v1221 = vunpack.c.l.b16 %v977
          %v1222 = vunpack.c.l.b16 %v978
          %v1223 = vunpack.c.l.b16 %v979
          %v1224 = vunpack.c.l.b16 %v980
          %v1225 = vunpack.c.l.b16 %v981
          %v1226 = vpack.c.b16 %v1211, %v1210
          %v1227 = vpack.c.b16 %v1213, %v1212
          %v1228 = vpack.c.b16 %v1215, %v1214
          %v1229 = vpack.c.b16 %v1217, %v1216
          %v1230 = vpack.c.b16 %v1219, %v1218
          %v1231 = vpack.c.b16 %v1221, %v1220
          %v1232 = vpack.c.b16 %v1223, %v1222
          %v1233 = vpack.c.b16 %v1225, %v1224
          %v1258 = vunpack.c.l.b16 %v986
          %v1259 = vunpack.c.l.b16 %v987
          %v1260 = vunpack.c.l.b16 %v988
          %v1261 = vunpack.c.l.b16 %v989
          %v1262 = vunpack.c.l.b16 %v990
          %v1263 = vunpack.c.l.b16 %v991
          %v1264 = vunpack.c.l.b16 %v992
          %v1265 = vunpack.c.l.b16 %v993
          %v1266 = vunpack.c.l.b16 %v994
          %v1267 = vunpack.c.l.b16 %v995
          %v1268 = vunpack.c.l.b16 %v996
          %v1269 = vunpack.c.l.b16 %v997
          %v1270 = vunpack.c.l.b16 %v998
          %v1271 = vunpack.c.l.b16 %v999
          %v1272 = vunpack.c.l.b16 %v1000
          %v1273 = vunpack.c.l.b16 %v1001
          %v1274 = vpack.c.b16 %v1259, %v1258
          %v1275 = vpack.c.b16 %v1261, %v1260
          %v1276 = vpack.c.b16 %v1263, %v1262
          %v1277 = vpack.c.b16 %v1265, %v1264
          %v1278 = vpack.c.b16 %v1267, %v1266
          %v1279 = vpack.c.b16 %v1269, %v1268
          %v1280 = vpack.c.b16 %v1271, %v1270
          %v1281 = vpack.c.b16 %v1273, %v1272
          %v1306 = vunpack.c.l.b16 %v1005
          %v1307 = vunpack.c.l.b16 %v1006
          %v1308 = vunpack.c.l.b16 %v1007
          %v1309 = vunpack.c.l.b16 %v1008
          %v1310 = vunpack.c.l.b16 %v1009
          %v1311 = vunpack.c.l.b16 %v1010
          %v1312 = vunpack.c.l.b16 %v1011
          %v1313 = vunpack.c.l.b16 %v1012
          %v1314 = vunpack.c.l.b16 %v1013
          %v1315 = vunpack.c.l.b16 %v1014
          %v1316 = vunpack.c.l.b16 %v1015
          %v1317 = vunpack.c.l.b16 %v1016
          %v1318 = vunpack.c.l.b16 %v1017
          %v1319 = vunpack.c.l.b16 %v1018
          %v1320 = vunpack.c.l.b16 %v1019
          %v1321 = vunpack.c.l.b16 %v1020
          %v1322 = vpack.c.b16 %v1307, %v1306
          %v1323 = vpack.c.b16 %v1309, %v1308
          %v1324 = vpack.c.b16 %v1311, %v1310
          %v1325 = vpack.c.b16 %v1313, %v1312
          %v1326 = vpack.c.b16 %v1315, %v1314
          %v1327 = vpack.c.b16 %v1317, %v1316
          %v1328 = vpack.c.b16 %v1319, %v1318
          %v1329 = vpack.c.b16 %v1321, %v1320
          %v1354 = vunpack.c.l.b16 %v1024
          %v1355 = vunpack.c.l.b16 %v1025
          %v1356 = vunpack.c.l.b16 %v1026
          %v1357 = vunpack.c.l.b16 %v1027
          %v1358 = vunpack.c.l.b16 %v1028
          %v1359 = vunpack.c.l.b16 %v1029
          %v1360 = vunpack.c.l.b16 %v1030
          %v1361 = vunpack.c.l.b16 %v1031
          %v1362 = vunpack.c.l.b16 %v1032
          %v1363 = vunpack.c.l.b16 %v1033
          %v1364 = vunpack.c.l.b16 %v1034
          %v1365 = vunpack.c.l.b16 %v1035
          %v1366 = vunpack.c.l.b16 %v1036
          %v1367 = vunpack.c.l.b16 %v1037
          %v1368 = vunpack.c.l.b16 %v1038
          %v1369 = vunpack.c.l.b16 %v1039
          %v1370 = vpack.c.b16 %v1355, %v1354
          %v1371 = vpack.c.b16 %v1357, %v1356
          %v1372 = vpack.c.b16 %v1359, %v1358
          %v1373 = vpack.c.b16 %v1361, %v1360
          %v1374 = vpack.c.b16 %v1363, %v1362
          %v1375 = vpack.c.b16 %v1365, %v1364
          %v1376 = vpack.c.b16 %v1367, %v1366
          %v1377 = vpack.c.b16 %v1369, %v1368
          %v1402 = vunpack.c.l.b16 %v1044
          %v1403 = vunpack.c.l.b16 %v1045
          %v1404 = vunpack.c.l.b16 %v1046
          %v1405 = vunpack.c.l.b16 %v1047
          %v1406 = vunpack.c.l.b16 %v1048
          %v1407 = vunpack.c.l.b16 %v1049
          %v1408 = vunpack.c.l.b16 %v1050
          %v1409 = vunpack.c.l.b16 %v1051
          %v1410 = vunpack.c.l.b16 %v1052
          %v1411 = vunpack.c.l.b16 %v1053
          %v1412 = vunpack.c.l.b16 %v1054
          %v1413 = vunpack.c.l.b16 %v1055
          %v1414 = vunpack.c.l.b16 %v1056
          %v1415 = vunpack.c.l.b16 %v1057
          %v1416 = vunpack.c.l.b16 %v1058
          %v1417 = vunpack.c.l.b16 %v1059
          %v1418 = vpack.c.b16 %v1403, %v1402
          %v1419 = vpack.c.b16 %v1405, %v1404
          %v1420 = vpack.c.b16 %v1407, %v1406
          %v1421 = vpack.c.b16 %v1409, %v1408
          %v1422 = vpack.c.b16 %v1411, %v1410
          %v1423 = vpack.c.b16 %v1413, %v1412
          %v1424 = vpack.c.b16 %v1415, %v1414
          %v1425 = vpack.c.b16 %v1417, %v1416
          %v1450 = vunpack.c.l.b16 %v1063
          %v1451 = vunpack.c.l.b16 %v1064
          %v1452 = vunpack.c.l.b16 %v1065
          %v1453 = vunpack.c.l.b16 %v1066
          %v1454 = vunpack.c.l.b16 %v1067
          %v1455 = vunpack.c.l.b16 %v1068
          %v1456 = vunpack.c.l.b16 %v1069
          %v1457 = vunpack.c.l.b16 %v1070
          %v1458 = vunpack.c.l.b16 %v1071
          %v1459 = vunpack.c.l.b16 %v1072
          %v1460 = vunpack.c.l.b16 %v1073
          %v1461 = vunpack.c.l.b16 %v1074
          %v1462 = vunpack.c.l.b16 %v1075
          %v1463 = vunpack.c.l.b16 %v1076
          %v1464 = vunpack.c.l.b16 %v1077
          %v1465 = vunpack.c.l.b16 %v1078
          %v1466 = vpack.c.b16 %v1451, %v1450
          %v1467 = vpack.c.b16 %v1453, %v1452
          %v1468 = vpack.c.b16 %v1455, %v1454
          %v1469 = vpack.c.b16 %v1457, %v1456
          %v1470 = vpack.c.b16 %v1459, %v1458
          %v1471 = vpack.c.b16 %v1461, %v1460
          %v1472 = vpack.c.b16 %v1463, %v1462
          %v1473 = vpack.c.b16 %v1465, %v1464
          %v1498 = vunpack.c.l.b16 %v1082
          %v1499 = vunpack.c.l.b16 %v1083
          %v1500 = vunpack.c.l.b16 %v1084
          %v1501 = vunpack.c.l.b16 %v1085
          %v1502 = vunpack.c.l.b16 %v1086
          %v1503 = vunpack.c.l.b16 %v1087
          %v1504 = vunpack.c.l.b16 %v1088
          %v1505 = vunpack.c.l.b16 %v1089
          %v1506 = vunpack.c.l.b16 %v1090
          %v1507 = vunpack.c.l.b16 %v1091
          %v1508 = vunpack.c.l.b16 %v1092
          %v1509 = vunpack.c.l.b16 %v1093
          %v1510 = vunpack.c.l.b16 %v1094
          %v1511 = vunpack.c.l.b16 %v1095
          %v1512 = vunpack.c.l.b16 %v1096
          %v1513 = vunpack.c.l.b16 %v1097
          %v1514 = vpack.c.b16 %v1499, %v1498
          %v1515 = vpack.c.b16 %v1501, %v1500
          %v1516 = vpack.c.b16 %v1503, %v1502
          %v1517 = vpack.c.b16 %v1505, %v1504
          %v1518 = vpack.c.b16 %v1507, %v1506
          %v1519 = vpack.c.b16 %v1509, %v1508
          %v1520 = vpack.c.b16 %v1511, %v1510
          %v1521 = vpack.c.b16 %v1513, %v1512
          %v1530 = vld [vmem:[%s2] sm:$0xff]
          %v1531 = vld [vmem:[%s2 + $0x8] sm:$0xff]
          %v1532 = vld [vmem:[%s2 + $0x10] sm:$0xff]
          %v1533 = vld [vmem:[%s2 + $0x18] sm:$0xff]
          %v1534 = vld [vmem:[%s2 + $0x20] sm:$0xff]
          %v1535 = vld [vmem:[%s2 + $0x28] sm:$0xff]
          %v1536 = vld [vmem:[%s2 + $0x30] sm:$0xff]
          %v1537 = vld [vmem:[%s2 + $0x38] sm:$0xff]
          %v1538 = vld [vmem:[%s2 + $0x40] sm:$0xff]
          %v1539 = vld [vmem:[%s2 + $0x48] sm:$0xff]
          %v1540 = vld [vmem:[%s2 + $0x50] sm:$0xff]
          %v1541 = vld [vmem:[%s2 + $0x58] sm:$0xff]
          %v1542 = vld [vmem:[%s2 + $0x60] sm:$0xff]
          %v1543 = vld [vmem:[%s2 + $0x68] sm:$0xff]
          %v1544 = vld [vmem:[%s2 + $0x70] sm:$0xff]
          %v1545 = vld [vmem:[%s2 + $0x78] sm:$0xff]
          %v1546 = vld [vmem:[%s2 + $0x80] sm:$0xff]
          %v1547 = vld [vmem:[%s2 + $0x88] sm:$0xff]
          %v1548 = vld [vmem:[%s2 + $0x90] sm:$0xff]
          %v1549 = vld [vmem:[%s2 + $0x98] sm:$0xff]
          %v1550 = vld [vmem:[%s2 + $0xa0] sm:$0xff]
          %v1551 = vld [vmem:[%s2 + $0xa8] sm:$0xff]
          %v1552 = vld [vmem:[%s2 + $0xb0] sm:$0xff]
          %v1553 = vld [vmem:[%s2 + $0xb8] sm:$0xff]
          %v1554 = vld [vmem:[%s2 + $0xc0] sm:$0xff]
          %v1555 = vld [vmem:[%s2 + $0xc8] sm:$0xff]
          %v1556 = vld [vmem:[%s2 + $0xd0] sm:$0xff]
          %v1557 = vld [vmem:[%s2 + $0xd8] sm:$0xff]
          %v1558 = vld [vmem:[%s2 + $0xe0] sm:$0xff]
          %v1559 = vld [vmem:[%s2 + $0xe8] sm:$0xff]
          %v1560 = vld [vmem:[%s2 + $0xf0] sm:$0xff]
          %v1561 = vld [vmem:[%s2 + $0xf8] sm:$0xff]
          %v1562 = vld [vmem:[%s2 + $0x100] sm:$0xff]
          %v1563 = vld [vmem:[%s2 + $0x108] sm:$0xff]
          %v1564 = vld [vmem:[%s2 + $0x110] sm:$0xff]
          %v1565 = vld [vmem:[%s2 + $0x118] sm:$0xff]
          %v1566 = vld [vmem:[%s2 + $0x120] sm:$0xff]
          %v1567 = vld [vmem:[%s2 + $0x128] sm:$0xff]
          %v1568 = vld [vmem:[%s2 + $0x130] sm:$0xff]
          %v1569 = vld [vmem:[%s2 + $0x138] sm:$0xff]
          %v1570 = vld [vmem:[%s2 + $0x140] sm:$0xff]
          %v1571 = vld [vmem:[%s2 + $0x148] sm:$0xff]
          %v1572 = vld [vmem:[%s2 + $0x150] sm:$0xff]
          %v1573 = vld [vmem:[%s2 + $0x158] sm:$0xff]
          %v1574 = vld [vmem:[%s2 + $0x160] sm:$0xff]
          %v1575 = vld [vmem:[%s2 + $0x168] sm:$0xff]
          %v1576 = vld [vmem:[%s2 + $0x170] sm:$0xff]
          %v1577 = vld [vmem:[%s2 + $0x178] sm:$0xff]
          %v1578 = vld [vmem:[%s2 + $0x180] sm:$0xff]
          %v1579 = vld [vmem:[%s2 + $0x188] sm:$0xff]
          %v1580 = vld [vmem:[%s2 + $0x190] sm:$0xff]
          %v1581 = vld [vmem:[%s2 + $0x198] sm:$0xff]
          %v1582 = vld [vmem:[%s2 + $0x1a0] sm:$0xff]
          %v1583 = vld [vmem:[%s2 + $0x1a8] sm:$0xff]
          %v1584 = vld [vmem:[%s2 + $0x1b0] sm:$0xff]
          %v1585 = vld [vmem:[%s2 + $0x1b8] sm:$0xff]
          %v1586 = vld [vmem:[%s2 + $0x1c0] sm:$0xff]
          %v1587 = vld [vmem:[%s2 + $0x1c8] sm:$0xff]
          %v1588 = vld [vmem:[%s2 + $0x1d0] sm:$0xff]
          %v1589 = vld [vmem:[%s2 + $0x1d8] sm:$0xff]
          %v1590 = vld [vmem:[%s2 + $0x1e0] sm:$0xff]
          %v1591 = vld [vmem:[%s2 + $0x1e8] sm:$0xff]
          %v1592 = vld [vmem:[%s2 + $0x1f0] sm:$0xff]
          %v1593 = vld [vmem:[%s2 + $0x1f8] sm:$0xff]
          %v1594 = vld [vmem:[%s2 + $0x200] sm:$0xff]
          %v1595 = vld [vmem:[%s2 + $0x208] sm:$0xff]
          %v1596 = vld [vmem:[%s2 + $0x210] sm:$0xff]
          %v1597 = vld [vmem:[%s2 + $0x218] sm:$0xff]
          %v1598 = vld [vmem:[%s2 + $0x220] sm:$0xff]
          %v1599 = vld [vmem:[%s2 + $0x228] sm:$0xff]
          %v1600 = vld [vmem:[%s2 + $0x230] sm:$0xff]
          %v1601 = vld [vmem:[%s2 + $0x238] sm:$0xff]
          %v1602 = vld [vmem:[%s2 + $0x240] sm:$0xff]
          %v1603 = vld [vmem:[%s2 + $0x248] sm:$0xff]
          %v1604 = vld [vmem:[%s2 + $0x250] sm:$0xff]
          %v1605 = vld [vmem:[%s2 + $0x258] sm:$0xff]
          %v1606 = vld [vmem:[%s2 + $0x260] sm:$0xff]
          %v1607 = vld [vmem:[%s2 + $0x268] sm:$0xff]
          %v1608 = vld [vmem:[%s2 + $0x270] sm:$0xff]
          %v1609 = vld [vmem:[%s2 + $0x278] sm:$0xff]
          %v1610 = vld [vmem:[%s2 + $0x280] sm:$0xff]
          %v1611 = vld [vmem:[%s2 + $0x288] sm:$0xff]
          %v1612 = vld [vmem:[%s2 + $0x290] sm:$0xff]
          %v1613 = vld [vmem:[%s2 + $0x298] sm:$0xff]
          %v1614 = vld [vmem:[%s2 + $0x2a0] sm:$0xff]
          %v1615 = vld [vmem:[%s2 + $0x2a8] sm:$0xff]
          %v1616 = vld [vmem:[%s2 + $0x2b0] sm:$0xff]
          %v1617 = vld [vmem:[%s2 + $0x2b8] sm:$0xff]
          %v1618 = vld [vmem:[%s2 + $0x2c0] sm:$0xff]
          %v1619 = vld [vmem:[%s2 + $0x2c8] sm:$0xff]
          %v1620 = vld [vmem:[%s2 + $0x2d0] sm:$0xff]
          %v1621 = vld [vmem:[%s2 + $0x2d8] sm:$0xff]
          %v1622 = vld [vmem:[%s2 + $0x2e0] sm:$0xff]
          %v1623 = vld [vmem:[%s2 + $0x2e8] sm:$0xff]
          %v1624 = vld [vmem:[%s2 + $0x2f0] sm:$0xff]
          %v1625 = vld [vmem:[%s2 + $0x2f8] sm:$0xff]
          %v1626 = vld [vmem:[%s2 + $0x300] sm:$0xff]
          %v1627 = vld [vmem:[%s2 + $0x308] sm:$0xff]
          %v1628 = vld [vmem:[%s2 + $0x310] sm:$0xff]
          %v1629 = vld [vmem:[%s2 + $0x318] sm:$0xff]
          %v1630 = vld [vmem:[%s2 + $0x320] sm:$0xff]
          %v1631 = vld [vmem:[%s2 + $0x328] sm:$0xff]
          %v1632 = vld [vmem:[%s2 + $0x330] sm:$0xff]
          %v1633 = vld [vmem:[%s2 + $0x338] sm:$0xff]
          %v1634 = vld [vmem:[%s2 + $0x340] sm:$0xff]
          %v1635 = vld [vmem:[%s2 + $0x348] sm:$0xff]
          %v1636 = vld [vmem:[%s2 + $0x350] sm:$0xff]
          %v1637 = vld [vmem:[%s2 + $0x358] sm:$0xff]
          %v1638 = vld [vmem:[%s2 + $0x360] sm:$0xff]
          %v1639 = vld [vmem:[%s2 + $0x368] sm:$0xff]
          %v1640 = vld [vmem:[%s2 + $0x370] sm:$0xff]
          %v1641 = vld [vmem:[%s2 + $0x378] sm:$0xff]
          %v1642 = vld [vmem:[%s2 + $0x380] sm:$0xff]
          %v1643 = vld [vmem:[%s2 + $0x388] sm:$0xff]
          %v1644 = vld [vmem:[%s2 + $0x390] sm:$0xff]
          %v1645 = vld [vmem:[%s2 + $0x398] sm:$0xff]
          %v1646 = vld [vmem:[%s2 + $0x3a0] sm:$0xff]
          %v1647 = vld [vmem:[%s2 + $0x3a8] sm:$0xff]
          %v1648 = vld [vmem:[%s2 + $0x3b0] sm:$0xff]
          %v1649 = vld [vmem:[%s2 + $0x3b8] sm:$0xff]
          %v1650 = vld [vmem:[%s2 + $0x3c0] sm:$0xff]
          %v1651 = vld [vmem:[%s2 + $0x3c8] sm:$0xff]
          %v1652 = vld [vmem:[%s2 + $0x3d0] sm:$0xff]
          %v1653 = vld [vmem:[%s2 + $0x3d8] sm:$0xff]
          %v1654 = vld [vmem:[%s2 + $0x3e0] sm:$0xff]
          %v1655 = vld [vmem:[%s2 + $0x3e8] sm:$0xff]
          %v1656 = vld [vmem:[%s2 + $0x3f0] sm:$0xff]
          %v1657 = vld [vmem:[%s2 + $0x3f8] sm:$0xff]
          %v1658 = vld [vmem:[%s2 + $0x400] sm:$0xff]
          %v1659 = vld [vmem:[%s2 + $0x408] sm:$0xff]
          %v1660 = vld [vmem:[%s2 + $0x410] sm:$0xff]
          %v1661 = vld [vmem:[%s2 + $0x418] sm:$0xff]
          %v1662 = vld [vmem:[%s2 + $0x420] sm:$0xff]
          %v1663 = vld [vmem:[%s2 + $0x428] sm:$0xff]
          %v1664 = vld [vmem:[%s2 + $0x430] sm:$0xff]
          %v1665 = vld [vmem:[%s2 + $0x438] sm:$0xff]
          %v1666 = vld [vmem:[%s2 + $0x440] sm:$0xff]
          %v1667 = vld [vmem:[%s2 + $0x448] sm:$0xff]
          %v1668 = vld [vmem:[%s2 + $0x450] sm:$0xff]
          %v1669 = vld [vmem:[%s2 + $0x458] sm:$0xff]
          %v1670 = vld [vmem:[%s2 + $0x460] sm:$0xff]
          %v1671 = vld [vmem:[%s2 + $0x468] sm:$0xff]
          %v1672 = vld [vmem:[%s2 + $0x470] sm:$0xff]
          %v1673 = vld [vmem:[%s2 + $0x478] sm:$0xff]
          %v1675 = vlaneseq
          %v1676 = vshrl.u32 %v1675, 7
          %v1677 = vsub.s32 0, %v1676
          %v1678 = vrot.slane %v313, %v1677
          %v1679 = vlaneseq
          %v1680 = vshrl.u32 %v1679, 7
          %v1681 = vsub.s32 1, %v1680
          %v1682 = vrot.slane %v313, %v1681
          %v1829 = vunpack.c.l.b16 %v1530
          %v1830 = vunpack.c.h.b16 %v1530
          %v1831 = vunpack.c.l.b16 %v1531
          %v1832 = vunpack.c.h.b16 %v1531
          %v1833 = vunpack.c.l.b16 %v1532
          %v1834 = vunpack.c.h.b16 %v1532
          %v1835 = vunpack.c.l.b16 %v1533
          %v1836 = vunpack.c.h.b16 %v1533
          %v1837 = vunpack.c.l.b16 %v1534
          %v1838 = vunpack.c.h.b16 %v1534
          %v1839 = vunpack.c.l.b16 %v1535
          %v1840 = vunpack.c.h.b16 %v1535
          %v1841 = vunpack.c.l.b16 %v1536
          %v1842 = vunpack.c.h.b16 %v1536
          %v1843 = vunpack.c.l.b16 %v1537
          %v1844 = vunpack.c.h.b16 %v1537
          %v1845 = vunpack.c.l.b16 %v1538
          %v1846 = vunpack.c.h.b16 %v1538
          %v1847 = vunpack.c.l.b16 %v1539
          %v1848 = vunpack.c.h.b16 %v1539
          %v1849 = vunpack.c.l.b16 %v1540
          %v1850 = vunpack.c.h.b16 %v1540
          %v1851 = vunpack.c.l.b16 %v1541
          %v1852 = vunpack.c.h.b16 %v1541
          %v1853 = vunpack.c.l.b16 %v1542
          %v1854 = vunpack.c.h.b16 %v1542
          %v1855 = vunpack.c.l.b16 %v1543
          %v1856 = vunpack.c.h.b16 %v1543
          %v1857 = vunpack.c.l.b16 %v1544
          %v1858 = vunpack.c.h.b16 %v1544
          %v1859 = vunpack.c.l.b16 %v1545
          %v1860 = vunpack.c.h.b16 %v1545
          %v1861 = vunpack.c.l.b16 %v1546
          %v1862 = vunpack.c.h.b16 %v1546
          %v1863 = vunpack.c.l.b16 %v1547
          %v1864 = vunpack.c.h.b16 %v1547
          %v1865 = vunpack.c.l.b16 %v1548
          %v1866 = vunpack.c.h.b16 %v1548
          %v1867 = vunpack.c.l.b16 %v1549
          %v1868 = vunpack.c.h.b16 %v1549
          %v1869 = vunpack.c.l.b16 %v1550
          %v1870 = vunpack.c.h.b16 %v1550
          %v1871 = vunpack.c.l.b16 %v1551
          %v1872 = vunpack.c.h.b16 %v1551
          %v1873 = vunpack.c.l.b16 %v1552
          %v1874 = vunpack.c.h.b16 %v1552
          %v1875 = vunpack.c.l.b16 %v1553
          %v1876 = vunpack.c.h.b16 %v1553
          %v1877 = vunpack.c.l.b16 %v1554
          %v1878 = vunpack.c.h.b16 %v1554
          %v1879 = vunpack.c.l.b16 %v1555
          %v1880 = vunpack.c.h.b16 %v1555
          %v1881 = vunpack.c.l.b16 %v1556
          %v1882 = vunpack.c.h.b16 %v1556
          %v1883 = vunpack.c.l.b16 %v1557
          %v1884 = vunpack.c.h.b16 %v1557
          %v1885 = vunpack.c.l.b16 %v1558
          %v1886 = vunpack.c.h.b16 %v1558
          %v1887 = vunpack.c.l.b16 %v1559
          %v1888 = vunpack.c.h.b16 %v1559
          %v1889 = vunpack.c.l.b16 %v1560
          %v1890 = vunpack.c.h.b16 %v1560
          %v1891 = vunpack.c.l.b16 %v1561
          %v1892 = vunpack.c.h.b16 %v1561
          %v1893 = vunpack.c.l.b16 %v1562
          %v1894 = vunpack.c.h.b16 %v1562
          %v1895 = vunpack.c.l.b16 %v1563
          %v1896 = vunpack.c.h.b16 %v1563
          %v1897 = vunpack.c.l.b16 %v1564
          %v1898 = vunpack.c.h.b16 %v1564
          %v1899 = vunpack.c.l.b16 %v1565
          %v1900 = vunpack.c.h.b16 %v1565
          %v1901 = vunpack.c.l.b16 %v1566
          %v1902 = vunpack.c.h.b16 %v1566
          %v1903 = vunpack.c.l.b16 %v1567
          %v1904 = vunpack.c.h.b16 %v1567
          %v1905 = vunpack.c.l.b16 %v1568
          %v1906 = vunpack.c.h.b16 %v1568
          %v1907 = vunpack.c.l.b16 %v1569
          %v1908 = vunpack.c.h.b16 %v1569
          %v1909 = vunpack.c.l.b16 %v1570
          %v1910 = vunpack.c.h.b16 %v1570
          %v1911 = vunpack.c.l.b16 %v1571
          %v1912 = vunpack.c.h.b16 %v1571
          %v1913 = vunpack.c.l.b16 %v1572
          %v1914 = vunpack.c.h.b16 %v1572
          %v1915 = vunpack.c.l.b16 %v1573
          %v1916 = vunpack.c.h.b16 %v1573
          %v1917 = vunpack.c.l.b16 %v1574
          %v1918 = vunpack.c.h.b16 %v1574
          %v1919 = vunpack.c.l.b16 %v1575
          %v1920 = vunpack.c.h.b16 %v1575
          %v1921 = vunpack.c.l.b16 %v1576
          %v1922 = vunpack.c.h.b16 %v1576
          %v1923 = vunpack.c.l.b16 %v1577
          %v1924 = vunpack.c.h.b16 %v1577
          %v1925 = vunpack.c.l.b16 %v1578
          %v1926 = vunpack.c.h.b16 %v1578
          %v1927 = vunpack.c.l.b16 %v1579
          %v1928 = vunpack.c.h.b16 %v1579
          %v1929 = vunpack.c.l.b16 %v1580
          %v1930 = vunpack.c.h.b16 %v1580
          %v1931 = vunpack.c.l.b16 %v1581
          %v1932 = vunpack.c.h.b16 %v1581
          %v1933 = vunpack.c.l.b16 %v1582
          %v1934 = vunpack.c.h.b16 %v1582
          %v1935 = vunpack.c.l.b16 %v1583
          %v1936 = vunpack.c.h.b16 %v1583
          %v1937 = vunpack.c.l.b16 %v1584
          %v1938 = vunpack.c.h.b16 %v1584
          %v1939 = vunpack.c.l.b16 %v1585
          %v1940 = vunpack.c.h.b16 %v1585
          %v1941 = vunpack.c.l.b16 %v1586
          %v1942 = vunpack.c.h.b16 %v1586
          %v1943 = vunpack.c.l.b16 %v1587
          %v1944 = vunpack.c.h.b16 %v1587
          %v1945 = vunpack.c.l.b16 %v1588
          %v1946 = vunpack.c.h.b16 %v1588
          %v1947 = vunpack.c.l.b16 %v1589
          %v1948 = vunpack.c.h.b16 %v1589
          %v1949 = vunpack.c.l.b16 %v1590
          %v1950 = vunpack.c.h.b16 %v1590
          %v1951 = vunpack.c.l.b16 %v1591
          %v1952 = vunpack.c.h.b16 %v1591
          %v1953 = vunpack.c.l.b16 %v1592
          %v1954 = vunpack.c.h.b16 %v1592
          %v1955 = vunpack.c.l.b16 %v1593
          %v1956 = vunpack.c.h.b16 %v1593
          %v1957 = vunpack.c.l.b16 %v1594
          %v1958 = vunpack.c.h.b16 %v1594
          %v1959 = vunpack.c.l.b16 %v1595
          %v1960 = vunpack.c.h.b16 %v1595
          %v1961 = vunpack.c.l.b16 %v1596
          %v1962 = vunpack.c.h.b16 %v1596
          %v1963 = vunpack.c.l.b16 %v1597
          %v1964 = vunpack.c.h.b16 %v1597
          %v1965 = vunpack.c.l.b16 %v1598
          %v1966 = vunpack.c.h.b16 %v1598
          %v1967 = vunpack.c.l.b16 %v1599
          %v1968 = vunpack.c.h.b16 %v1599
          %v1969 = vunpack.c.l.b16 %v1600
          %v1970 = vunpack.c.h.b16 %v1600
          %v1971 = vunpack.c.l.b16 %v1601
          %v1972 = vunpack.c.h.b16 %v1601
          %v1973 = vunpack.c.l.b16 %v1602
          %v1974 = vunpack.c.h.b16 %v1602
          %v1975 = vunpack.c.l.b16 %v1603
          %v1976 = vunpack.c.h.b16 %v1603
          %v1977 = vunpack.c.l.b16 %v1604
          %v1978 = vunpack.c.h.b16 %v1604
          %v1979 = vunpack.c.l.b16 %v1605
          %v1980 = vunpack.c.h.b16 %v1605
          %v1981 = vunpack.c.l.b16 %v1606
          %v1982 = vunpack.c.h.b16 %v1606
          %v1983 = vunpack.c.l.b16 %v1607
          %v1984 = vunpack.c.h.b16 %v1607
          %v1985 = vunpack.c.l.b16 %v1608
          %v1986 = vunpack.c.h.b16 %v1608
          %v1987 = vunpack.c.l.b16 %v1609
          %v1988 = vunpack.c.h.b16 %v1609
          %v1989 = vunpack.c.l.b16 %v1610
          %v1990 = vunpack.c.h.b16 %v1610
          %v1991 = vunpack.c.l.b16 %v1611
          %v1992 = vunpack.c.h.b16 %v1611
          %v1993 = vunpack.c.l.b16 %v1612
          %v1994 = vunpack.c.h.b16 %v1612
          %v1995 = vunpack.c.l.b16 %v1613
          %v1996 = vunpack.c.h.b16 %v1613
          %v1997 = vunpack.c.l.b16 %v1614
          %v1998 = vunpack.c.h.b16 %v1614
          %v1999 = vunpack.c.l.b16 %v1615
          %v2000 = vunpack.c.h.b16 %v1615
          %v2001 = vunpack.c.l.b16 %v1616
          %v2002 = vunpack.c.h.b16 %v1616
          %v2003 = vunpack.c.l.b16 %v1617
          %v2004 = vunpack.c.h.b16 %v1617
          %v2005 = vunpack.c.l.b16 %v1618
          %v2006 = vunpack.c.h.b16 %v1618
          %v2007 = vunpack.c.l.b16 %v1619
          %v2008 = vunpack.c.h.b16 %v1619
          %v2009 = vunpack.c.l.b16 %v1620
          %v2010 = vunpack.c.h.b16 %v1620
          %v2011 = vunpack.c.l.b16 %v1621
          %v2012 = vunpack.c.h.b16 %v1621
          %v2013 = vunpack.c.l.b16 %v1622
          %v2014 = vunpack.c.h.b16 %v1622
          %v2015 = vunpack.c.l.b16 %v1623
          %v2016 = vunpack.c.h.b16 %v1623
          %v2017 = vunpack.c.l.b16 %v1624
          %v2018 = vunpack.c.h.b16 %v1624
          %v2019 = vunpack.c.l.b16 %v1625
          %v2020 = vunpack.c.h.b16 %v1625
          %v2021 = vunpack.c.l.b16 %v1626
          %v2022 = vunpack.c.h.b16 %v1626
          %v2023 = vunpack.c.l.b16 %v1627
          %v2024 = vunpack.c.h.b16 %v1627
          %v2025 = vunpack.c.l.b16 %v1628
          %v2026 = vunpack.c.h.b16 %v1628
          %v2027 = vunpack.c.l.b16 %v1629
          %v2028 = vunpack.c.h.b16 %v1629
          %v2029 = vunpack.c.l.b16 %v1630
          %v2030 = vunpack.c.h.b16 %v1630
          %v2031 = vunpack.c.l.b16 %v1631
          %v2032 = vunpack.c.h.b16 %v1631
          %v2033 = vunpack.c.l.b16 %v1632
          %v2034 = vunpack.c.h.b16 %v1632
          %v2035 = vunpack.c.l.b16 %v1633
          %v2036 = vunpack.c.h.b16 %v1633
          %v2037 = vunpack.c.l.b16 %v1634
          %v2038 = vunpack.c.h.b16 %v1634
          %v2039 = vunpack.c.l.b16 %v1635
          %v2040 = vunpack.c.h.b16 %v1635
          %v2041 = vunpack.c.l.b16 %v1636
          %v2042 = vunpack.c.h.b16 %v1636
          %v2043 = vunpack.c.l.b16 %v1637
          %v2044 = vunpack.c.h.b16 %v1637
          %v2045 = vunpack.c.l.b16 %v1638
          %v2046 = vunpack.c.h.b16 %v1638
          %v2047 = vunpack.c.l.b16 %v1639
          %v2048 = vunpack.c.h.b16 %v1639
          %v2049 = vunpack.c.l.b16 %v1640
          %v2050 = vunpack.c.h.b16 %v1640
          %v2051 = vunpack.c.l.b16 %v1641
          %v2052 = vunpack.c.h.b16 %v1641
          %v2053 = vunpack.c.l.b16 %v1642
          %v2054 = vunpack.c.h.b16 %v1642
          %v2055 = vunpack.c.l.b16 %v1643
          %v2056 = vunpack.c.h.b16 %v1643
          %v2057 = vunpack.c.l.b16 %v1644
          %v2058 = vunpack.c.h.b16 %v1644
          %v2059 = vunpack.c.l.b16 %v1645
          %v2060 = vunpack.c.h.b16 %v1645
          %v2061 = vunpack.c.l.b16 %v1646
          %v2062 = vunpack.c.h.b16 %v1646
          %v2063 = vunpack.c.l.b16 %v1647
          %v2064 = vunpack.c.h.b16 %v1647
          %v2065 = vunpack.c.l.b16 %v1648
          %v2066 = vunpack.c.h.b16 %v1648
          %v2067 = vunpack.c.l.b16 %v1649
          %v2068 = vunpack.c.h.b16 %v1649
          %v2069 = vunpack.c.l.b16 %v1650
          %v2070 = vunpack.c.h.b16 %v1650
          %v2071 = vunpack.c.l.b16 %v1651
          %v2072 = vunpack.c.h.b16 %v1651
          %v2073 = vunpack.c.l.b16 %v1652
          %v2074 = vunpack.c.h.b16 %v1652
          %v2075 = vunpack.c.l.b16 %v1653
          %v2076 = vunpack.c.h.b16 %v1653
          %v2077 = vunpack.c.l.b16 %v1654
          %v2078 = vunpack.c.h.b16 %v1654
          %v2079 = vunpack.c.l.b16 %v1655
          %v2080 = vunpack.c.h.b16 %v1655
          %v2081 = vunpack.c.l.b16 %v1656
          %v2082 = vunpack.c.h.b16 %v1656
          %v2083 = vunpack.c.l.b16 %v1657
          %v2084 = vunpack.c.h.b16 %v1657
          %v2085 = vunpack.c.l.b16 %v1658
          %v2086 = vunpack.c.h.b16 %v1658
          %v2087 = vunpack.c.l.b16 %v1659
          %v2088 = vunpack.c.h.b16 %v1659
          %v2089 = vunpack.c.l.b16 %v1660
          %v2090 = vunpack.c.h.b16 %v1660
          %v2091 = vunpack.c.l.b16 %v1661
          %v2092 = vunpack.c.h.b16 %v1661
          %v2093 = vunpack.c.l.b16 %v1662
          %v2094 = vunpack.c.h.b16 %v1662
          %v2095 = vunpack.c.l.b16 %v1663
          %v2096 = vunpack.c.h.b16 %v1663
          %v2097 = vunpack.c.l.b16 %v1664
          %v2098 = vunpack.c.h.b16 %v1664
          %v2099 = vunpack.c.l.b16 %v1665
          %v2100 = vunpack.c.h.b16 %v1665
          %v2101 = vunpack.c.l.b16 %v1666
          %v2102 = vunpack.c.h.b16 %v1666
          %v2103 = vunpack.c.l.b16 %v1667
          %v2104 = vunpack.c.h.b16 %v1667
          %v2105 = vunpack.c.l.b16 %v1668
          %v2106 = vunpack.c.h.b16 %v1668
          %v2107 = vunpack.c.l.b16 %v1669
          %v2108 = vunpack.c.h.b16 %v1669
          %v2109 = vunpack.c.l.b16 %v1670
          %v2110 = vunpack.c.h.b16 %v1670
          %v2111 = vunpack.c.l.b16 %v1671
          %v2112 = vunpack.c.h.b16 %v1671
          %v2113 = vunpack.c.l.b16 %v1672
          %v2114 = vunpack.c.h.b16 %v1672
          %v2115 = vunpack.c.l.b16 %v1673
          %v2116 = vunpack.c.h.b16 %v1673
          %v2117 = vpack.c.b16 %v1831, %v1829
          %v2118 = vpack.c.b16 %v1832, %v1830
          %v2119 = vpack.c.b16 %v1835, %v1833
          %v2120 = vpack.c.b16 %v1836, %v1834
          %v2121 = vpack.c.b16 %v1839, %v1837
          %v2122 = vpack.c.b16 %v1840, %v1838
          %v2123 = vpack.c.b16 %v1843, %v1841
          %v2124 = vpack.c.b16 %v1844, %v1842
          %v2125 = vpack.c.b16 %v1847, %v1845
          %v2126 = vpack.c.b16 %v1848, %v1846
          %v2127 = vpack.c.b16 %v1851, %v1849
          %v2128 = vpack.c.b16 %v1852, %v1850
          %v2129 = vpack.c.b16 %v1855, %v1853
          %v2130 = vpack.c.b16 %v1856, %v1854
          %v2131 = vpack.c.b16 %v1859, %v1857
          %v2132 = vpack.c.b16 %v1860, %v1858
          %v2133 = vpack.c.b16 %v1863, %v1861
          %v2134 = vpack.c.b16 %v1864, %v1862
          %v2135 = vpack.c.b16 %v1867, %v1865
          %v2136 = vpack.c.b16 %v1868, %v1866
          %v2137 = vpack.c.b16 %v1871, %v1869
          %v2138 = vpack.c.b16 %v1872, %v1870
          %v2139 = vpack.c.b16 %v1875, %v1873
          %v2140 = vpack.c.b16 %v1876, %v1874
          %v2141 = vpack.c.b16 %v1879, %v1877
          %v2142 = vpack.c.b16 %v1880, %v1878
          %v2143 = vpack.c.b16 %v1883, %v1881
          %v2144 = vpack.c.b16 %v1884, %v1882
          %v2145 = vpack.c.b16 %v1887, %v1885
          %v2146 = vpack.c.b16 %v1888, %v1886
          %v2147 = vpack.c.b16 %v1891, %v1889
          %v2148 = vpack.c.b16 %v1892, %v1890
          %v2149 = vpack.c.b16 %v1895, %v1893
          %v2150 = vpack.c.b16 %v1896, %v1894
          %v2151 = vpack.c.b16 %v1899, %v1897
          %v2152 = vpack.c.b16 %v1900, %v1898
          %v2153 = vpack.c.b16 %v1903, %v1901
          %v2154 = vpack.c.b16 %v1904, %v1902
          %v2155 = vpack.c.b16 %v1907, %v1905
          %v2156 = vpack.c.b16 %v1908, %v1906
          %v2157 = vpack.c.b16 %v1911, %v1909
          %v2158 = vpack.c.b16 %v1912, %v1910
          %v2159 = vpack.c.b16 %v1915, %v1913
          %v2160 = vpack.c.b16 %v1916, %v1914
          %v2161 = vpack.c.b16 %v1919, %v1917
          %v2162 = vpack.c.b16 %v1920, %v1918
          %v2163 = vpack.c.b16 %v1923, %v1921
          %v2164 = vpack.c.b16 %v1924, %v1922
          %v2165 = vpack.c.b16 %v1927, %v1925
          %v2166 = vpack.c.b16 %v1928, %v1926
          %v2167 = vpack.c.b16 %v1931, %v1929
          %v2168 = vpack.c.b16 %v1932, %v1930
          %v2169 = vpack.c.b16 %v1935, %v1933
          %v2170 = vpack.c.b16 %v1936, %v1934
          %v2171 = vpack.c.b16 %v1939, %v1937
          %v2172 = vpack.c.b16 %v1940, %v1938
          %v2173 = vpack.c.b16 %v1943, %v1941
          %v2174 = vpack.c.b16 %v1944, %v1942
          %v2175 = vpack.c.b16 %v1947, %v1945
          %v2176 = vpack.c.b16 %v1948, %v1946
          %v2177 = vpack.c.b16 %v1951, %v1949
          %v2178 = vpack.c.b16 %v1952, %v1950
          %v2179 = vpack.c.b16 %v1955, %v1953
          %v2180 = vpack.c.b16 %v1956, %v1954
          %v2181 = vpack.c.b16 %v1959, %v1957
          %v2182 = vpack.c.b16 %v1960, %v1958
          %v2183 = vpack.c.b16 %v1963, %v1961
          %v2184 = vpack.c.b16 %v1964, %v1962
          %v2185 = vpack.c.b16 %v1967, %v1965
          %v2186 = vpack.c.b16 %v1968, %v1966
          %v2187 = vpack.c.b16 %v1971, %v1969
          %v2188 = vpack.c.b16 %v1972, %v1970
          %v2189 = vpack.c.b16 %v1975, %v1973
          %v2190 = vpack.c.b16 %v1976, %v1974
          %v2191 = vpack.c.b16 %v1979, %v1977
          %v2192 = vpack.c.b16 %v1980, %v1978
          %v2193 = vpack.c.b16 %v1983, %v1981
          %v2194 = vpack.c.b16 %v1984, %v1982
          %v2195 = vpack.c.b16 %v1987, %v1985
          %v2196 = vpack.c.b16 %v1988, %v1986
          %v2197 = vpack.c.b16 %v1991, %v1989
          %v2198 = vpack.c.b16 %v1992, %v1990
          %v2199 = vpack.c.b16 %v1995, %v1993
          %v2200 = vpack.c.b16 %v1996, %v1994
          %v2201 = vpack.c.b16 %v1999, %v1997
          %v2202 = vpack.c.b16 %v2000, %v1998
          %v2203 = vpack.c.b16 %v2003, %v2001
          %v2204 = vpack.c.b16 %v2004, %v2002
          %v2205 = vpack.c.b16 %v2007, %v2005
          %v2206 = vpack.c.b16 %v2008, %v2006
          %v2207 = vpack.c.b16 %v2011, %v2009
          %v2208 = vpack.c.b16 %v2012, %v2010
          %v2209 = vpack.c.b16 %v2015, %v2013
          %v2210 = vpack.c.b16 %v2016, %v2014
          %v2211 = vpack.c.b16 %v2019, %v2017
          %v2212 = vpack.c.b16 %v2020, %v2018
          %v2213 = vpack.c.b16 %v2023, %v2021
          %v2214 = vpack.c.b16 %v2024, %v2022
          %v2215 = vpack.c.b16 %v2027, %v2025
          %v2216 = vpack.c.b16 %v2028, %v2026
          %v2217 = vpack.c.b16 %v2031, %v2029
          %v2218 = vpack.c.b16 %v2032, %v2030
          %v2219 = vpack.c.b16 %v2035, %v2033
          %v2220 = vpack.c.b16 %v2036, %v2034
          %v2221 = vpack.c.b16 %v2039, %v2037
          %v2222 = vpack.c.b16 %v2040, %v2038
          %v2223 = vpack.c.b16 %v2043, %v2041
          %v2224 = vpack.c.b16 %v2044, %v2042
          %v2225 = vpack.c.b16 %v2047, %v2045
          %v2226 = vpack.c.b16 %v2048, %v2046
          %v2227 = vpack.c.b16 %v2051, %v2049
          %v2228 = vpack.c.b16 %v2052, %v2050
          %v2229 = vpack.c.b16 %v2055, %v2053
          %v2230 = vpack.c.b16 %v2056, %v2054
          %v2231 = vpack.c.b16 %v2059, %v2057
          %v2232 = vpack.c.b16 %v2060, %v2058
          %v2233 = vpack.c.b16 %v2063, %v2061
          %v2234 = vpack.c.b16 %v2064, %v2062
          %v2235 = vpack.c.b16 %v2067, %v2065
          %v2236 = vpack.c.b16 %v2068, %v2066
          %v2237 = vpack.c.b16 %v2071, %v2069
          %v2238 = vpack.c.b16 %v2072, %v2070
          %v2239 = vpack.c.b16 %v2075, %v2073
          %v2240 = vpack.c.b16 %v2076, %v2074
          %v2241 = vpack.c.b16 %v2079, %v2077
          %v2242 = vpack.c.b16 %v2080, %v2078
          %v2243 = vpack.c.b16 %v2083, %v2081
          %v2244 = vpack.c.b16 %v2084, %v2082
          %v2245 = vpack.c.b16 %v2087, %v2085
          %v2246 = vpack.c.b16 %v2088, %v2086
          %v2247 = vpack.c.b16 %v2091, %v2089
          %v2248 = vpack.c.b16 %v2092, %v2090
          %v2249 = vpack.c.b16 %v2095, %v2093
          %v2250 = vpack.c.b16 %v2096, %v2094
          %v2251 = vpack.c.b16 %v2099, %v2097
          %v2252 = vpack.c.b16 %v2100, %v2098
          %v2253 = vpack.c.b16 %v2103, %v2101
          %v2254 = vpack.c.b16 %v2104, %v2102
          %v2255 = vpack.c.b16 %v2107, %v2105
          %v2256 = vpack.c.b16 %v2108, %v2106
          %v2257 = vpack.c.b16 %v2111, %v2109
          %v2258 = vpack.c.b16 %v2112, %v2110
          %v2259 = vpack.c.b16 %v2115, %v2113
          %v2260 = vpack.c.b16 %v2116, %v2114
          %2405 = vmatprep.subr.bf16.mxu0 %v2132
          %2406 = vmatpush1.bf16.msra.mxu0 %v2131
          %2407 = vmatprep.subr.bf16.mxu0 %v2130
          %2408 = vmatpush1.bf16.msra.mxu0 %v2129
          %2409 = vmatprep.subr.bf16.mxu0 %v2128
          %2410 = vmatpush1.bf16.msra.mxu0 %v2127
          %2411 = vmatprep.subr.bf16.mxu0 %v2126
          %2412 = vmatpush1.bf16.msra.mxu0 %v2125
          %2413 = vmatprep.subr.bf16.mxu0 %v2124
          %2414 = vmatpush1.bf16.msra.mxu0 %v2123
          %2415 = vmatprep.subr.bf16.mxu0 %v2122
          %2416 = vmatpush1.bf16.msra.mxu0 %v2121
          %2417 = vmatprep.subr.bf16.mxu0 %v2120
          %2418 = vmatpush1.bf16.msra.mxu0 %v2119
          %2419 = vmatprep.subr.bf16.mxu0 %v2118
          %2420 = vmatpush1.bf16.msra.mxu0 %v2117
          %2421 = vmatprep.subr.bf16.mxu0 %v2148
          %2422 = vmatpush2.bf16.msra.mxu0 %v2147
          %2423 = vmatprep.subr.bf16.mxu0 %v2146
          %2424 = vmatpush2.bf16.msra.mxu0 %v2145
          %2425 = vmatprep.subr.bf16.mxu0 %v2144
          %2426 = vmatpush2.bf16.msra.mxu0 %v2143
          %2427 = vmatprep.subr.bf16.mxu0 %v2142
          %2428 = vmatpush2.bf16.msra.mxu0 %v2141
          %2429 = vmatprep.subr.bf16.mxu0 %v2140
          %2430 = vmatpush2.bf16.msra.mxu0 %v2139
          %2431 = vmatprep.subr.bf16.mxu0 %v2138
          %2432 = vmatpush2.bf16.msra.mxu0 %v2137
          %2433 = vmatprep.subr.bf16.mxu0 %v2136
          %2434 = vmatpush2.bf16.msra.mxu0 %v2135
          %2435 = vmatprep.subr.bf16.mxu0 %v2134
          %2436 = vmatpush2.bf16.msra.mxu0 %v2133
          %2437 = vmatprep.mubr.bf16.mxu0 %v1178
          %2438 = vmatmul.mubr.bf16.gmra.mxu0 %v1130
          %v2439 = vpop.f32.mrf.mxu0
          %v2440 = vadd.f32 %v1678, %v2439
          %v2441 = vpop.f32.mrf.mxu0
          %v2442 = vadd.f32 %v1682, %v2441
          %v2443 = vpop.f32.mrf.mxu0
          %v2444 = vadd.f32 %v1678, %v2443
          %v2445 = vpop.f32.mrf.mxu0
          %v2446 = vadd.f32 %v1682, %v2445
          %2447 = vmatprep.mubr.bf16.mxu0 %v1179
          %2448 = vmatmul.mubr.bf16.gmra.mxu0 %v1131
          %v2449 = vpop.f32.mrf.mxu0
          %v2450 = vadd.f32 %v1678, %v2449
          %v2451 = vpop.f32.mrf.mxu0
          %v2452 = vadd.f32 %v1682, %v2451
          %v2453 = vpop.f32.mrf.mxu0
          %v2454 = vadd.f32 %v1678, %v2453
          %v2455 = vpop.f32.mrf.mxu0
          %v2456 = vadd.f32 %v1682, %v2455
          %2457 = vmatprep.mubr.bf16.mxu0 %v1180
          %2458 = vmatmul.mubr.bf16.gmra.mxu0 %v1132
          %v2459 = vpop.f32.mrf.mxu0
          %v2460 = vadd.f32 %v1678, %v2459
          %v2461 = vpop.f32.mrf.mxu0
          %v2462 = vadd.f32 %v1682, %v2461
          %v2463 = vpop.f32.mrf.mxu0
          %v2464 = vadd.f32 %v1678, %v2463
          %v2465 = vpop.f32.mrf.mxu0
          %v2466 = vadd.f32 %v1682, %v2465
          %2467 = vmatprep.mubr.bf16.mxu0 %v1181
          %2468 = vmatmul.mubr.bf16.gmra.mxu0 %v1133
          %v2469 = vpop.f32.mrf.mxu0
          %v2470 = vadd.f32 %v1678, %v2469
          %v2471 = vpop.f32.mrf.mxu0
          %v2472 = vadd.f32 %v1682, %v2471
          %v2473 = vpop.f32.mrf.mxu0
          %v2474 = vadd.f32 %v1678, %v2473
          %v2475 = vpop.f32.mrf.mxu0
          %v2476 = vadd.f32 %v1682, %v2475
          %2477 = vmatprep.mubr.bf16.mxu0 %v1182
          %2478 = vmatmul.mubr.bf16.gmra.mxu0 %v1134
          %v2479 = vpop.f32.mrf.mxu0
          %v2480 = vadd.f32 %v1678, %v2479
          %v2481 = vpop.f32.mrf.mxu0
          %v2482 = vadd.f32 %v1682, %v2481
          %v2483 = vpop.f32.mrf.mxu0
          %v2484 = vadd.f32 %v1678, %v2483
          %v2485 = vpop.f32.mrf.mxu0
          %v2486 = vadd.f32 %v1682, %v2485
          %2487 = vmatprep.mubr.bf16.mxu0 %v1183
          %2488 = vmatmul.mubr.bf16.gmra.mxu0 %v1135
          %v2489 = vpop.f32.mrf.mxu0
          %v2490 = vadd.f32 %v1678, %v2489
          %v2491 = vpop.f32.mrf.mxu0
          %v2492 = vadd.f32 %v1682, %v2491
          %v2493 = vpop.f32.mrf.mxu0
          %v2494 = vadd.f32 %v1678, %v2493
          %v2495 = vpop.f32.mrf.mxu0
          %v2496 = vadd.f32 %v1682, %v2495
          %2497 = vmatprep.mubr.bf16.mxu0 %v1184
          %2498 = vmatmul.mubr.bf16.gmra.mxu0 %v1136
          %v2499 = vpop.f32.mrf.mxu0
          %v2500 = vadd.f32 %v1678, %v2499
          %v2501 = vpop.f32.mrf.mxu0
          %v2502 = vadd.f32 %v1682, %v2501
          %v2503 = vpop.f32.mrf.mxu0
          %v2504 = vadd.f32 %v1678, %v2503
          %v2505 = vpop.f32.mrf.mxu0
          %v2506 = vadd.f32 %v1682, %v2505
          %2507 = vmatprep.mubr.bf16.mxu0 %v1185
          %2508 = vmatmul.mubr.bf16.gmra.mxu0 %v1137
          %v2509 = vpop.f32.mrf.mxu0
          %v2510 = vadd.f32 %v1678, %v2509
          %v2511 = vpop.f32.mrf.mxu0
          %v2512 = vadd.f32 %v1682, %v2511
          %v2513 = vpop.f32.mrf.mxu0
          %v2514 = vadd.f32 %v1678, %v2513
          %v2515 = vpop.f32.mrf.mxu0
          %v2516 = vadd.f32 %v1682, %v2515
          %2517 = vdwg.mxu0
          %2518 = vmatprep.subr.bf16.mxu0 %v2164
          %2519 = vmatpush1.bf16.msra.mxu0 %v2163
          %2520 = vmatprep.subr.bf16.mxu0 %v2162
          %2521 = vmatpush1.bf16.msra.mxu0 %v2161
          %2522 = vmatprep.subr.bf16.mxu0 %v2160
          %2523 = vmatpush1.bf16.msra.mxu0 %v2159
          %2524 = vmatprep.subr.bf16.mxu0 %v2158
          %2525 = vmatpush1.bf16.msra.mxu0 %v2157
          %2526 = vmatprep.subr.bf16.mxu0 %v2156
          %2527 = vmatpush1.bf16.msra.mxu0 %v2155
          %2528 = vmatprep.subr.bf16.mxu0 %v2154
          %2529 = vmatpush1.bf16.msra.mxu0 %v2153
          %2530 = vmatprep.subr.bf16.mxu0 %v2152
          %2531 = vmatpush1.bf16.msra.mxu0 %v2151
          %2532 = vmatprep.subr.bf16.mxu0 %v2150
          %2533 = vmatpush1.bf16.msra.mxu0 %v2149
          %2534 = vmatprep.subr.bf16.mxu0 %v2180
          %2535 = vmatpush2.bf16.msra.mxu0 %v2179
          %2536 = vmatprep.subr.bf16.mxu0 %v2178
          %2537 = vmatpush2.bf16.msra.mxu0 %v2177
          %2538 = vmatprep.subr.bf16.mxu0 %v2176
          %2539 = vmatpush2.bf16.msra.mxu0 %v2175
          %2540 = vmatprep.subr.bf16.mxu0 %v2174
          %2541 = vmatpush2.bf16.msra.mxu0 %v2173
          %2542 = vmatprep.subr.bf16.mxu0 %v2172
          %2543 = vmatpush2.bf16.msra.mxu0 %v2171
          %2544 = vmatprep.subr.bf16.mxu0 %v2170
          %2545 = vmatpush2.bf16.msra.mxu0 %v2169
          %2546 = vmatprep.subr.bf16.mxu0 %v2168
          %2547 = vmatpush2.bf16.msra.mxu0 %v2167
          %2548 = vmatprep.subr.bf16.mxu0 %v2166
          %2549 = vmatpush2.bf16.msra.mxu0 %v2165
          %2550 = vmatprep.mubr.bf16.mxu0 %v1274
          %2551 = vmatmul.mubr.bf16.gmra.mxu0 %v1226
          %v2552 = vpop.f32.mrf.mxu0
          %v2553 = vadd.f32 %v2440, %v2552
          %v2554 = vpop.f32.mrf.mxu0
          %v2555 = vadd.f32 %v2442, %v2554
          %v2556 = vpop.f32.mrf.mxu0
          %v2557 = vadd.f32 %v2444, %v2556
          %v2558 = vpop.f32.mrf.mxu0
          %v2559 = vadd.f32 %v2446, %v2558
          %2560 = vmatprep.mubr.bf16.mxu0 %v1275
          %2561 = vmatmul.mubr.bf16.gmra.mxu0 %v1227
          %v2562 = vpop.f32.mrf.mxu0
          %v2563 = vadd.f32 %v2450, %v2562
          %v2564 = vpop.f32.mrf.mxu0
          %v2565 = vadd.f32 %v2452, %v2564
          %v2566 = vpop.f32.mrf.mxu0
          %v2567 = vadd.f32 %v2454, %v2566
          %v2568 = vpop.f32.mrf.mxu0
          %v2569 = vadd.f32 %v2456, %v2568
          %2570 = vmatprep.mubr.bf16.mxu0 %v1276
          %2571 = vmatmul.mubr.bf16.gmra.mxu0 %v1228
          %v2572 = vpop.f32.mrf.mxu0
          %v2573 = vadd.f32 %v2460, %v2572
          %v2574 = vpop.f32.mrf.mxu0
          %v2575 = vadd.f32 %v2462, %v2574
          %v2576 = vpop.f32.mrf.mxu0
          %v2577 = vadd.f32 %v2464, %v2576
          %v2578 = vpop.f32.mrf.mxu0
          %v2579 = vadd.f32 %v2466, %v2578
          %2580 = vmatprep.mubr.bf16.mxu0 %v1277
          %2581 = vmatmul.mubr.bf16.gmra.mxu0 %v1229
          %v2582 = vpop.f32.mrf.mxu0
          %v2583 = vadd.f32 %v2470, %v2582
          %v2584 = vpop.f32.mrf.mxu0
          %v2585 = vadd.f32 %v2472, %v2584
          %v2586 = vpop.f32.mrf.mxu0
          %v2587 = vadd.f32 %v2474, %v2586
          %v2588 = vpop.f32.mrf.mxu0
          %v2589 = vadd.f32 %v2476, %v2588
          %2590 = vmatprep.mubr.bf16.mxu0 %v1278
          %2591 = vmatmul.mubr.bf16.gmra.mxu0 %v1230
          %v2592 = vpop.f32.mrf.mxu0
          %v2593 = vadd.f32 %v2480, %v2592
          %v2594 = vpop.f32.mrf.mxu0
          %v2595 = vadd.f32 %v2482, %v2594
          %v2596 = vpop.f32.mrf.mxu0
          %v2597 = vadd.f32 %v2484, %v2596
          %v2598 = vpop.f32.mrf.mxu0
          %v2599 = vadd.f32 %v2486, %v2598
          %2600 = vmatprep.mubr.bf16.mxu0 %v1279
          %2601 = vmatmul.mubr.bf16.gmra.mxu0 %v1231
          %v2602 = vpop.f32.mrf.mxu0
          %v2603 = vadd.f32 %v2490, %v2602
          %v2604 = vpop.f32.mrf.mxu0
          %v2605 = vadd.f32 %v2492, %v2604
          %v2606 = vpop.f32.mrf.mxu0
          %v2607 = vadd.f32 %v2494, %v2606
          %v2608 = vpop.f32.mrf.mxu0
          %v2609 = vadd.f32 %v2496, %v2608
          %2610 = vmatprep.mubr.bf16.mxu0 %v1280
          %2611 = vmatmul.mubr.bf16.gmra.mxu0 %v1232
          %v2612 = vpop.f32.mrf.mxu0
          %v2613 = vadd.f32 %v2500, %v2612
          %v2614 = vpop.f32.mrf.mxu0
          %v2615 = vadd.f32 %v2502, %v2614
          %v2616 = vpop.f32.mrf.mxu0
          %v2617 = vadd.f32 %v2504, %v2616
          %v2618 = vpop.f32.mrf.mxu0
          %v2619 = vadd.f32 %v2506, %v2618
          %2620 = vmatprep.mubr.bf16.mxu0 %v1281
          %2621 = vmatmul.mubr.bf16.gmra.mxu0 %v1233
          %v2622 = vpop.f32.mrf.mxu0
          %v2623 = vadd.f32 %v2510, %v2622
          %v2624 = vpop.f32.mrf.mxu0
          %v2625 = vadd.f32 %v2512, %v2624
          %v2626 = vpop.f32.mrf.mxu0
          %v2627 = vadd.f32 %v2514, %v2626
          %v2628 = vpop.f32.mrf.mxu0
          %v2629 = vadd.f32 %v2516, %v2628
          %2630 = vdwg.mxu0
          %2631 = vmatprep.subr.bf16.mxu0 %v2196
          %2632 = vmatpush1.bf16.msra.mxu0 %v2195
          %2633 = vmatprep.subr.bf16.mxu0 %v2194
          %2634 = vmatpush1.bf16.msra.mxu0 %v2193
          %2635 = vmatprep.subr.bf16.mxu0 %v2192
          %2636 = vmatpush1.bf16.msra.mxu0 %v2191
          %2637 = vmatprep.subr.bf16.mxu0 %v2190
          %2638 = vmatpush1.bf16.msra.mxu0 %v2189
          %2639 = vmatprep.subr.bf16.mxu0 %v2188
          %2640 = vmatpush1.bf16.msra.mxu0 %v2187
          %2641 = vmatprep.subr.bf16.mxu0 %v2186
          %2642 = vmatpush1.bf16.msra.mxu0 %v2185
          %2643 = vmatprep.subr.bf16.mxu0 %v2184
          %2644 = vmatpush1.bf16.msra.mxu0 %v2183
          %2645 = vmatprep.subr.bf16.mxu0 %v2182
          %2646 = vmatpush1.bf16.msra.mxu0 %v2181
          %2647 = vmatprep.subr.bf16.mxu0 %v2212
          %2648 = vmatpush2.bf16.msra.mxu0 %v2211
          %2649 = vmatprep.subr.bf16.mxu0 %v2210
          %2650 = vmatpush2.bf16.msra.mxu0 %v2209
          %2651 = vmatprep.subr.bf16.mxu0 %v2208
          %2652 = vmatpush2.bf16.msra.mxu0 %v2207
          %2653 = vmatprep.subr.bf16.mxu0 %v2206
          %2654 = vmatpush2.bf16.msra.mxu0 %v2205
          %2655 = vmatprep.subr.bf16.mxu0 %v2204
          %2656 = vmatpush2.bf16.msra.mxu0 %v2203
          %2657 = vmatprep.subr.bf16.mxu0 %v2202
          %2658 = vmatpush2.bf16.msra.mxu0 %v2201
          %2659 = vmatprep.subr.bf16.mxu0 %v2200
          %2660 = vmatpush2.bf16.msra.mxu0 %v2199
          %2661 = vmatprep.subr.bf16.mxu0 %v2198
          %2662 = vmatpush2.bf16.msra.mxu0 %v2197
          %2663 = vmatprep.mubr.bf16.mxu0 %v1370
          %2664 = vmatmul.mubr.bf16.gmra.mxu0 %v1322
          %v2665 = vpop.f32.mrf.mxu0
          %v2666 = vadd.f32 %v2553, %v2665
          %v2667 = vpop.f32.mrf.mxu0
          %v2668 = vadd.f32 %v2555, %v2667
          %v2669 = vpop.f32.mrf.mxu0
          %v2670 = vadd.f32 %v2557, %v2669
          %v2671 = vpop.f32.mrf.mxu0
          %v2672 = vadd.f32 %v2559, %v2671
          %2673 = vmatprep.mubr.bf16.mxu0 %v1371
          %2674 = vmatmul.mubr.bf16.gmra.mxu0 %v1323
          %v2675 = vpop.f32.mrf.mxu0
          %v2676 = vadd.f32 %v2563, %v2675
          %v2677 = vpop.f32.mrf.mxu0
          %v2678 = vadd.f32 %v2565, %v2677
          %v2679 = vpop.f32.mrf.mxu0
          %v2680 = vadd.f32 %v2567, %v2679
          %v2681 = vpop.f32.mrf.mxu0
          %v2682 = vadd.f32 %v2569, %v2681
          %2683 = vmatprep.mubr.bf16.mxu0 %v1372
          %2684 = vmatmul.mubr.bf16.gmra.mxu0 %v1324
          %v2685 = vpop.f32.mrf.mxu0
          %v2686 = vadd.f32 %v2573, %v2685
          %v2687 = vpop.f32.mrf.mxu0
          %v2688 = vadd.f32 %v2575, %v2687
          %v2689 = vpop.f32.mrf.mxu0
          %v2690 = vadd.f32 %v2577, %v2689
          %v2691 = vpop.f32.mrf.mxu0
          %v2692 = vadd.f32 %v2579, %v2691
          %2693 = vmatprep.mubr.bf16.mxu0 %v1373
          %2694 = vmatmul.mubr.bf16.gmra.mxu0 %v1325
          %v2695 = vpop.f32.mrf.mxu0
          %v2696 = vadd.f32 %v2583, %v2695
          %v2697 = vpop.f32.mrf.mxu0
          %v2698 = vadd.f32 %v2585, %v2697
          %v2699 = vpop.f32.mrf.mxu0
          %v2700 = vadd.f32 %v2587, %v2699
          %v2701 = vpop.f32.mrf.mxu0
          %v2702 = vadd.f32 %v2589, %v2701
          %2703 = vmatprep.mubr.bf16.mxu0 %v1374
          %2704 = vmatmul.mubr.bf16.gmra.mxu0 %v1326
          %v2705 = vpop.f32.mrf.mxu0
          %v2706 = vadd.f32 %v2593, %v2705
          %v2707 = vpop.f32.mrf.mxu0
          %v2708 = vadd.f32 %v2595, %v2707
          %v2709 = vpop.f32.mrf.mxu0
          %v2710 = vadd.f32 %v2597, %v2709
          %v2711 = vpop.f32.mrf.mxu0
          %v2712 = vadd.f32 %v2599, %v2711
          %2713 = vmatprep.mubr.bf16.mxu0 %v1375
          %2714 = vmatmul.mubr.bf16.gmra.mxu0 %v1327
          %v2715 = vpop.f32.mrf.mxu0
          %v2716 = vadd.f32 %v2603, %v2715
          %v2717 = vpop.f32.mrf.mxu0
          %v2718 = vadd.f32 %v2605, %v2717
          %v2719 = vpop.f32.mrf.mxu0
          %v2720 = vadd.f32 %v2607, %v2719
          %v2721 = vpop.f32.mrf.mxu0
          %v2722 = vadd.f32 %v2609, %v2721
          %2723 = vmatprep.mubr.bf16.mxu0 %v1376
          %2724 = vmatmul.mubr.bf16.gmra.mxu0 %v1328
          %v2725 = vpop.f32.mrf.mxu0
          %v2726 = vadd.f32 %v2613, %v2725
          %v2727 = vpop.f32.mrf.mxu0
          %v2728 = vadd.f32 %v2615, %v2727
          %v2729 = vpop.f32.mrf.mxu0
          %v2730 = vadd.f32 %v2617, %v2729
          %v2731 = vpop.f32.mrf.mxu0
          %v2732 = vadd.f32 %v2619, %v2731
          %2733 = vmatprep.mubr.bf16.mxu0 %v1377
          %2734 = vmatmul.mubr.bf16.gmra.mxu0 %v1329
          %v2735 = vpop.f32.mrf.mxu0
          %v2736 = vadd.f32 %v2623, %v2735
          %v2737 = vpop.f32.mrf.mxu0
          %v2738 = vadd.f32 %v2625, %v2737
          %v2739 = vpop.f32.mrf.mxu0
          %v2740 = vadd.f32 %v2627, %v2739
          %v2741 = vpop.f32.mrf.mxu0
          %v2742 = vadd.f32 %v2629, %v2741
          %2743 = vdwg.mxu0
          %2744 = vmatprep.subr.bf16.mxu0 %v2228
          %2745 = vmatpush1.bf16.msra.mxu0 %v2227
          %2746 = vmatprep.subr.bf16.mxu0 %v2226
          %2747 = vmatpush1.bf16.msra.mxu0 %v2225
          %2748 = vmatprep.subr.bf16.mxu0 %v2224
          %2749 = vmatpush1.bf16.msra.mxu0 %v2223
          %2750 = vmatprep.subr.bf16.mxu0 %v2222
          %2751 = vmatpush1.bf16.msra.mxu0 %v2221
          %2752 = vmatprep.subr.bf16.mxu0 %v2220
          %2753 = vmatpush1.bf16.msra.mxu0 %v2219
          %2754 = vmatprep.subr.bf16.mxu0 %v2218
          %2755 = vmatpush1.bf16.msra.mxu0 %v2217
          %2756 = vmatprep.subr.bf16.mxu0 %v2216
          %2757 = vmatpush1.bf16.msra.mxu0 %v2215
          %2758 = vmatprep.subr.bf16.mxu0 %v2214
          %2759 = vmatpush1.bf16.msra.mxu0 %v2213
          %2760 = vmatprep.subr.bf16.mxu0 %v2244
          %2761 = vmatpush2.bf16.msra.mxu0 %v2243
          %2762 = vmatprep.subr.bf16.mxu0 %v2242
          %2763 = vmatpush2.bf16.msra.mxu0 %v2241
          %2764 = vmatprep.subr.bf16.mxu0 %v2240
          %2765 = vmatpush2.bf16.msra.mxu0 %v2239
          %2766 = vmatprep.subr.bf16.mxu0 %v2238
          %2767 = vmatpush2.bf16.msra.mxu0 %v2237
          %2768 = vmatprep.subr.bf16.mxu0 %v2236
          %2769 = vmatpush2.bf16.msra.mxu0 %v2235
          %2770 = vmatprep.subr.bf16.mxu0 %v2234
          %2771 = vmatpush2.bf16.msra.mxu0 %v2233
          %2772 = vmatprep.subr.bf16.mxu0 %v2232
          %2773 = vmatpush2.bf16.msra.mxu0 %v2231
          %2774 = vmatprep.subr.bf16.mxu0 %v2230
          %2775 = vmatpush2.bf16.msra.mxu0 %v2229
          %2776 = vmatprep.mubr.bf16.mxu0 %v1466
          %2777 = vmatmul.mubr.bf16.gmra.mxu0 %v1418
          %v2778 = vpop.f32.mrf.mxu0
          %v2779 = vadd.f32 %v2666, %v2778
          %v2780 = vpop.f32.mrf.mxu0
          %v2781 = vadd.f32 %v2668, %v2780
          %v2782 = vpop.f32.mrf.mxu0
          %v2783 = vadd.f32 %v2670, %v2782
          %v2784 = vpop.f32.mrf.mxu0
          %v2785 = vadd.f32 %v2672, %v2784
          %2786 = vmatprep.mubr.bf16.mxu0 %v1467
          %2787 = vmatmul.mubr.bf16.gmra.mxu0 %v1419
          %v2788 = vpop.f32.mrf.mxu0
          %v2789 = vadd.f32 %v2676, %v2788
          %v2790 = vpop.f32.mrf.mxu0
          %v2791 = vadd.f32 %v2678, %v2790
          %v2792 = vpop.f32.mrf.mxu0
          %v2793 = vadd.f32 %v2680, %v2792
          %v2794 = vpop.f32.mrf.mxu0
          %v2795 = vadd.f32 %v2682, %v2794
          %2796 = vmatprep.mubr.bf16.mxu0 %v1468
          %2797 = vmatmul.mubr.bf16.gmra.mxu0 %v1420
          %v2798 = vpop.f32.mrf.mxu0
          %v2799 = vadd.f32 %v2686, %v2798
          %v2800 = vpop.f32.mrf.mxu0
          %v2801 = vadd.f32 %v2688, %v2800
          %v2802 = vpop.f32.mrf.mxu0
          %v2803 = vadd.f32 %v2690, %v2802
          %v2804 = vpop.f32.mrf.mxu0
          %v2805 = vadd.f32 %v2692, %v2804
          %2806 = vmatprep.mubr.bf16.mxu0 %v1469
          %2807 = vmatmul.mubr.bf16.gmra.mxu0 %v1421
          %v2808 = vpop.f32.mrf.mxu0
          %v2809 = vadd.f32 %v2696, %v2808
          %v2810 = vpop.f32.mrf.mxu0
          %v2811 = vadd.f32 %v2698, %v2810
          %v2812 = vpop.f32.mrf.mxu0
          %v2813 = vadd.f32 %v2700, %v2812
          %v2814 = vpop.f32.mrf.mxu0
          %v2815 = vadd.f32 %v2702, %v2814
          %2816 = vmatprep.mubr.bf16.mxu0 %v1470
          %2817 = vmatmul.mubr.bf16.gmra.mxu0 %v1422
          %v2818 = vpop.f32.mrf.mxu0
          %v2819 = vadd.f32 %v2706, %v2818
          %v2820 = vpop.f32.mrf.mxu0
          %v2821 = vadd.f32 %v2708, %v2820
          %v2822 = vpop.f32.mrf.mxu0
          %v2823 = vadd.f32 %v2710, %v2822
          %v2824 = vpop.f32.mrf.mxu0
          %v2825 = vadd.f32 %v2712, %v2824
          %2826 = vmatprep.mubr.bf16.mxu0 %v1471
          %2827 = vmatmul.mubr.bf16.gmra.mxu0 %v1423
          %v2828 = vpop.f32.mrf.mxu0
          %v2829 = vadd.f32 %v2716, %v2828
          %v2830 = vpop.f32.mrf.mxu0
          %v2831 = vadd.f32 %v2718, %v2830
          %v2832 = vpop.f32.mrf.mxu0
          %v2833 = vadd.f32 %v2720, %v2832
          %v2834 = vpop.f32.mrf.mxu0
          %v2835 = vadd.f32 %v2722, %v2834
          %2836 = vmatprep.mubr.bf16.mxu0 %v1472
          %2837 = vmatmul.mubr.bf16.gmra.mxu0 %v1424
          %v2838 = vpop.f32.mrf.mxu0
          %v2839 = vadd.f32 %v2726, %v2838
          %v2840 = vpop.f32.mrf.mxu0
          %v2841 = vadd.f32 %v2728, %v2840
          %v2842 = vpop.f32.mrf.mxu0
          %v2843 = vadd.f32 %v2730, %v2842
          %v2844 = vpop.f32.mrf.mxu0
          %v2845 = vadd.f32 %v2732, %v2844
          %2846 = vmatprep.mubr.bf16.mxu0 %v1473
          %2847 = vmatmul.mubr.bf16.gmra.mxu0 %v1425
          %v2848 = vpop.f32.mrf.mxu0
          %v2849 = vadd.f32 %v2736, %v2848
          %v2850 = vpop.f32.mrf.mxu0
          %v2851 = vadd.f32 %v2738, %v2850
          %v2852 = vpop.f32.mrf.mxu0
          %v2853 = vadd.f32 %v2740, %v2852
          %v2854 = vpop.f32.mrf.mxu0
          %v2855 = vadd.f32 %v2742, %v2854
          %2856 = vdwg.mxu0
          %2857 = vmatprep.subr.bf16.mxu0 %v2260
          %2858 = vmatpush1.bf16.msra.mxu0 %v2259
          %2859 = vmatprep.subr.bf16.mxu0 %v2258
          %2860 = vmatpush1.bf16.msra.mxu0 %v2257
          %2861 = vmatprep.subr.bf16.mxu0 %v2256
          %2862 = vmatpush1.bf16.msra.mxu0 %v2255
          %2863 = vmatprep.subr.bf16.mxu0 %v2254
          %2864 = vmatpush1.bf16.msra.mxu0 %v2253
          %2865 = vmatprep.subr.bf16.mxu0 %v2252
          %2866 = vmatpush1.bf16.msra.mxu0 %v2251
          %2867 = vmatprep.subr.bf16.mxu0 %v2250
          %2868 = vmatpush1.bf16.msra.mxu0 %v2249
          %2869 = vmatprep.subr.bf16.mxu0 %v2248
          %2870 = vmatpush1.bf16.msra.mxu0 %v2247
          %2871 = vmatprep.subr.bf16.mxu0 %v2246
          %2872 = vmatpush1.bf16.msra.mxu0 %v2245
          %2873 = vmatprep.subr.bf16.mxu0 0
          %2874 = vmatpush2.bf16.msra.mxu0 0
          %2875 = vmatprep.subr.bf16.mxu0 0
          %2876 = vmatpush2.bf16.msra.mxu0 0
          %2877 = vmatprep.subr.bf16.mxu0 0
          %2878 = vmatpush2.bf16.msra.mxu0 0
          %2879 = vmatprep.subr.bf16.mxu0 0
          %2880 = vmatpush2.bf16.msra.mxu0 0
          %2881 = vmatprep.subr.bf16.mxu0 0
          %2882 = vmatpush2.bf16.msra.mxu0 0
          %2883 = vmatprep.subr.bf16.mxu0 0
          %2884 = vmatpush2.bf16.msra.mxu0 0
          %2885 = vmatprep.subr.bf16.mxu0 0
          %2886 = vmatpush2.bf16.msra.mxu0 0
          %2887 = vmatprep.subr.bf16.mxu0 0
          %2888 = vmatpush2.bf16.msra.mxu0 0
          %2889 = vmatprep.mubr.bf16.mxu0 0
          %2890 = vmatmul.mubr.bf16.gmra.mxu0 %v1514
          %v2891 = vpop.f32.mrf.mxu0
          %v2892 = vadd.f32 %v2779, %v2891
          %v2893 = vpop.f32.mrf.mxu0
          %v2894 = vadd.f32 %v2781, %v2893
          %v2895 = vpop.f32.mrf.mxu0
          %v2896 = vadd.f32 %v2783, %v2895
          %v2897 = vpop.f32.mrf.mxu0
          %v2898 = vadd.f32 %v2785, %v2897
          %2899 = vmatprep.mubr.bf16.mxu0 0
          %2900 = vmatmul.mubr.bf16.gmra.mxu0 %v1515
          %v2901 = vpop.f32.mrf.mxu0
          %v2902 = vadd.f32 %v2789, %v2901
          %v2903 = vpop.f32.mrf.mxu0
          %v2904 = vadd.f32 %v2791, %v2903
          %v2905 = vpop.f32.mrf.mxu0
          %v2906 = vadd.f32 %v2793, %v2905
          %v2907 = vpop.f32.mrf.mxu0
          %v2908 = vadd.f32 %v2795, %v2907
          %2909 = vmatprep.mubr.bf16.mxu0 0
          %2910 = vmatmul.mubr.bf16.gmra.mxu0 %v1516
          %v2911 = vpop.f32.mrf.mxu0
          %v2912 = vadd.f32 %v2799, %v2911
          %v2913 = vpop.f32.mrf.mxu0
          %v2914 = vadd.f32 %v2801, %v2913
          %v2915 = vpop.f32.mrf.mxu0
          %v2916 = vadd.f32 %v2803, %v2915
          %v2917 = vpop.f32.mrf.mxu0
          %v2918 = vadd.f32 %v2805, %v2917
          %2919 = vmatprep.mubr.bf16.mxu0 0
          %2920 = vmatmul.mubr.bf16.gmra.mxu0 %v1517
          %v2921 = vpop.f32.mrf.mxu0
          %v2922 = vadd.f32 %v2809, %v2921
          %v2923 = vpop.f32.mrf.mxu0
          %v2924 = vadd.f32 %v2811, %v2923
          %v2925 = vpop.f32.mrf.mxu0
          %v2926 = vadd.f32 %v2813, %v2925
          %v2927 = vpop.f32.mrf.mxu0
          %v2928 = vadd.f32 %v2815, %v2927
          %2929 = vmatprep.mubr.bf16.mxu0 0
          %2930 = vmatmul.mubr.bf16.gmra.mxu0 %v1518
          %v2931 = vpop.f32.mrf.mxu0
          %v2932 = vadd.f32 %v2819, %v2931
          %v2933 = vpop.f32.mrf.mxu0
          %v2934 = vadd.f32 %v2821, %v2933
          %v2935 = vpop.f32.mrf.mxu0
          %v2936 = vadd.f32 %v2823, %v2935
          %v2937 = vpop.f32.mrf.mxu0
          %v2938 = vadd.f32 %v2825, %v2937
          %2939 = vmatprep.mubr.bf16.mxu0 0
          %2940 = vmatmul.mubr.bf16.gmra.mxu0 %v1519
          %v2941 = vpop.f32.mrf.mxu0
          %v2942 = vadd.f32 %v2829, %v2941
          %v2943 = vpop.f32.mrf.mxu0
          %v2944 = vadd.f32 %v2831, %v2943
          %v2945 = vpop.f32.mrf.mxu0
          %v2946 = vadd.f32 %v2833, %v2945
          %v2947 = vpop.f32.mrf.mxu0
          %v2948 = vadd.f32 %v2835, %v2947
          %2949 = vmatprep.mubr.bf16.mxu0 0
          %2950 = vmatmul.mubr.bf16.gmra.mxu0 %v1520
          %v2951 = vpop.f32.mrf.mxu0
          %v2952 = vadd.f32 %v2839, %v2951
          %v2953 = vpop.f32.mrf.mxu0
          %v2954 = vadd.f32 %v2841, %v2953
          %v2955 = vpop.f32.mrf.mxu0
          %v2956 = vadd.f32 %v2843, %v2955
          %v2957 = vpop.f32.mrf.mxu0
          %v2958 = vadd.f32 %v2845, %v2957
          %2959 = vmatprep.mubr.bf16.mxu0 0
          %2960 = vmatmul.mubr.bf16.gmra.mxu0 %v1521
          %v2961 = vpop.f32.mrf.mxu0
          %v2962 = vadd.f32 %v2849, %v2961
          %v2963 = vpop.f32.mrf.mxu0
          %v2964 = vadd.f32 %v2851, %v2963
          %v2965 = vpop.f32.mrf.mxu0
          %v2966 = vadd.f32 %v2853, %v2965
          %v2967 = vpop.f32.mrf.mxu0
          %v2968 = vadd.f32 %v2855, %v2967
          %2969 = vdwg.mxu0
          %v2970 = vmax.f32 %v2892, 0.0
          %v2971 = vmax.f32 %v2894, 0.0
          %v2972 = vmax.f32 %v2896, 0.0
          %v2973 = vmax.f32 %v2898, 0.0
          %v2974 = vmax.f32 %v2902, 0.0
          %v2975 = vmax.f32 %v2904, 0.0
          %v2976 = vmax.f32 %v2906, 0.0
          %v2977 = vmax.f32 %v2908, 0.0
          %v2978 = vmax.f32 %v2912, 0.0
          %v2979 = vmax.f32 %v2914, 0.0
          %v2980 = vmax.f32 %v2916, 0.0
          %v2981 = vmax.f32 %v2918, 0.0
          %v2982 = vmax.f32 %v2922, 0.0
          %v2983 = vmax.f32 %v2924, 0.0
          %v2984 = vmax.f32 %v2926, 0.0
          %v2985 = vmax.f32 %v2928, 0.0
          %v2986 = vmax.f32 %v2932, 0.0
          %v2987 = vmax.f32 %v2934, 0.0
          %v2988 = vmax.f32 %v2936, 0.0
          %v2989 = vmax.f32 %v2938, 0.0
          %v2990 = vmax.f32 %v2942, 0.0
          %v2991 = vmax.f32 %v2944, 0.0
          %v2992 = vmax.f32 %v2946, 0.0
          %v2993 = vmax.f32 %v2948, 0.0
          %v2994 = vmax.f32 %v2952, 0.0
          %v2995 = vmax.f32 %v2954, 0.0
          %v2996 = vmax.f32 %v2956, 0.0
          %v2997 = vmax.f32 %v2958, 0.0
          %v2998 = vmax.f32 %v2962, 0.0
          %v2999 = vmax.f32 %v2964, 0.0
          %v3000 = vmax.f32 %v2966, 0.0
          %v3001 = vmax.f32 %v2968, 0.0
          %v3002 = vpack.c.bf16 %v2972, %v2970
          %v3003 = vpack.c.bf16 %v2973, %v2971
          %v3004 = vpack.c.bf16 %v2976, %v2974
          %v3005 = vpack.c.bf16 %v2977, %v2975
          %v3006 = vpack.c.bf16 %v2980, %v2978
          %v3007 = vpack.c.bf16 %v2981, %v2979
          %v3008 = vpack.c.bf16 %v2984, %v2982
          %v3009 = vpack.c.bf16 %v2985, %v2983
          %v3010 = vpack.c.bf16 %v2988, %v2986
          %v3011 = vpack.c.bf16 %v2989, %v2987
          %v3012 = vpack.c.bf16 %v2992, %v2990
          %v3013 = vpack.c.bf16 %v2993, %v2991
          %v3014 = vpack.c.bf16 %v2996, %v2994
          %v3015 = vpack.c.bf16 %v2997, %v2995
          %v3016 = vpack.c.bf16 %v3000, %v2998
          %v3017 = vpack.c.bf16 %v3001, %v2999
          %v3019 = vshrl.u32 %v3002, 16
          %v3021 = vrot.slane %v3019, 7
          %v3022 = vshll.u32 %v3002, 16
          %v3024 = vor.u32 %v3021, %v3022
          %v3026 = vshrl.u32 %v3003, 16
          %v3028 = vrot.slane %v3026, 7
          %v3029 = vshll.u32 %v3003, 16
          %v3031 = vor.u32 %v3028, %v3029
          %v3033 = vshrl.u32 %v3004, 16
          %v3035 = vrot.slane %v3033, 7
          %v3036 = vshll.u32 %v3004, 16
          %v3038 = vor.u32 %v3035, %v3036
          %v3040 = vshrl.u32 %v3005, 16
          %v3042 = vrot.slane %v3040, 7
          %v3043 = vshll.u32 %v3005, 16
          %v3045 = vor.u32 %v3042, %v3043
          %v3047 = vshrl.u32 %v3006, 16
          %v3049 = vrot.slane %v3047, 7
          %v3050 = vshll.u32 %v3006, 16
          %v3052 = vor.u32 %v3049, %v3050
          %v3054 = vshrl.u32 %v3007, 16
          %v3056 = vrot.slane %v3054, 7
          %v3057 = vshll.u32 %v3007, 16
          %v3059 = vor.u32 %v3056, %v3057
          %v3061 = vshrl.u32 %v3008, 16
          %v3063 = vrot.slane %v3061, 7
          %v3064 = vshll.u32 %v3008, 16
          %v3066 = vor.u32 %v3063, %v3064
          %v3068 = vshrl.u32 %v3009, 16
          %v3070 = vrot.slane %v3068, 7
          %v3071 = vshll.u32 %v3009, 16
          %v3073 = vor.u32 %v3070, %v3071
          %v3075 = vshrl.u32 %v3010, 16
          %v3077 = vrot.slane %v3075, 7
          %v3078 = vshll.u32 %v3010, 16
          %v3080 = vor.u32 %v3077, %v3078
          %v3082 = vshrl.u32 %v3011, 16
          %v3084 = vrot.slane %v3082, 7
          %v3085 = vshll.u32 %v3011, 16
          %v3087 = vor.u32 %v3084, %v3085
          %v3089 = vshrl.u32 %v3012, 16
          %v3091 = vrot.slane %v3089, 7
          %v3092 = vshll.u32 %v3012, 16
          %v3094 = vor.u32 %v3091, %v3092
          %v3096 = vshrl.u32 %v3013, 16
          %v3098 = vrot.slane %v3096, 7
          %v3099 = vshll.u32 %v3013, 16
          %v3101 = vor.u32 %v3098, %v3099
          %v3103 = vshrl.u32 %v3014, 16
          %v3105 = vrot.slane %v3103, 7
          %v3106 = vshll.u32 %v3014, 16
          %v3108 = vor.u32 %v3105, %v3106
          %v3110 = vshrl.u32 %v3015, 16
          %v3112 = vrot.slane %v3110, 7
          %v3113 = vshll.u32 %v3015, 16
          %v3115 = vor.u32 %v3112, %v3113
          %v3117 = vshrl.u32 %v3016, 16
          %v3119 = vrot.slane %v3117, 7
          %v3120 = vshll.u32 %v3016, 16
          %v3122 = vor.u32 %v3119, %v3120
          %v3124 = vshrl.u32 %v3017, 16
          %v3126 = vrot.slane %v3124, 7
          %v3127 = vshll.u32 %v3017, 16
          %v3129 = vor.u32 %v3126, %v3127
          %vm3146 = vcmask 1040384
          %vm3147 = vsmask.f32 256
          %vm3148 = vmand %vm3146, %vm3147
          %v3149 = vsel %vm3148, 0, %v3024
          %v3150 = vsel %vm3148, 0, %v3031
          %v3151 = vsel %vm3148, 0, %v3038
          %v3152 = vsel %vm3148, 0, %v3045
          %v3153 = vsel %vm3148, 0, %v3052
          %v3154 = vsel %vm3148, 0, %v3059
          %v3155 = vsel %vm3148, 0, %v3066
          %v3156 = vsel %vm3148, 0, %v3073
          %v3157 = vsel %vm3148, 0, %v3080
          %v3158 = vsel %vm3148, 0, %v3087
          %v3159 = vsel %vm3148, 0, %v3094
          %v3160 = vsel %vm3148, 0, %v3101
          %v3161 = vsel %vm3148, 0, %v3108
          %v3162 = vsel %vm3148, 0, %v3115
          %v3163 = vsel %vm3148, 0, %v3122
          %v3164 = vsel %vm3148, 0, %v3129
          %v3165 = vrot.slane %v3022, 1
          %v3166 = vor.u32 %v3019, %v3165
          %v3167 = vrot.slane %v3029, 1
          %v3168 = vor.u32 %v3026, %v3167
          %v3169 = vrot.slane %v3036, 1
          %v3170 = vor.u32 %v3033, %v3169
          %v3171 = vrot.slane %v3043, 1
          %v3172 = vor.u32 %v3040, %v3171
          %v3173 = vrot.slane %v3050, 1
          %v3174 = vor.u32 %v3047, %v3173
          %v3175 = vrot.slane %v3057, 1
          %v3176 = vor.u32 %v3054, %v3175
          %v3177 = vrot.slane %v3064, 1
          %v3178 = vor.u32 %v3061, %v3177
          %v3179 = vrot.slane %v3071, 1
          %v3180 = vor.u32 %v3068, %v3179
          %v3181 = vrot.slane %v3078, 1
          %v3182 = vor.u32 %v3075, %v3181
          %v3183 = vrot.slane %v3085, 1
          %v3184 = vor.u32 %v3082, %v3183
          %v3185 = vrot.slane %v3092, 1
          %v3186 = vor.u32 %v3089, %v3185
          %v3187 = vrot.slane %v3099, 1
          %v3188 = vor.u32 %v3096, %v3187
          %v3189 = vrot.slane %v3106, 1
          %v3190 = vor.u32 %v3103, %v3189
          %v3191 = vrot.slane %v3113, 1
          %v3192 = vor.u32 %v3110, %v3191
          %v3193 = vrot.slane %v3120, 1
          %v3194 = vor.u32 %v3117, %v3193
          %v3195 = vrot.slane %v3127, 1
          %v3196 = vor.u32 %v3124, %v3195
          %vm3213 = vcmask 1047552
          %vm3214 = vsmask.f32 7424
          %vm3215 = vmand %vm3213, %vm3214
          %v3216 = vsel %vm3215, %v3166, 0
          %v3217 = vsel %vm3215, %v3168, 0
          %v3218 = vsel %vm3215, %v3170, 0
          %v3219 = vsel %vm3215, %v3172, 0
          %v3220 = vsel %vm3215, %v3174, 0
          %v3221 = vsel %vm3215, %v3176, 0
          %v3222 = vsel %vm3215, %v3178, 0
          %v3223 = vsel %vm3215, %v3180, 0
          %v3224 = vsel %vm3215, %v3182, 0
          %v3225 = vsel %vm3215, %v3184, 0
          %v3226 = vsel %vm3215, %v3186, 0
          %v3227 = vsel %vm3215, %v3188, 0
          %v3228 = vsel %vm3215, %v3190, 0
          %v3229 = vsel %vm3215, %v3192, 0
          %v3230 = vsel %vm3215, %v3194, 0
          %v3231 = vsel %vm3215, %v3196, 0
          %v3248 = vunpack.c.l.b16 %v3149
          %v3249 = vunpack.c.l.b16 %v3150
          %v3250 = vunpack.c.h.b16 %v3149
          %v3251 = vunpack.c.h.b16 %v3150
          %v3252 = vunpack.c.l.b16 %v3151
          %v3253 = vunpack.c.l.b16 %v3152
          %v3254 = vunpack.c.h.b16 %v3151
          %v3255 = vunpack.c.h.b16 %v3152
          %v3256 = vunpack.c.l.b16 %v3153
          %v3257 = vunpack.c.l.b16 %v3154
          %v3258 = vunpack.c.h.b16 %v3153
          %v3259 = vunpack.c.h.b16 %v3154
          %v3260 = vunpack.c.l.b16 %v3155
          %v3261 = vunpack.c.l.b16 %v3156
          %v3262 = vunpack.c.h.b16 %v3155
          %v3263 = vunpack.c.h.b16 %v3156
          %v3264 = vunpack.c.l.b16 %v3157
          %v3265 = vunpack.c.l.b16 %v3158
          %v3266 = vunpack.c.h.b16 %v3157
          %v3267 = vunpack.c.h.b16 %v3158
          %v3268 = vunpack.c.l.b16 %v3159
          %v3269 = vunpack.c.l.b16 %v3160
          %v3270 = vunpack.c.h.b16 %v3159
          %v3271 = vunpack.c.h.b16 %v3160
          %v3272 = vunpack.c.l.b16 %v3161
          %v3273 = vunpack.c.l.b16 %v3162
          %v3274 = vunpack.c.h.b16 %v3161
          %v3275 = vunpack.c.h.b16 %v3162
          %v3276 = vunpack.c.l.b16 %v3163
          %v3277 = vunpack.c.l.b16 %v3164
          %v3278 = vunpack.c.h.b16 %v3163
          %v3279 = vunpack.c.h.b16 %v3164
          %v3280 = vpack.c.b16 %v3249, %v3248
          %v3281 = vpack.c.b16 %v3251, %v3250
          %v3282 = vpack.c.b16 %v3253, %v3252
          %v3283 = vpack.c.b16 %v3255, %v3254
          %v3284 = vpack.c.b16 %v3257, %v3256
          %v3285 = vpack.c.b16 %v3259, %v3258
          %v3286 = vpack.c.b16 %v3261, %v3260
          %v3287 = vpack.c.b16 %v3263, %v3262
          %v3288 = vpack.c.b16 %v3265, %v3264
          %v3289 = vpack.c.b16 %v3267, %v3266
          %v3290 = vpack.c.b16 %v3269, %v3268
          %v3291 = vpack.c.b16 %v3271, %v3270
          %v3292 = vpack.c.b16 %v3273, %v3272
          %v3293 = vpack.c.b16 %v3275, %v3274
          %v3294 = vpack.c.b16 %v3277, %v3276
          %v3295 = vpack.c.b16 %v3279, %v3278
          %s3312 = smul.u32 %s982, 4
          %s3313 = smul.addr %s3312, 4
          %s3314 = scalar_lea.vmem [#allocation3], %s3313
          %3315 = vst [vmem:[%s3314] sm:$0xff] %v3280
          %3316 = vst [vmem:[%s3314 + $0x8] sm:$0xff] %v3281
          %3317 = vst [vmem:[%s3314 + $0x10] sm:$0xff] %v3282
          %3318 = vst [vmem:[%s3314 + $0x18] sm:$0xff] %v3283
          %3319 = vst [vmem:[%s3314 + $0x20] sm:$0xff] %v3284
          %3320 = vst [vmem:[%s3314 + $0x28] sm:$0xff] %v3285
          %3321 = vst [vmem:[%s3314 + $0x30] sm:$0xff] %v3286
          %3322 = vst [vmem:[%s3314 + $0x38] sm:$0xff] %v3287
          %3323 = vst [vmem:[%s3314 + $0x40] sm:$0xff] %v3288
          %3324 = vst [vmem:[%s3314 + $0x48] sm:$0xff] %v3289
          %3325 = vst [vmem:[%s3314 + $0x50] sm:$0xff] %v3290
          %3326 = vst [vmem:[%s3314 + $0x58] sm:$0xff] %v3291
          %3327 = vst [vmem:[%s3314 + $0x60] sm:$0xff] %v3292
          %3328 = vst [vmem:[%s3314 + $0x68] sm:$0xff] %v3293
          %3329 = vst [vmem:[%s3314 + $0x70] sm:$0xff] %v3294
          %3330 = vst [vmem:[%s3314 + $0x78] sm:$0xff] %v3295
          %v3347 = vunpack.c.l.b16 %v3002
          %v3348 = vunpack.c.l.b16 %v3003
          %v3349 = vunpack.c.h.b16 %v3002
          %v3350 = vunpack.c.h.b16 %v3003
          %v3351 = vunpack.c.l.b16 %v3004
          %v3352 = vunpack.c.l.b16 %v3005
          %v3353 = vunpack.c.h.b16 %v3004
          %v3354 = vunpack.c.h.b16 %v3005
          %v3355 = vunpack.c.l.b16 %v3006
          %v3356 = vunpack.c.l.b16 %v3007
          %v3357 = vunpack.c.h.b16 %v3006
          %v3358 = vunpack.c.h.b16 %v3007
          %v3359 = vunpack.c.l.b16 %v3008
          %v3360 = vunpack.c.l.b16 %v3009
          %v3361 = vunpack.c.h.b16 %v3008
          %v3362 = vunpack.c.h.b16 %v3009
          %v3363 = vunpack.c.l.b16 %v3010
          %v3364 = vunpack.c.l.b16 %v3011
          %v3365 = vunpack.c.h.b16 %v3010
          %v3366 = vunpack.c.h.b16 %v3011
          %v3367 = vunpack.c.l.b16 %v3012
          %v3368 = vunpack.c.l.b16 %v3013
          %v3369 = vunpack.c.h.b16 %v3012
          %v3370 = vunpack.c.h.b16 %v3013
          %v3371 = vunpack.c.l.b16 %v3014
          %v3372 = vunpack.c.l.b16 %v3015
          %v3373 = vunpack.c.h.b16 %v3014
          %v3374 = vunpack.c.h.b16 %v3015
          %v3375 = vunpack.c.l.b16 %v3016
          %v3376 = vunpack.c.l.b16 %v3017
          %v3377 = vunpack.c.h.b16 %v3016
          %v3378 = vunpack.c.h.b16 %v3017
          %v3379 = vpack.c.b16 %v3348, %v3347
          %v3380 = vpack.c.b16 %v3350, %v3349
          %v3381 = vpack.c.b16 %v3352, %v3351
          %v3382 = vpack.c.b16 %v3354, %v3353
          %v3383 = vpack.c.b16 %v3356, %v3355
          %v3384 = vpack.c.b16 %v3358, %v3357
          %v3385 = vpack.c.b16 %v3360, %v3359
          %v3386 = vpack.c.b16 %v3362, %v3361
          %v3387 = vpack.c.b16 %v3364, %v3363
          %v3388 = vpack.c.b16 %v3366, %v3365
          %v3389 = vpack.c.b16 %v3368, %v3367
          %v3390 = vpack.c.b16 %v3370, %v3369
          %v3391 = vpack.c.b16 %v3372, %v3371
          %v3392 = vpack.c.b16 %v3374, %v3373
          %v3393 = vpack.c.b16 %v3376, %v3375
          %v3394 = vpack.c.b16 %v3378, %v3377
          %s3411 = sadd.s32 %s3312, 72
          %s3412 = smul.addr %s3411, 4
          %s3413 = scalar_lea.vmem [#allocation3], %s3412
          %3414 = vst [vmem:[%s3413] sm:$0xff] %v3379
          %3415 = vst [vmem:[%s3413 + $0x8] sm:$0xff] %v3380
          %3416 = vst [vmem:[%s3413 + $0x10] sm:$0xff] %v3381
          %3417 = vst [vmem:[%s3413 + $0x18] sm:$0xff] %v3382
          %3418 = vst [vmem:[%s3413 + $0x20] sm:$0xff] %v3383
          %3419 = vst [vmem:[%s3413 + $0x28] sm:$0xff] %v3384
          %3420 = vst [vmem:[%s3413 + $0x30] sm:$0xff] %v3385
          %3421 = vst [vmem:[%s3413 + $0x38] sm:$0xff] %v3386
          %3422 = vst [vmem:[%s3413 + $0x40] sm:$0xff] %v3387
          %3423 = vst [vmem:[%s3413 + $0x48] sm:$0xff] %v3388
          %3424 = vst [vmem:[%s3413 + $0x50] sm:$0xff] %v3389
          %3425 = vst [vmem:[%s3413 + $0x58] sm:$0xff] %v3390
          %3426 = vst [vmem:[%s3413 + $0x60] sm:$0xff] %v3391
          %3427 = vst [vmem:[%s3413 + $0x68] sm:$0xff] %v3392
          %3428 = vst [vmem:[%s3413 + $0x70] sm:$0xff] %v3393
          %3429 = vst [vmem:[%s3413 + $0x78] sm:$0xff] %v3394
          %v3446 = vunpack.c.l.b16 %v3216
          %v3447 = vunpack.c.l.b16 %v3217
          %v3448 = vunpack.c.h.b16 %v3216
          %v3449 = vunpack.c.h.b16 %v3217
          %v3450 = vunpack.c.l.b16 %v3218
          %v3451 = vunpack.c.l.b16 %v3219
          %v3452 = vunpack.c.h.b16 %v3218
          %v3453 = vunpack.c.h.b16 %v3219
          %v3454 = vunpack.c.l.b16 %v3220
          %v3455 = vunpack.c.l.b16 %v3221
          %v3456 = vunpack.c.h.b16 %v3220
          %v3457 = vunpack.c.h.b16 %v3221
          %v3458 = vunpack.c.l.b16 %v3222
          %v3459 = vunpack.c.l.b16 %v3223
          %v3460 = vunpack.c.h.b16 %v3222
          %v3461 = vunpack.c.h.b16 %v3223
          %v3462 = vunpack.c.l.b16 %v3224
          %v3463 = vunpack.c.l.b16 %v3225
          %v3464 = vunpack.c.h.b16 %v3224
          %v3465 = vunpack.c.h.b16 %v3225
          %v3466 = vunpack.c.l.b16 %v3226
          %v3467 = vunpack.c.l.b16 %v3227
          %v3468 = vunpack.c.h.b16 %v3226
          %v3469 = vunpack.c.h.b16 %v3227
          %v3470 = vunpack.c.l.b16 %v3228
          %v3471 = vunpack.c.l.b16 %v3229
          %v3472 = vunpack.c.h.b16 %v3228
          %v3473 = vunpack.c.h.b16 %v3229
          %v3474 = vunpack.c.l.b16 %v3230
          %v3475 = vunpack.c.l.b16 %v3231
          %v3476 = vunpack.c.h.b16 %v3230
          %v3477 = vunpack.c.h.b16 %v3231
          %v3478 = vpack.c.b16 %v3447, %v3446
          %v3479 = vpack.c.b16 %v3449, %v3448
          %v3480 = vpack.c.b16 %v3451, %v3450
          %v3481 = vpack.c.b16 %v3453, %v3452
          %v3482 = vpack.c.b16 %v3455, %v3454
          %v3483 = vpack.c.b16 %v3457, %v3456
          %v3484 = vpack.c.b16 %v3459, %v3458
          %v3485 = vpack.c.b16 %v3461, %v3460
          %v3486 = vpack.c.b16 %v3463, %v3462
          %v3487 = vpack.c.b16 %v3465, %v3464
          %v3488 = vpack.c.b16 %v3467, %v3466
          %v3489 = vpack.c.b16 %v3469, %v3468
          %v3490 = vpack.c.b16 %v3471, %v3470
          %v3491 = vpack.c.b16 %v3473, %v3472
          %v3492 = vpack.c.b16 %v3475, %v3474
          %v3493 = vpack.c.b16 %v3477, %v3476
          %s3510 = sadd.s32 %s3312, 144
          %s3511 = smul.addr %s3510, 4
          %s3512 = scalar_lea.vmem [#allocation3], %s3511
          %3513 = vst [vmem:[%s3512] sm:$0xff] %v3478
          %3514 = vst [vmem:[%s3512 + $0x8] sm:$0xff] %v3479
          %3515 = vst [vmem:[%s3512 + $0x10] sm:$0xff] %v3480
          %3516 = vst [vmem:[%s3512 + $0x18] sm:$0xff] %v3481
          %3517 = vst [vmem:[%s3512 + $0x20] sm:$0xff] %v3482
          %3518 = vst [vmem:[%s3512 + $0x28] sm:$0xff] %v3483
          %3519 = vst [vmem:[%s3512 + $0x30] sm:$0xff] %v3484
          %3520 = vst [vmem:[%s3512 + $0x38] sm:$0xff] %v3485
          %3521 = vst [vmem:[%s3512 + $0x40] sm:$0xff] %v3486
          %3522 = vst [vmem:[%s3512 + $0x48] sm:$0xff] %v3487
          %3523 = vst [vmem:[%s3512 + $0x50] sm:$0xff] %v3488
          %3524 = vst [vmem:[%s3512 + $0x58] sm:$0xff] %v3489
          %3525 = vst [vmem:[%s3512 + $0x60] sm:$0xff] %v3490
          %3526 = vst [vmem:[%s3512 + $0x68] sm:$0xff] %v3491
          %3527 = vst [vmem:[%s3512 + $0x70] sm:$0xff] %v3492
          %3528 = vst [vmem:[%s3512 + $0x78] sm:$0xff] %v3493
        $region60: #{down_forward.1} parent=47 // loop_footer
          %s923 = sadd.s32 1, %s919
        $region61: #{down_forward.1} parent=47 // loop_footer_branch
          %918 = sbr.rel target = $region57
        $region62: #{down_forward.1} parent=47 // loop_exit
          _
        loop: start=0, step=1, limit=2
        $region63: #{down_forward.1} parent=47 // loop_pre_header
          _
        $region64: #{down_forward.1} parent=47 // loop_header
          %s3530 = sphi 0, %s3534
          %p3531 = scmp.ge.s32.totalorder %s3530, 2
        $region65: #{down_forward.1} parent=47 // loop_header_branch
          %3533 = sbr.rel (%p3531) target = $region69
        $region66: #{down_forward.1} parent=47 // loop_body
          %s3535 = smul.u32 %s3530, 8
          %s3536 = smul.u32 %s3535, 4
          %s3537 = smul.addr %s3536, 4
          %s3538 = scalar_lea.vmem [#allocation3], %s3537
          %v3539 = vld [vmem:[%s3538] sm:$0xff]
          %v3540 = vld [vmem:[%s3538 + $0x8] sm:$0xff]
          %v3541 = vld [vmem:[%s3538 + $0x10] sm:$0xff]
          %v3542 = vld [vmem:[%s3538 + $0x18] sm:$0xff]
          %v3543 = vld [vmem:[%s3538 + $0x20] sm:$0xff]
          %v3544 = vld [vmem:[%s3538 + $0x28] sm:$0xff]
          %v3545 = vld [vmem:[%s3538 + $0x30] sm:$0xff]
          %v3546 = vld [vmem:[%s3538 + $0x38] sm:$0xff]
          %v3547 = vld [vmem:[%s3538 + $0x40] sm:$0xff]
          %v3548 = vld [vmem:[%s3538 + $0x48] sm:$0xff]
          %v3549 = vld [vmem:[%s3538 + $0x50] sm:$0xff]
          %v3550 = vld [vmem:[%s3538 + $0x58] sm:$0xff]
          %v3551 = vld [vmem:[%s3538 + $0x60] sm:$0xff]
          %v3552 = vld [vmem:[%s3538 + $0x68] sm:$0xff]
          %v3553 = vld [vmem:[%s3538 + $0x70] sm:$0xff]
          %v3554 = vld [vmem:[%s3538 + $0x78] sm:$0xff]
          %s3555 = sadd.s32 %s3536, 72
          %s3556 = smul.addr %s3555, 4
          %s3557 = scalar_lea.vmem [#allocation3], %s3556
          %v3558 = vld [vmem:[%s3557] sm:$0xff]
          %v3559 = vld [vmem:[%s3557 + $0x8] sm:$0xff]
          %v3560 = vld [vmem:[%s3557 + $0x10] sm:$0xff]
          %v3561 = vld [vmem:[%s3557 + $0x18] sm:$0xff]
          %v3562 = vld [vmem:[%s3557 + $0x20] sm:$0xff]
          %v3563 = vld [vmem:[%s3557 + $0x28] sm:$0xff]
          %v3564 = vld [vmem:[%s3557 + $0x30] sm:$0xff]
          %v3565 = vld [vmem:[%s3557 + $0x38] sm:$0xff]
          %v3566 = vld [vmem:[%s3557 + $0x40] sm:$0xff]
          %v3567 = vld [vmem:[%s3557 + $0x48] sm:$0xff]
          %v3568 = vld [vmem:[%s3557 + $0x50] sm:$0xff]
          %v3569 = vld [vmem:[%s3557 + $0x58] sm:$0xff]
          %v3570 = vld [vmem:[%s3557 + $0x60] sm:$0xff]
          %v3571 = vld [vmem:[%s3557 + $0x68] sm:$0xff]
          %v3572 = vld [vmem:[%s3557 + $0x70] sm:$0xff]
          %v3573 = vld [vmem:[%s3557 + $0x78] sm:$0xff]
          %s3574 = sadd.s32 %s3536, 144
          %s3575 = smul.addr %s3574, 4
          %s3576 = scalar_lea.vmem [#allocation3], %s3575
          %v3577 = vld [vmem:[%s3576] sm:$0xff]
          %v3578 = vld [vmem:[%s3576 + $0x8] sm:$0xff]
          %v3579 = vld [vmem:[%s3576 + $0x10] sm:$0xff]
          %v3580 = vld [vmem:[%s3576 + $0x18] sm:$0xff]
          %v3581 = vld [vmem:[%s3576 + $0x20] sm:$0xff]
          %v3582 = vld [vmem:[%s3576 + $0x28] sm:$0xff]
          %v3583 = vld [vmem:[%s3576 + $0x30] sm:$0xff]
          %v3584 = vld [vmem:[%s3576 + $0x38] sm:$0xff]
          %v3585 = vld [vmem:[%s3576 + $0x40] sm:$0xff]
          %v3586 = vld [vmem:[%s3576 + $0x48] sm:$0xff]
          %v3587 = vld [vmem:[%s3576 + $0x50] sm:$0xff]
          %v3588 = vld [vmem:[%s3576 + $0x58] sm:$0xff]
          %v3589 = vld [vmem:[%s3576 + $0x60] sm:$0xff]
          %v3590 = vld [vmem:[%s3576 + $0x68] sm:$0xff]
          %v3591 = vld [vmem:[%s3576 + $0x70] sm:$0xff]
          %v3592 = vld [vmem:[%s3576 + $0x78] sm:$0xff]
          %s3593 = sadd.s32 %s3535, 1
          %s3594 = smul.u32 %s3593, 4
          %s3595 = smul.addr %s3594, 4
          %s3596 = scalar_lea.vmem [#allocation3], %s3595
          %v3597 = vld [vmem:[%s3596] sm:$0xff]
          %v3598 = vld [vmem:[%s3596 + $0x8] sm:$0xff]
          %v3599 = vld [vmem:[%s3596 + $0x10] sm:$0xff]
          %v3600 = vld [vmem:[%s3596 + $0x18] sm:$0xff]
          %v3601 = vld [vmem:[%s3596 + $0x20] sm:$0xff]
          %v3602 = vld [vmem:[%s3596 + $0x28] sm:$0xff]
          %v3603 = vld [vmem:[%s3596 + $0x30] sm:$0xff]
          %v3604 = vld [vmem:[%s3596 + $0x38] sm:$0xff]
          %v3605 = vld [vmem:[%s3596 + $0x40] sm:$0xff]
          %v3606 = vld [vmem:[%s3596 + $0x48] sm:$0xff]
          %v3607 = vld [vmem:[%s3596 + $0x50] sm:$0xff]
          %v3608 = vld [vmem:[%s3596 + $0x58] sm:$0xff]
          %v3609 = vld [vmem:[%s3596 + $0x60] sm:$0xff]
          %v3610 = vld [vmem:[%s3596 + $0x68] sm:$0xff]
          %v3611 = vld [vmem:[%s3596 + $0x70] sm:$0xff]
          %v3612 = vld [vmem:[%s3596 + $0x78] sm:$0xff]
          %s3613 = sadd.s32 %s3594, 72
          %s3614 = smul.addr %s3613, 4
          %s3615 = scalar_lea.vmem [#allocation3], %s3614
          %v3616 = vld [vmem:[%s3615] sm:$0xff]
          %v3617 = vld [vmem:[%s3615 + $0x8] sm:$0xff]
          %v3618 = vld [vmem:[%s3615 + $0x10] sm:$0xff]
          %v3619 = vld [vmem:[%s3615 + $0x18] sm:$0xff]
          %v3620 = vld [vmem:[%s3615 + $0x20] sm:$0xff]
          %v3621 = vld [vmem:[%s3615 + $0x28] sm:$0xff]
          %v3622 = vld [vmem:[%s3615 + $0x30] sm:$0xff]
          %v3623 = vld [vmem:[%s3615 + $0x38] sm:$0xff]
          %v3624 = vld [vmem:[%s3615 + $0x40] sm:$0xff]
          %v3625 = vld [vmem:[%s3615 + $0x48] sm:$0xff]
          %v3626 = vld [vmem:[%s3615 + $0x50] sm:$0xff]
          %v3627 = vld [vmem:[%s3615 + $0x58] sm:$0xff]
          %v3628 = vld [vmem:[%s3615 + $0x60] sm:$0xff]
          %v3629 = vld [vmem:[%s3615 + $0x68] sm:$0xff]
          %v3630 = vld [vmem:[%s3615 + $0x70] sm:$0xff]
          %v3631 = vld [vmem:[%s3615 + $0x78] sm:$0xff]
          %s3632 = sadd.s32 %s3594, 144
          %s3633 = smul.addr %s3632, 4
          %s3634 = scalar_lea.vmem [#allocation3], %s3633
          %v3635 = vld [vmem:[%s3634] sm:$0xff]
          %v3636 = vld [vmem:[%s3634 + $0x8] sm:$0xff]
          %v3637 = vld [vmem:[%s3634 + $0x10] sm:$0xff]
          %v3638 = vld [vmem:[%s3634 + $0x18] sm:$0xff]
          %v3639 = vld [vmem:[%s3634 + $0x20] sm:$0xff]
          %v3640 = vld [vmem:[%s3634 + $0x28] sm:$0xff]
          %v3641 = vld [vmem:[%s3634 + $0x30] sm:$0xff]
          %v3642 = vld [vmem:[%s3634 + $0x38] sm:$0xff]
          %v3643 = vld [vmem:[%s3634 + $0x40] sm:$0xff]
          %v3644 = vld [vmem:[%s3634 + $0x48] sm:$0xff]
          %v3645 = vld [vmem:[%s3634 + $0x50] sm:$0xff]
          %v3646 = vld [vmem:[%s3634 + $0x58] sm:$0xff]
          %v3647 = vld [vmem:[%s3634 + $0x60] sm:$0xff]
          %v3648 = vld [vmem:[%s3634 + $0x68] sm:$0xff]
          %v3649 = vld [vmem:[%s3634 + $0x70] sm:$0xff]
          %v3650 = vld [vmem:[%s3634 + $0x78] sm:$0xff]
          %s3651 = sadd.s32 %s3535, 2
          %s3652 = smul.u32 %s3651, 4
          %s3653 = smul.addr %s3652, 4
          %s3654 = scalar_lea.vmem [#allocation3], %s3653
          %v3655 = vld [vmem:[%s3654] sm:$0xff]
          %v3656 = vld [vmem:[%s3654 + $0x8] sm:$0xff]
          %v3657 = vld [vmem:[%s3654 + $0x10] sm:$0xff]
          %v3658 = vld [vmem:[%s3654 + $0x18] sm:$0xff]
          %v3659 = vld [vmem:[%s3654 + $0x20] sm:$0xff]
          %v3660 = vld [vmem:[%s3654 + $0x28] sm:$0xff]
          %v3661 = vld [vmem:[%s3654 + $0x30] sm:$0xff]
          %v3662 = vld [vmem:[%s3654 + $0x38] sm:$0xff]
          %v3663 = vld [vmem:[%s3654 + $0x40] sm:$0xff]
          %v3664 = vld [vmem:[%s3654 + $0x48] sm:$0xff]
          %v3665 = vld [vmem:[%s3654 + $0x50] sm:$0xff]
          %v3666 = vld [vmem:[%s3654 + $0x58] sm:$0xff]
          %v3667 = vld [vmem:[%s3654 + $0x60] sm:$0xff]
          %v3668 = vld [vmem:[%s3654 + $0x68] sm:$0xff]
          %v3669 = vld [vmem:[%s3654 + $0x70] sm:$0xff]
          %v3670 = vld [vmem:[%s3654 + $0x78] sm:$0xff]
          %s3671 = sadd.s32 %s3652, 72
          %s3672 = smul.addr %s3671, 4
          %s3673 = scalar_lea.vmem [#allocation3], %s3672
          %v3674 = vld [vmem:[%s3673] sm:$0xff]
          %v3675 = vld [vmem:[%s3673 + $0x8] sm:$0xff]
          %v3676 = vld [vmem:[%s3673 + $0x10] sm:$0xff]
          %v3677 = vld [vmem:[%s3673 + $0x18] sm:$0xff]
          %v3678 = vld [vmem:[%s3673 + $0x20] sm:$0xff]
          %v3679 = vld [vmem:[%s3673 + $0x28] sm:$0xff]
          %v3680 = vld [vmem:[%s3673 + $0x30] sm:$0xff]
          %v3681 = vld [vmem:[%s3673 + $0x38] sm:$0xff]
          %v3682 = vld [vmem:[%s3673 + $0x40] sm:$0xff]
          %v3683 = vld [vmem:[%s3673 + $0x48] sm:$0xff]
          %v3684 = vld [vmem:[%s3673 + $0x50] sm:$0xff]
          %v3685 = vld [vmem:[%s3673 + $0x58] sm:$0xff]
          %v3686 = vld [vmem:[%s3673 + $0x60] sm:$0xff]
          %v3687 = vld [vmem:[%s3673 + $0x68] sm:$0xff]
          %v3688 = vld [vmem:[%s3673 + $0x70] sm:$0xff]
          %v3689 = vld [vmem:[%s3673 + $0x78] sm:$0xff]
          %s3690 = sadd.s32 %s3652, 144
          %s3691 = smul.addr %s3690, 4
          %s3692 = scalar_lea.vmem [#allocation3], %s3691
          %v3693 = vld [vmem:[%s3692] sm:$0xff]
          %v3694 = vld [vmem:[%s3692 + $0x8] sm:$0xff]
          %v3695 = vld [vmem:[%s3692 + $0x10] sm:$0xff]
          %v3696 = vld [vmem:[%s3692 + $0x18] sm:$0xff]
          %v3697 = vld [vmem:[%s3692 + $0x20] sm:$0xff]
          %v3698 = vld [vmem:[%s3692 + $0x28] sm:$0xff]
          %v3699 = vld [vmem:[%s3692 + $0x30] sm:$0xff]
          %v3700 = vld [vmem:[%s3692 + $0x38] sm:$0xff]
          %v3701 = vld [vmem:[%s3692 + $0x40] sm:$0xff]
          %v3702 = vld [vmem:[%s3692 + $0x48] sm:$0xff]
          %v3703 = vld [vmem:[%s3692 + $0x50] sm:$0xff]
          %v3704 = vld [vmem:[%s3692 + $0x58] sm:$0xff]
          %v3705 = vld [vmem:[%s3692 + $0x60] sm:$0xff]
          %v3706 = vld [vmem:[%s3692 + $0x68] sm:$0xff]
          %v3707 = vld [vmem:[%s3692 + $0x70] sm:$0xff]
          %v3708 = vld [vmem:[%s3692 + $0x78] sm:$0xff]
          %v3725 = vunpack.c.l.b16 %v3539
          %v3726 = vunpack.c.h.b16 %v3539
          %v3727 = vunpack.c.l.b16 %v3540
          %v3728 = vunpack.c.h.b16 %v3540
          %v3729 = vunpack.c.l.b16 %v3541
          %v3730 = vunpack.c.h.b16 %v3541
          %v3731 = vunpack.c.l.b16 %v3542
          %v3732 = vunpack.c.h.b16 %v3542
          %v3733 = vunpack.c.l.b16 %v3543
          %v3734 = vunpack.c.h.b16 %v3543
          %v3735 = vunpack.c.l.b16 %v3544
          %v3736 = vunpack.c.h.b16 %v3544
          %v3737 = vunpack.c.l.b16 %v3545
          %v3738 = vunpack.c.h.b16 %v3545
          %v3739 = vunpack.c.l.b16 %v3546
          %v3740 = vunpack.c.h.b16 %v3546
          %v3741 = vunpack.c.l.b16 %v3547
          %v3742 = vunpack.c.h.b16 %v3547
          %v3743 = vunpack.c.l.b16 %v3548
          %v3744 = vunpack.c.h.b16 %v3548
          %v3745 = vunpack.c.l.b16 %v3549
          %v3746 = vunpack.c.h.b16 %v3549
          %v3747 = vunpack.c.l.b16 %v3550
          %v3748 = vunpack.c.h.b16 %v3550
          %v3749 = vunpack.c.l.b16 %v3551
          %v3750 = vunpack.c.h.b16 %v3551
          %v3751 = vunpack.c.l.b16 %v3552
          %v3752 = vunpack.c.h.b16 %v3552
          %v3753 = vunpack.c.l.b16 %v3553
          %v3754 = vunpack.c.h.b16 %v3553
          %v3755 = vunpack.c.l.b16 %v3554
          %v3756 = vunpack.c.h.b16 %v3554
          %v3757 = vpack.c.b16 %v3727, %v3725
          %v3758 = vpack.c.b16 %v3728, %v3726
          %v3759 = vpack.c.b16 %v3731, %v3729
          %v3760 = vpack.c.b16 %v3732, %v3730
          %v3761 = vpack.c.b16 %v3735, %v3733
          %v3762 = vpack.c.b16 %v3736, %v3734
          %v3763 = vpack.c.b16 %v3739, %v3737
          %v3764 = vpack.c.b16 %v3740, %v3738
          %v3765 = vpack.c.b16 %v3743, %v3741
          %v3766 = vpack.c.b16 %v3744, %v3742
          %v3767 = vpack.c.b16 %v3747, %v3745
          %v3768 = vpack.c.b16 %v3748, %v3746
          %v3769 = vpack.c.b16 %v3751, %v3749
          %v3770 = vpack.c.b16 %v3752, %v3750
          %v3771 = vpack.c.b16 %v3755, %v3753
          %v3772 = vpack.c.b16 %v3756, %v3754
          %v3805 = vunpack.c.l.b16 %v3558
          %v3806 = vunpack.c.h.b16 %v3558
          %v3807 = vunpack.c.l.b16 %v3559
          %v3808 = vunpack.c.h.b16 %v3559
          %v3809 = vunpack.c.l.b16 %v3560
          %v3810 = vunpack.c.h.b16 %v3560
          %v3811 = vunpack.c.l.b16 %v3561
          %v3812 = vunpack.c.h.b16 %v3561
          %v3813 = vunpack.c.l.b16 %v3562
          %v3814 = vunpack.c.h.b16 %v3562
          %v3815 = vunpack.c.l.b16 %v3563
          %v3816 = vunpack.c.h.b16 %v3563
          %v3817 = vunpack.c.l.b16 %v3564
          %v3818 = vunpack.c.h.b16 %v3564
          %v3819 = vunpack.c.l.b16 %v3565
          %v3820 = vunpack.c.h.b16 %v3565
          %v3821 = vunpack.c.l.b16 %v3566
          %v3822 = vunpack.c.h.b16 %v3566
          %v3823 = vunpack.c.l.b16 %v3567
          %v3824 = vunpack.c.h.b16 %v3567
          %v3825 = vunpack.c.l.b16 %v3568
          %v3826 = vunpack.c.h.b16 %v3568
          %v3827 = vunpack.c.l.b16 %v3569
          %v3828 = vunpack.c.h.b16 %v3569
          %v3829 = vunpack.c.l.b16 %v3570
          %v3830 = vunpack.c.h.b16 %v3570
          %v3831 = vunpack.c.l.b16 %v3571
          %v3832 = vunpack.c.h.b16 %v3571
          %v3833 = vunpack.c.l.b16 %v3572
          %v3834 = vunpack.c.h.b16 %v3572
          %v3835 = vunpack.c.l.b16 %v3573
          %v3836 = vunpack.c.h.b16 %v3573
          %v3837 = vpack.c.b16 %v3807, %v3805
          %v3838 = vpack.c.b16 %v3808, %v3806
          %v3839 = vpack.c.b16 %v3811, %v3809
          %v3840 = vpack.c.b16 %v3812, %v3810
          %v3841 = vpack.c.b16 %v3815, %v3813
          %v3842 = vpack.c.b16 %v3816, %v3814
          %v3843 = vpack.c.b16 %v3819, %v3817
          %v3844 = vpack.c.b16 %v3820, %v3818
          %v3845 = vpack.c.b16 %v3823, %v3821
          %v3846 = vpack.c.b16 %v3824, %v3822
          %v3847 = vpack.c.b16 %v3827, %v3825
          %v3848 = vpack.c.b16 %v3828, %v3826
          %v3849 = vpack.c.b16 %v3831, %v3829
          %v3850 = vpack.c.b16 %v3832, %v3830
          %v3851 = vpack.c.b16 %v3835, %v3833
          %v3852 = vpack.c.b16 %v3836, %v3834
          %v3885 = vunpack.c.l.b16 %v3577
          %v3886 = vunpack.c.h.b16 %v3577
          %v3887 = vunpack.c.l.b16 %v3578
          %v3888 = vunpack.c.h.b16 %v3578
          %v3889 = vunpack.c.l.b16 %v3579
          %v3890 = vunpack.c.h.b16 %v3579
          %v3891 = vunpack.c.l.b16 %v3580
          %v3892 = vunpack.c.h.b16 %v3580
          %v3893 = vunpack.c.l.b16 %v3581
          %v3894 = vunpack.c.h.b16 %v3581
          %v3895 = vunpack.c.l.b16 %v3582
          %v3896 = vunpack.c.h.b16 %v3582
          %v3897 = vunpack.c.l.b16 %v3583
          %v3898 = vunpack.c.h.b16 %v3583
          %v3899 = vunpack.c.l.b16 %v3584
          %v3900 = vunpack.c.h.b16 %v3584
          %v3901 = vunpack.c.l.b16 %v3585
          %v3902 = vunpack.c.h.b16 %v3585
          %v3903 = vunpack.c.l.b16 %v3586
          %v3904 = vunpack.c.h.b16 %v3586
          %v3905 = vunpack.c.l.b16 %v3587
          %v3906 = vunpack.c.h.b16 %v3587
          %v3907 = vunpack.c.l.b16 %v3588
          %v3908 = vunpack.c.h.b16 %v3588
          %v3909 = vunpack.c.l.b16 %v3589
          %v3910 = vunpack.c.h.b16 %v3589
          %v3911 = vunpack.c.l.b16 %v3590
          %v3912 = vunpack.c.h.b16 %v3590
          %v3913 = vunpack.c.l.b16 %v3591
          %v3914 = vunpack.c.h.b16 %v3591
          %v3915 = vunpack.c.l.b16 %v3592
          %v3916 = vunpack.c.h.b16 %v3592
          %v3917 = vpack.c.b16 %v3887, %v3885
          %v3918 = vpack.c.b16 %v3888, %v3886
          %v3919 = vpack.c.b16 %v3891, %v3889
          %v3920 = vpack.c.b16 %v3892, %v3890
          %v3921 = vpack.c.b16 %v3895, %v3893
          %v3922 = vpack.c.b16 %v3896, %v3894
          %v3923 = vpack.c.b16 %v3899, %v3897
          %v3924 = vpack.c.b16 %v3900, %v3898
          %v3925 = vpack.c.b16 %v3903, %v3901
          %v3926 = vpack.c.b16 %v3904, %v3902
          %v3927 = vpack.c.b16 %v3907, %v3905
          %v3928 = vpack.c.b16 %v3908, %v3906
          %v3929 = vpack.c.b16 %v3911, %v3909
          %v3930 = vpack.c.b16 %v3912, %v3910
          %v3931 = vpack.c.b16 %v3915, %v3913
          %v3932 = vpack.c.b16 %v3916, %v3914
          %v3965 = vunpack.c.l.b16 %v3597
          %v3966 = vunpack.c.h.b16 %v3597
          %v3967 = vunpack.c.l.b16 %v3598
          %v3968 = vunpack.c.h.b16 %v3598
          %v3969 = vunpack.c.l.b16 %v3599
          %v3970 = vunpack.c.h.b16 %v3599
          %v3971 = vunpack.c.l.b16 %v3600
          %v3972 = vunpack.c.h.b16 %v3600
          %v3973 = vunpack.c.l.b16 %v3601
          %v3974 = vunpack.c.h.b16 %v3601
          %v3975 = vunpack.c.l.b16 %v3602
          %v3976 = vunpack.c.h.b16 %v3602
          %v3977 = vunpack.c.l.b16 %v3603
          %v3978 = vunpack.c.h.b16 %v3603
          %v3979 = vunpack.c.l.b16 %v3604
          %v3980 = vunpack.c.h.b16 %v3604
          %v3981 = vunpack.c.l.b16 %v3605
          %v3982 = vunpack.c.h.b16 %v3605
          %v3983 = vunpack.c.l.b16 %v3606
          %v3984 = vunpack.c.h.b16 %v3606
          %v3985 = vunpack.c.l.b16 %v3607
          %v3986 = vunpack.c.h.b16 %v3607
          %v3987 = vunpack.c.l.b16 %v3608
          %v3988 = vunpack.c.h.b16 %v3608
          %v3989 = vunpack.c.l.b16 %v3609
          %v3990 = vunpack.c.h.b16 %v3609
          %v3991 = vunpack.c.l.b16 %v3610
          %v3992 = vunpack.c.h.b16 %v3610
          %v3993 = vunpack.c.l.b16 %v3611
          %v3994 = vunpack.c.h.b16 %v3611
          %v3995 = vunpack.c.l.b16 %v3612
          %v3996 = vunpack.c.h.b16 %v3612
          %v3997 = vpack.c.b16 %v3967, %v3965
          %v3998 = vpack.c.b16 %v3968, %v3966
          %v3999 = vpack.c.b16 %v3971, %v3969
          %v4000 = vpack.c.b16 %v3972, %v3970
          %v4001 = vpack.c.b16 %v3975, %v3973
          %v4002 = vpack.c.b16 %v3976, %v3974
          %v4003 = vpack.c.b16 %v3979, %v3977
          %v4004 = vpack.c.b16 %v3980, %v3978
          %v4005 = vpack.c.b16 %v3983, %v3981
          %v4006 = vpack.c.b16 %v3984, %v3982
          %v4007 = vpack.c.b16 %v3987, %v3985
          %v4008 = vpack.c.b16 %v3988, %v3986
          %v4009 = vpack.c.b16 %v3991, %v3989
          %v4010 = vpack.c.b16 %v3992, %v3990
          %v4011 = vpack.c.b16 %v3995, %v3993
          %v4012 = vpack.c.b16 %v3996, %v3994
          %v4045 = vunpack.c.l.b16 %v3616
          %v4046 = vunpack.c.h.b16 %v3616
          %v4047 = vunpack.c.l.b16 %v3617
          %v4048 = vunpack.c.h.b16 %v3617
          %v4049 = vunpack.c.l.b16 %v3618
          %v4050 = vunpack.c.h.b16 %v3618
          %v4051 = vunpack.c.l.b16 %v3619
          %v4052 = vunpack.c.h.b16 %v3619
          %v4053 = vunpack.c.l.b16 %v3620
          %v4054 = vunpack.c.h.b16 %v3620
          %v4055 = vunpack.c.l.b16 %v3621
          %v4056 = vunpack.c.h.b16 %v3621
          %v4057 = vunpack.c.l.b16 %v3622
          %v4058 = vunpack.c.h.b16 %v3622
          %v4059 = vunpack.c.l.b16 %v3623
          %v4060 = vunpack.c.h.b16 %v3623
          %v4061 = vunpack.c.l.b16 %v3624
          %v4062 = vunpack.c.h.b16 %v3624
          %v4063 = vunpack.c.l.b16 %v3625
          %v4064 = vunpack.c.h.b16 %v3625
          %v4065 = vunpack.c.l.b16 %v3626
          %v4066 = vunpack.c.h.b16 %v3626
          %v4067 = vunpack.c.l.b16 %v3627
          %v4068 = vunpack.c.h.b16 %v3627
          %v4069 = vunpack.c.l.b16 %v3628
          %v4070 = vunpack.c.h.b16 %v3628
          %v4071 = vunpack.c.l.b16 %v3629
          %v4072 = vunpack.c.h.b16 %v3629
          %v4073 = vunpack.c.l.b16 %v3630
          %v4074 = vunpack.c.h.b16 %v3630
          %v4075 = vunpack.c.l.b16 %v3631
          %v4076 = vunpack.c.h.b16 %v3631
          %v4077 = vpack.c.b16 %v4047, %v4045
          %v4078 = vpack.c.b16 %v4048, %v4046
          %v4079 = vpack.c.b16 %v4051, %v4049
          %v4080 = vpack.c.b16 %v4052, %v4050
          %v4081 = vpack.c.b16 %v4055, %v4053
          %v4082 = vpack.c.b16 %v4056, %v4054
          %v4083 = vpack.c.b16 %v4059, %v4057
          %v4084 = vpack.c.b16 %v4060, %v4058
          %v4085 = vpack.c.b16 %v4063, %v4061
          %v4086 = vpack.c.b16 %v4064, %v4062
          %v4087 = vpack.c.b16 %v4067, %v4065
          %v4088 = vpack.c.b16 %v4068, %v4066
          %v4089 = vpack.c.b16 %v4071, %v4069
          %v4090 = vpack.c.b16 %v4072, %v4070
          %v4091 = vpack.c.b16 %v4075, %v4073
          %v4092 = vpack.c.b16 %v4076, %v4074
          %v4125 = vunpack.c.l.b16 %v3635
          %v4126 = vunpack.c.h.b16 %v3635
          %v4127 = vunpack.c.l.b16 %v3636
          %v4128 = vunpack.c.h.b16 %v3636
          %v4129 = vunpack.c.l.b16 %v3637
          %v4130 = vunpack.c.h.b16 %v3637
          %v4131 = vunpack.c.l.b16 %v3638
          %v4132 = vunpack.c.h.b16 %v3638
          %v4133 = vunpack.c.l.b16 %v3639
          %v4134 = vunpack.c.h.b16 %v3639
          %v4135 = vunpack.c.l.b16 %v3640
          %v4136 = vunpack.c.h.b16 %v3640
          %v4137 = vunpack.c.l.b16 %v3641
          %v4138 = vunpack.c.h.b16 %v3641
          %v4139 = vunpack.c.l.b16 %v3642
          %v4140 = vunpack.c.h.b16 %v3642
          %v4141 = vunpack.c.l.b16 %v3643
          %v4142 = vunpack.c.h.b16 %v3643
          %v4143 = vunpack.c.l.b16 %v3644
          %v4144 = vunpack.c.h.b16 %v3644
          %v4145 = vunpack.c.l.b16 %v3645
          %v4146 = vunpack.c.h.b16 %v3645
          %v4147 = vunpack.c.l.b16 %v3646
          %v4148 = vunpack.c.h.b16 %v3646
          %v4149 = vunpack.c.l.b16 %v3647
          %v4150 = vunpack.c.h.b16 %v3647
          %v4151 = vunpack.c.l.b16 %v3648
          %v4152 = vunpack.c.h.b16 %v3648
          %v4153 = vunpack.c.l.b16 %v3649
          %v4154 = vunpack.c.h.b16 %v3649
          %v4155 = vunpack.c.l.b16 %v3650
          %v4156 = vunpack.c.h.b16 %v3650
          %v4157 = vpack.c.b16 %v4127, %v4125
          %v4158 = vpack.c.b16 %v4128, %v4126
          %v4159 = vpack.c.b16 %v4131, %v4129
          %v4160 = vpack.c.b16 %v4132, %v4130
          %v4161 = vpack.c.b16 %v4135, %v4133
          %v4162 = vpack.c.b16 %v4136, %v4134
          %v4163 = vpack.c.b16 %v4139, %v4137
          %v4164 = vpack.c.b16 %v4140, %v4138
          %v4165 = vpack.c.b16 %v4143, %v4141
          %v4166 = vpack.c.b16 %v4144, %v4142
          %v4167 = vpack.c.b16 %v4147, %v4145
          %v4168 = vpack.c.b16 %v4148, %v4146
          %v4169 = vpack.c.b16 %v4151, %v4149
          %v4170 = vpack.c.b16 %v4152, %v4150
          %v4171 = vpack.c.b16 %v4155, %v4153
          %v4172 = vpack.c.b16 %v4156, %v4154
          %v4205 = vunpack.c.l.b16 %v3655
          %v4206 = vunpack.c.h.b16 %v3655
          %v4207 = vunpack.c.l.b16 %v3656
          %v4208 = vunpack.c.h.b16 %v3656
          %v4209 = vunpack.c.l.b16 %v3657
          %v4210 = vunpack.c.h.b16 %v3657
          %v4211 = vunpack.c.l.b16 %v3658
          %v4212 = vunpack.c.h.b16 %v3658
          %v4213 = vunpack.c.l.b16 %v3659
          %v4214 = vunpack.c.h.b16 %v3659
          %v4215 = vunpack.c.l.b16 %v3660
          %v4216 = vunpack.c.h.b16 %v3660
          %v4217 = vunpack.c.l.b16 %v3661
          %v4218 = vunpack.c.h.b16 %v3661
          %v4219 = vunpack.c.l.b16 %v3662
          %v4220 = vunpack.c.h.b16 %v3662
          %v4221 = vunpack.c.l.b16 %v3663
          %v4222 = vunpack.c.h.b16 %v3663
          %v4223 = vunpack.c.l.b16 %v3664
          %v4224 = vunpack.c.h.b16 %v3664
          %v4225 = vunpack.c.l.b16 %v3665
          %v4226 = vunpack.c.h.b16 %v3665
          %v4227 = vunpack.c.l.b16 %v3666
          %v4228 = vunpack.c.h.b16 %v3666
          %v4229 = vunpack.c.l.b16 %v3667
          %v4230 = vunpack.c.h.b16 %v3667
          %v4231 = vunpack.c.l.b16 %v3668
          %v4232 = vunpack.c.h.b16 %v3668
          %v4233 = vunpack.c.l.b16 %v3669
          %v4234 = vunpack.c.h.b16 %v3669
          %v4235 = vunpack.c.l.b16 %v3670
          %v4236 = vunpack.c.h.b16 %v3670
          %v4237 = vpack.c.b16 %v4207, %v4205
          %v4238 = vpack.c.b16 %v4208, %v4206
          %v4239 = vpack.c.b16 %v4211, %v4209
          %v4240 = vpack.c.b16 %v4212, %v4210
          %v4241 = vpack.c.b16 %v4215, %v4213
          %v4242 = vpack.c.b16 %v4216, %v4214
          %v4243 = vpack.c.b16 %v4219, %v4217
          %v4244 = vpack.c.b16 %v4220, %v4218
          %v4245 = vpack.c.b16 %v4223, %v4221
          %v4246 = vpack.c.b16 %v4224, %v4222
          %v4247 = vpack.c.b16 %v4227, %v4225
          %v4248 = vpack.c.b16 %v4228, %v4226
          %v4249 = vpack.c.b16 %v4231, %v4229
          %v4250 = vpack.c.b16 %v4232, %v4230
          %v4251 = vpack.c.b16 %v4235, %v4233
          %v4252 = vpack.c.b16 %v4236, %v4234
          %v4285 = vunpack.c.l.b16 %v3674
          %v4286 = vunpack.c.h.b16 %v3674
          %v4287 = vunpack.c.l.b16 %v3675
          %v4288 = vunpack.c.h.b16 %v3675
          %v4289 = vunpack.c.l.b16 %v3676
          %v4290 = vunpack.c.h.b16 %v3676
          %v4291 = vunpack.c.l.b16 %v3677
          %v4292 = vunpack.c.h.b16 %v3677
          %v4293 = vunpack.c.l.b16 %v3678
          %v4294 = vunpack.c.h.b16 %v3678
          %v4295 = vunpack.c.l.b16 %v3679
          %v4296 = vunpack.c.h.b16 %v3679
          %v4297 = vunpack.c.l.b16 %v3680
          %v4298 = vunpack.c.h.b16 %v3680
          %v4299 = vunpack.c.l.b16 %v3681
          %v4300 = vunpack.c.h.b16 %v3681
          %v4301 = vunpack.c.l.b16 %v3682
          %v4302 = vunpack.c.h.b16 %v3682
          %v4303 = vunpack.c.l.b16 %v3683
          %v4304 = vunpack.c.h.b16 %v3683
          %v4305 = vunpack.c.l.b16 %v3684
          %v4306 = vunpack.c.h.b16 %v3684
          %v4307 = vunpack.c.l.b16 %v3685
          %v4308 = vunpack.c.h.b16 %v3685
          %v4309 = vunpack.c.l.b16 %v3686
          %v4310 = vunpack.c.h.b16 %v3686
          %v4311 = vunpack.c.l.b16 %v3687
          %v4312 = vunpack.c.h.b16 %v3687
          %v4313 = vunpack.c.l.b16 %v3688
          %v4314 = vunpack.c.h.b16 %v3688
          %v4315 = vunpack.c.l.b16 %v3689
          %v4316 = vunpack.c.h.b16 %v3689
          %v4317 = vpack.c.b16 %v4287, %v4285
          %v4318 = vpack.c.b16 %v4288, %v4286
          %v4319 = vpack.c.b16 %v4291, %v4289
          %v4320 = vpack.c.b16 %v4292, %v4290
          %v4321 = vpack.c.b16 %v4295, %v4293
          %v4322 = vpack.c.b16 %v4296, %v4294
          %v4323 = vpack.c.b16 %v4299, %v4297
          %v4324 = vpack.c.b16 %v4300, %v4298
          %v4325 = vpack.c.b16 %v4303, %v4301
          %v4326 = vpack.c.b16 %v4304, %v4302
          %v4327 = vpack.c.b16 %v4307, %v4305
          %v4328 = vpack.c.b16 %v4308, %v4306
          %v4329 = vpack.c.b16 %v4311, %v4309
          %v4330 = vpack.c.b16 %v4312, %v4310
          %v4331 = vpack.c.b16 %v4315, %v4313
          %v4332 = vpack.c.b16 %v4316, %v4314
          %v4365 = vunpack.c.l.b16 %v3693
          %v4366 = vunpack.c.h.b16 %v3693
          %v4367 = vunpack.c.l.b16 %v3694
          %v4368 = vunpack.c.h.b16 %v3694
          %v4369 = vunpack.c.l.b16 %v3695
          %v4370 = vunpack.c.h.b16 %v3695
          %v4371 = vunpack.c.l.b16 %v3696
          %v4372 = vunpack.c.h.b16 %v3696
          %v4373 = vunpack.c.l.b16 %v3697
          %v4374 = vunpack.c.h.b16 %v3697
          %v4375 = vunpack.c.l.b16 %v3698
          %v4376 = vunpack.c.h.b16 %v3698
          %v4377 = vunpack.c.l.b16 %v3699
          %v4378 = vunpack.c.h.b16 %v3699
          %v4379 = vunpack.c.l.b16 %v3700
          %v4380 = vunpack.c.h.b16 %v3700
          %v4381 = vunpack.c.l.b16 %v3701
          %v4382 = vunpack.c.h.b16 %v3701
          %v4383 = vunpack.c.l.b16 %v3702
          %v4384 = vunpack.c.h.b16 %v3702
          %v4385 = vunpack.c.l.b16 %v3703
          %v4386 = vunpack.c.h.b16 %v3703
          %v4387 = vunpack.c.l.b16 %v3704
          %v4388 = vunpack.c.h.b16 %v3704
          %v4389 = vunpack.c.l.b16 %v3705
          %v4390 = vunpack.c.h.b16 %v3705
          %v4391 = vunpack.c.l.b16 %v3706
          %v4392 = vunpack.c.h.b16 %v3706
          %v4393 = vunpack.c.l.b16 %v3707
          %v4394 = vunpack.c.h.b16 %v3707
          %v4395 = vunpack.c.l.b16 %v3708
          %v4396 = vunpack.c.h.b16 %v3708
          %v4397 = vpack.c.b16 %v4367, %v4365
          %v4398 = vpack.c.b16 %v4368, %v4366
          %v4399 = vpack.c.b16 %v4371, %v4369
          %v4400 = vpack.c.b16 %v4372, %v4370
          %v4401 = vpack.c.b16 %v4375, %v4373
          %v4402 = vpack.c.b16 %v4376, %v4374
          %v4403 = vpack.c.b16 %v4379, %v4377
          %v4404 = vpack.c.b16 %v4380, %v4378
          %v4405 = vpack.c.b16 %v4383, %v4381
          %v4406 = vpack.c.b16 %v4384, %v4382
          %v4407 = vpack.c.b16 %v4387, %v4385
          %v4408 = vpack.c.b16 %v4388, %v4386
          %v4409 = vpack.c.b16 %v4391, %v4389
          %v4410 = vpack.c.b16 %v4392, %v4390
          %v4411 = vpack.c.b16 %v4395, %v4393
          %v4412 = vpack.c.b16 %v4396, %v4394
          %v4429 = vld [vmem:[%s3] sm:$0xf]
          %v4430 = vld [vmem:[%s3 + $0x4] sm:$0xf]
          %v4431 = vld [vmem:[%s3 + $0x8] sm:$0xf]
          %v4432 = vld [vmem:[%s3 + $0xc] sm:$0xf]
          %v4433 = vld [vmem:[%s3 + $0x10] sm:$0xf]
          %v4434 = vld [vmem:[%s3 + $0x14] sm:$0xf]
          %v4435 = vld [vmem:[%s3 + $0x18] sm:$0xf]
          %v4436 = vld [vmem:[%s3 + $0x1c] sm:$0xf]
          %v4437 = vld [vmem:[%s3 + $0x20] sm:$0xf]
          %v4438 = vld [vmem:[%s3 + $0x24] sm:$0xf]
          %v4439 = vld [vmem:[%s3 + $0x28] sm:$0xf]
          %v4440 = vld [vmem:[%s3 + $0x2c] sm:$0xf]
          %v4441 = vld [vmem:[%s3 + $0x30] sm:$0xf]
          %v4442 = vld [vmem:[%s3 + $0x34] sm:$0xf]
          %v4443 = vld [vmem:[%s3 + $0x38] sm:$0xf]
          %v4444 = vld [vmem:[%s3 + $0x3c] sm:$0xf]
          %v4445 = vld [vmem:[%s3 + $0x40] sm:$0xf]
          %v4446 = vld [vmem:[%s3 + $0x44] sm:$0xf]
          %v4447 = vld [vmem:[%s3 + $0x48] sm:$0xf]
          %v4448 = vld [vmem:[%s3 + $0x4c] sm:$0xf]
          %v4449 = vld [vmem:[%s3 + $0x50] sm:$0xf]
          %v4450 = vld [vmem:[%s3 + $0x54] sm:$0xf]
          %v4451 = vld [vmem:[%s3 + $0x58] sm:$0xf]
          %v4452 = vld [vmem:[%s3 + $0x5c] sm:$0xf]
          %v4453 = vld [vmem:[%s3 + $0x60] sm:$0xf]
          %v4454 = vld [vmem:[%s3 + $0x64] sm:$0xf]
          %v4455 = vld [vmem:[%s3 + $0x68] sm:$0xf]
          %v4456 = vld [vmem:[%s3 + $0x6c] sm:$0xf]
          %v4457 = vld [vmem:[%s3 + $0x70] sm:$0xf]
          %v4458 = vld [vmem:[%s3 + $0x74] sm:$0xf]
          %v4459 = vld [vmem:[%s3 + $0x78] sm:$0xf]
          %v4460 = vld [vmem:[%s3 + $0x7c] sm:$0xf]
          %v4461 = vld [vmem:[%s3 + $0x80] sm:$0xf]
          %v4462 = vld [vmem:[%s3 + $0x84] sm:$0xf]
          %v4463 = vld [vmem:[%s3 + $0x88] sm:$0xf]
          %v4464 = vld [vmem:[%s3 + $0x8c] sm:$0xf]
          %v4465 = vld [vmem:[%s3 + $0x90] sm:$0xf]
          %v4466 = vld [vmem:[%s3 + $0x94] sm:$0xf]
          %v4467 = vld [vmem:[%s3 + $0x98] sm:$0xf]
          %v4468 = vld [vmem:[%s3 + $0x9c] sm:$0xf]
          %v4469 = vld [vmem:[%s3 + $0xa0] sm:$0xf]
          %v4470 = vld [vmem:[%s3 + $0xa4] sm:$0xf]
          %v4471 = vld [vmem:[%s3 + $0xa8] sm:$0xf]
          %v4472 = vld [vmem:[%s3 + $0xac] sm:$0xf]
          %v4473 = vld [vmem:[%s3 + $0xb0] sm:$0xf]
          %v4474 = vld [vmem:[%s3 + $0xb4] sm:$0xf]
          %v4475 = vld [vmem:[%s3 + $0xb8] sm:$0xf]
          %v4476 = vld [vmem:[%s3 + $0xbc] sm:$0xf]
          %v4477 = vld [vmem:[%s3 + $0xc0] sm:$0xf]
          %v4478 = vld [vmem:[%s3 + $0xc4] sm:$0xf]
          %v4479 = vld [vmem:[%s3 + $0xc8] sm:$0xf]
          %v4480 = vld [vmem:[%s3 + $0xcc] sm:$0xf]
          %v4481 = vld [vmem:[%s3 + $0xd0] sm:$0xf]
          %v4482 = vld [vmem:[%s3 + $0xd4] sm:$0xf]
          %v4483 = vld [vmem:[%s3 + $0xd8] sm:$0xf]
          %v4484 = vld [vmem:[%s3 + $0xdc] sm:$0xf]
          %v4485 = vld [vmem:[%s3 + $0xe0] sm:$0xf]
          %v4486 = vld [vmem:[%s3 + $0xe4] sm:$0xf]
          %v4487 = vld [vmem:[%s3 + $0xe8] sm:$0xf]
          %v4488 = vld [vmem:[%s3 + $0xec] sm:$0xf]
          %v4489 = vld [vmem:[%s3 + $0xf0] sm:$0xf]
          %v4490 = vld [vmem:[%s3 + $0xf4] sm:$0xf]
          %v4491 = vld [vmem:[%s3 + $0xf8] sm:$0xf]
          %v4492 = vld [vmem:[%s3 + $0xfc] sm:$0xf]
          %v4493 = vld [vmem:[%s3 + $0x100] sm:$0xf]
          %v4494 = vld [vmem:[%s3 + $0x104] sm:$0xf]
          %v4495 = vld [vmem:[%s3 + $0x108] sm:$0xf]
          %v4496 = vld [vmem:[%s3 + $0x10c] sm:$0xf]
          %v4497 = vld [vmem:[%s3 + $0x110] sm:$0xf]
          %v4498 = vld [vmem:[%s3 + $0x114] sm:$0xf]
          %v4499 = vld [vmem:[%s3 + $0x118] sm:$0xf]
          %v4500 = vld [vmem:[%s3 + $0x11c] sm:$0xf]
          %v4501 = vld [vmem:[%s3 + $0x120] sm:$0xf]
          %v4502 = vld [vmem:[%s3 + $0x124] sm:$0xf]
          %v4503 = vld [vmem:[%s3 + $0x128] sm:$0xf]
          %v4504 = vld [vmem:[%s3 + $0x12c] sm:$0xf]
          %v4505 = vld [vmem:[%s3 + $0x130] sm:$0xf]
          %v4506 = vld [vmem:[%s3 + $0x134] sm:$0xf]
          %v4507 = vld [vmem:[%s3 + $0x138] sm:$0xf]
          %v4508 = vld [vmem:[%s3 + $0x13c] sm:$0xf]
          %v4509 = vld [vmem:[%s3 + $0x140] sm:$0xf]
          %v4510 = vld [vmem:[%s3 + $0x144] sm:$0xf]
          %v4511 = vld [vmem:[%s3 + $0x148] sm:$0xf]
          %v4512 = vld [vmem:[%s3 + $0x14c] sm:$0xf]
          %v4513 = vld [vmem:[%s3 + $0x150] sm:$0xf]
          %v4514 = vld [vmem:[%s3 + $0x154] sm:$0xf]
          %v4515 = vld [vmem:[%s3 + $0x158] sm:$0xf]
          %v4516 = vld [vmem:[%s3 + $0x15c] sm:$0xf]
          %v4517 = vld [vmem:[%s3 + $0x160] sm:$0xf]
          %v4518 = vld [vmem:[%s3 + $0x164] sm:$0xf]
          %v4519 = vld [vmem:[%s3 + $0x168] sm:$0xf]
          %v4520 = vld [vmem:[%s3 + $0x16c] sm:$0xf]
          %v4521 = vld [vmem:[%s3 + $0x170] sm:$0xf]
          %v4522 = vld [vmem:[%s3 + $0x174] sm:$0xf]
          %v4523 = vld [vmem:[%s3 + $0x178] sm:$0xf]
          %v4524 = vld [vmem:[%s3 + $0x17c] sm:$0xf]
          %v4525 = vld [vmem:[%s3 + $0x180] sm:$0xf]
          %v4526 = vld [vmem:[%s3 + $0x184] sm:$0xf]
          %v4527 = vld [vmem:[%s3 + $0x188] sm:$0xf]
          %v4528 = vld [vmem:[%s3 + $0x18c] sm:$0xf]
          %v4529 = vld [vmem:[%s3 + $0x190] sm:$0xf]
          %v4530 = vld [vmem:[%s3 + $0x194] sm:$0xf]
          %v4531 = vld [vmem:[%s3 + $0x198] sm:$0xf]
          %v4532 = vld [vmem:[%s3 + $0x19c] sm:$0xf]
          %v4533 = vld [vmem:[%s3 + $0x1a0] sm:$0xf]
          %v4534 = vld [vmem:[%s3 + $0x1a4] sm:$0xf]
          %v4535 = vld [vmem:[%s3 + $0x1a8] sm:$0xf]
          %v4536 = vld [vmem:[%s3 + $0x1ac] sm:$0xf]
          %v4537 = vld [vmem:[%s3 + $0x1b0] sm:$0xf]
          %v4538 = vld [vmem:[%s3 + $0x1b4] sm:$0xf]
          %v4539 = vld [vmem:[%s3 + $0x1b8] sm:$0xf]
          %v4540 = vld [vmem:[%s3 + $0x1bc] sm:$0xf]
          %v4541 = vld [vmem:[%s3 + $0x1c0] sm:$0xf]
          %v4542 = vld [vmem:[%s3 + $0x1c4] sm:$0xf]
          %v4543 = vld [vmem:[%s3 + $0x1c8] sm:$0xf]
          %v4544 = vld [vmem:[%s3 + $0x1cc] sm:$0xf]
          %v4545 = vld [vmem:[%s3 + $0x1d0] sm:$0xf]
          %v4546 = vld [vmem:[%s3 + $0x1d4] sm:$0xf]
          %v4547 = vld [vmem:[%s3 + $0x1d8] sm:$0xf]
          %v4548 = vld [vmem:[%s3 + $0x1dc] sm:$0xf]
          %v4549 = vld [vmem:[%s3 + $0x1e0] sm:$0xf]
          %v4550 = vld [vmem:[%s3 + $0x1e4] sm:$0xf]
          %v4551 = vld [vmem:[%s3 + $0x1e8] sm:$0xf]
          %v4552 = vld [vmem:[%s3 + $0x1ec] sm:$0xf]
          %v4553 = vld [vmem:[%s3 + $0x1f0] sm:$0xf]
          %v4554 = vld [vmem:[%s3 + $0x1f4] sm:$0xf]
          %v4555 = vld [vmem:[%s3 + $0x1f8] sm:$0xf]
          %v4556 = vld [vmem:[%s3 + $0x1fc] sm:$0xf]
          %v4557 = vld [vmem:[%s3 + $0x200] sm:$0xf]
          %v4558 = vld [vmem:[%s3 + $0x204] sm:$0xf]
          %v4559 = vld [vmem:[%s3 + $0x208] sm:$0xf]
          %v4560 = vld [vmem:[%s3 + $0x20c] sm:$0xf]
          %v4561 = vld [vmem:[%s3 + $0x210] sm:$0xf]
          %v4562 = vld [vmem:[%s3 + $0x214] sm:$0xf]
          %v4563 = vld [vmem:[%s3 + $0x218] sm:$0xf]
          %v4564 = vld [vmem:[%s3 + $0x21c] sm:$0xf]
          %v4565 = vld [vmem:[%s3 + $0x220] sm:$0xf]
          %v4566 = vld [vmem:[%s3 + $0x224] sm:$0xf]
          %v4567 = vld [vmem:[%s3 + $0x228] sm:$0xf]
          %v4568 = vld [vmem:[%s3 + $0x22c] sm:$0xf]
          %v4569 = vld [vmem:[%s3 + $0x230] sm:$0xf]
          %v4570 = vld [vmem:[%s3 + $0x234] sm:$0xf]
          %v4571 = vld [vmem:[%s3 + $0x238] sm:$0xf]
          %v4572 = vld [vmem:[%s3 + $0x23c] sm:$0xf]
          %v4573 = vld [vmem:[%s3 + $0x240] sm:$0xf]
          %v4574 = vld [vmem:[%s3 + $0x244] sm:$0xf]
          %v4575 = vld [vmem:[%s3 + $0x248] sm:$0xf]
          %v4576 = vld [vmem:[%s3 + $0x24c] sm:$0xf]
          %v4577 = vld [vmem:[%s3 + $0x250] sm:$0xf]
          %v4578 = vld [vmem:[%s3 + $0x254] sm:$0xf]
          %v4579 = vld [vmem:[%s3 + $0x258] sm:$0xf]
          %v4580 = vld [vmem:[%s3 + $0x25c] sm:$0xf]
          %v4581 = vld [vmem:[%s3 + $0x260] sm:$0xf]
          %v4582 = vld [vmem:[%s3 + $0x264] sm:$0xf]
          %v4583 = vld [vmem:[%s3 + $0x268] sm:$0xf]
          %v4584 = vld [vmem:[%s3 + $0x26c] sm:$0xf]
          %v4585 = vld [vmem:[%s3 + $0x270] sm:$0xf]
          %v4586 = vld [vmem:[%s3 + $0x274] sm:$0xf]
          %v4587 = vld [vmem:[%s3 + $0x278] sm:$0xf]
          %v4588 = vld [vmem:[%s3 + $0x27c] sm:$0xf]
          %v4589 = vld [vmem:[%s3 + $0x280] sm:$0xf]
          %v4590 = vld [vmem:[%s3 + $0x284] sm:$0xf]
          %v4591 = vld [vmem:[%s3 + $0x288] sm:$0xf]
          %v4592 = vld [vmem:[%s3 + $0x28c] sm:$0xf]
          %v4593 = vld [vmem:[%s3 + $0x290] sm:$0xf]
          %v4594 = vld [vmem:[%s3 + $0x294] sm:$0xf]
          %v4595 = vld [vmem:[%s3 + $0x298] sm:$0xf]
          %v4596 = vld [vmem:[%s3 + $0x29c] sm:$0xf]
          %v4597 = vld [vmem:[%s3 + $0x2a0] sm:$0xf]
          %v4598 = vld [vmem:[%s3 + $0x2a4] sm:$0xf]
          %v4599 = vld [vmem:[%s3 + $0x2a8] sm:$0xf]
          %v4600 = vld [vmem:[%s3 + $0x2ac] sm:$0xf]
          %v4601 = vld [vmem:[%s3 + $0x2b0] sm:$0xf]
          %v4602 = vld [vmem:[%s3 + $0x2b4] sm:$0xf]
          %v4603 = vld [vmem:[%s3 + $0x2b8] sm:$0xf]
          %v4604 = vld [vmem:[%s3 + $0x2bc] sm:$0xf]
          %v4605 = vld [vmem:[%s3 + $0x2c0] sm:$0xf]
          %v4606 = vld [vmem:[%s3 + $0x2c4] sm:$0xf]
          %v4607 = vld [vmem:[%s3 + $0x2c8] sm:$0xf]
          %v4608 = vld [vmem:[%s3 + $0x2cc] sm:$0xf]
          %v4609 = vld [vmem:[%s3 + $0x2d0] sm:$0xf]
          %v4610 = vld [vmem:[%s3 + $0x2d4] sm:$0xf]
          %v4611 = vld [vmem:[%s3 + $0x2d8] sm:$0xf]
          %v4612 = vld [vmem:[%s3 + $0x2dc] sm:$0xf]
          %v4613 = vld [vmem:[%s3 + $0x2e0] sm:$0xf]
          %v4614 = vld [vmem:[%s3 + $0x2e4] sm:$0xf]
          %v4615 = vld [vmem:[%s3 + $0x2e8] sm:$0xf]
          %v4616 = vld [vmem:[%s3 + $0x2ec] sm:$0xf]
          %v4617 = vld [vmem:[%s3 + $0x2f0] sm:$0xf]
          %v4618 = vld [vmem:[%s3 + $0x2f4] sm:$0xf]
          %v4619 = vld [vmem:[%s3 + $0x2f8] sm:$0xf]
          %v4620 = vld [vmem:[%s3 + $0x2fc] sm:$0xf]
          %v4621 = vld [vmem:[%s3 + $0x300] sm:$0xf]
          %v4622 = vld [vmem:[%s3 + $0x304] sm:$0xf]
          %v4623 = vld [vmem:[%s3 + $0x308] sm:$0xf]
          %v4624 = vld [vmem:[%s3 + $0x30c] sm:$0xf]
          %v4625 = vld [vmem:[%s3 + $0x310] sm:$0xf]
          %v4626 = vld [vmem:[%s3 + $0x314] sm:$0xf]
          %v4627 = vld [vmem:[%s3 + $0x318] sm:$0xf]
          %v4628 = vld [vmem:[%s3 + $0x31c] sm:$0xf]
          %v4629 = vld [vmem:[%s3 + $0x320] sm:$0xf]
          %v4630 = vld [vmem:[%s3 + $0x324] sm:$0xf]
          %v4631 = vld [vmem:[%s3 + $0x328] sm:$0xf]
          %v4632 = vld [vmem:[%s3 + $0x32c] sm:$0xf]
          %v4633 = vld [vmem:[%s3 + $0x330] sm:$0xf]
          %v4634 = vld [vmem:[%s3 + $0x334] sm:$0xf]
          %v4635 = vld [vmem:[%s3 + $0x338] sm:$0xf]
          %v4636 = vld [vmem:[%s3 + $0x33c] sm:$0xf]
          %v4637 = vld [vmem:[%s3 + $0x340] sm:$0xf]
          %v4638 = vld [vmem:[%s3 + $0x344] sm:$0xf]
          %v4639 = vld [vmem:[%s3 + $0x348] sm:$0xf]
          %v4640 = vld [vmem:[%s3 + $0x34c] sm:$0xf]
          %v4641 = vld [vmem:[%s3 + $0x350] sm:$0xf]
          %v4642 = vld [vmem:[%s3 + $0x354] sm:$0xf]
          %v4643 = vld [vmem:[%s3 + $0x358] sm:$0xf]
          %v4644 = vld [vmem:[%s3 + $0x35c] sm:$0xf]
          %v4645 = vld [vmem:[%s3 + $0x360] sm:$0xf]
          %v4646 = vld [vmem:[%s3 + $0x364] sm:$0xf]
          %v4647 = vld [vmem:[%s3 + $0x368] sm:$0xf]
          %v4648 = vld [vmem:[%s3 + $0x36c] sm:$0xf]
          %v4649 = vld [vmem:[%s3 + $0x370] sm:$0xf]
          %v4650 = vld [vmem:[%s3 + $0x374] sm:$0xf]
          %v4651 = vld [vmem:[%s3 + $0x378] sm:$0xf]
          %v4652 = vld [vmem:[%s3 + $0x37c] sm:$0xf]
          %v4653 = vld [vmem:[%s3 + $0x380] sm:$0xf]
          %v4654 = vld [vmem:[%s3 + $0x384] sm:$0xf]
          %v4655 = vld [vmem:[%s3 + $0x388] sm:$0xf]
          %v4656 = vld [vmem:[%s3 + $0x38c] sm:$0xf]
          %v4657 = vld [vmem:[%s3 + $0x390] sm:$0xf]
          %v4658 = vld [vmem:[%s3 + $0x394] sm:$0xf]
          %v4659 = vld [vmem:[%s3 + $0x398] sm:$0xf]
          %v4660 = vld [vmem:[%s3 + $0x39c] sm:$0xf]
          %v4661 = vld [vmem:[%s3 + $0x3a0] sm:$0xf]
          %v4662 = vld [vmem:[%s3 + $0x3a4] sm:$0xf]
          %v4663 = vld [vmem:[%s3 + $0x3a8] sm:$0xf]
          %v4664 = vld [vmem:[%s3 + $0x3ac] sm:$0xf]
          %v4665 = vld [vmem:[%s3 + $0x3b0] sm:$0xf]
          %v4666 = vld [vmem:[%s3 + $0x3b4] sm:$0xf]
          %v4667 = vld [vmem:[%s3 + $0x3b8] sm:$0xf]
          %v4668 = vld [vmem:[%s3 + $0x3bc] sm:$0xf]
          %v4669 = vld [vmem:[%s3 + $0x3c0] sm:$0xf]
          %v4670 = vld [vmem:[%s3 + $0x3c4] sm:$0xf]
          %v4671 = vld [vmem:[%s3 + $0x3c8] sm:$0xf]
          %v4672 = vld [vmem:[%s3 + $0x3cc] sm:$0xf]
          %v4673 = vld [vmem:[%s3 + $0x3d0] sm:$0xf]
          %v4674 = vld [vmem:[%s3 + $0x3d4] sm:$0xf]
          %v4675 = vld [vmem:[%s3 + $0x3d8] sm:$0xf]
          %v4676 = vld [vmem:[%s3 + $0x3dc] sm:$0xf]
          %v4677 = vld [vmem:[%s3 + $0x3e0] sm:$0xf]
          %v4678 = vld [vmem:[%s3 + $0x3e4] sm:$0xf]
          %v4679 = vld [vmem:[%s3 + $0x3e8] sm:$0xf]
          %v4680 = vld [vmem:[%s3 + $0x3ec] sm:$0xf]
          %v4681 = vld [vmem:[%s3 + $0x3f0] sm:$0xf]
          %v4682 = vld [vmem:[%s3 + $0x3f4] sm:$0xf]
          %v4683 = vld [vmem:[%s3 + $0x3f8] sm:$0xf]
          %v4684 = vld [vmem:[%s3 + $0x3fc] sm:$0xf]
          %v4685 = vld [vmem:[%s3 + $0x400] sm:$0xf]
          %v4686 = vld [vmem:[%s3 + $0x404] sm:$0xf]
          %v4687 = vld [vmem:[%s3 + $0x408] sm:$0xf]
          %v4688 = vld [vmem:[%s3 + $0x40c] sm:$0xf]
          %v4689 = vld [vmem:[%s3 + $0x410] sm:$0xf]
          %v4690 = vld [vmem:[%s3 + $0x414] sm:$0xf]
          %v4691 = vld [vmem:[%s3 + $0x418] sm:$0xf]
          %v4692 = vld [vmem:[%s3 + $0x41c] sm:$0xf]
          %v4693 = vld [vmem:[%s3 + $0x420] sm:$0xf]
          %v4694 = vld [vmem:[%s3 + $0x424] sm:$0xf]
          %v4695 = vld [vmem:[%s3 + $0x428] sm:$0xf]
          %v4696 = vld [vmem:[%s3 + $0x42c] sm:$0xf]
          %v4697 = vld [vmem:[%s3 + $0x430] sm:$0xf]
          %v4698 = vld [vmem:[%s3 + $0x434] sm:$0xf]
          %v4699 = vld [vmem:[%s3 + $0x438] sm:$0xf]
          %v4700 = vld [vmem:[%s3 + $0x43c] sm:$0xf]
          %v4701 = vld [vmem:[%s3 + $0x440] sm:$0xf]
          %v4702 = vld [vmem:[%s3 + $0x444] sm:$0xf]
          %v4703 = vld [vmem:[%s3 + $0x448] sm:$0xf]
          %v4704 = vld [vmem:[%s3 + $0x44c] sm:$0xf]
          %v4705 = vld [vmem:[%s3 + $0x450] sm:$0xf]
          %v4706 = vld [vmem:[%s3 + $0x454] sm:$0xf]
          %v4707 = vld [vmem:[%s3 + $0x458] sm:$0xf]
          %v4708 = vld [vmem:[%s3 + $0x45c] sm:$0xf]
          %v4709 = vld [vmem:[%s3 + $0x460] sm:$0xf]
          %v4710 = vld [vmem:[%s3 + $0x464] sm:$0xf]
          %v4711 = vld [vmem:[%s3 + $0x468] sm:$0xf]
          %v4712 = vld [vmem:[%s3 + $0x46c] sm:$0xf]
          %v4713 = vld [vmem:[%s3 + $0x470] sm:$0xf]
          %v4714 = vld [vmem:[%s3 + $0x474] sm:$0xf]
          %v4715 = vld [vmem:[%s3 + $0x478] sm:$0xf]
          %v4716 = vld [vmem:[%s3 + $0x47c] sm:$0xf]
          %v4718 = vlaneseq
          %v4719 = vshrl.u32 %v4718, 7
          %v4720 = vsub.s32 0, %v4719
          %v4721 = vrot.slane %v314, %v4720
          %v5011 = vunpack.c.l.b16 %v4429
          %v5012 = vunpack.c.l.b16 %v4430
          %v5013 = vunpack.c.l.b16 %v4431
          %v5014 = vunpack.c.l.b16 %v4432
          %v5015 = vunpack.c.l.b16 %v4433
          %v5016 = vunpack.c.l.b16 %v4434
          %v5017 = vunpack.c.l.b16 %v4435
          %v5018 = vunpack.c.l.b16 %v4436
          %v5019 = vunpack.c.l.b16 %v4437
          %v5020 = vunpack.c.l.b16 %v4438
          %v5021 = vunpack.c.l.b16 %v4439
          %v5022 = vunpack.c.l.b16 %v4440
          %v5023 = vunpack.c.l.b16 %v4441
          %v5024 = vunpack.c.l.b16 %v4442
          %v5025 = vunpack.c.l.b16 %v4443
          %v5026 = vunpack.c.l.b16 %v4444
          %v5027 = vunpack.c.l.b16 %v4445
          %v5028 = vunpack.c.l.b16 %v4446
          %v5029 = vunpack.c.l.b16 %v4447
          %v5030 = vunpack.c.l.b16 %v4448
          %v5031 = vunpack.c.l.b16 %v4449
          %v5032 = vunpack.c.l.b16 %v4450
          %v5033 = vunpack.c.l.b16 %v4451
          %v5034 = vunpack.c.l.b16 %v4452
          %v5035 = vunpack.c.l.b16 %v4453
          %v5036 = vunpack.c.l.b16 %v4454
          %v5037 = vunpack.c.l.b16 %v4455
          %v5038 = vunpack.c.l.b16 %v4456
          %v5039 = vunpack.c.l.b16 %v4457
          %v5040 = vunpack.c.l.b16 %v4458
          %v5041 = vunpack.c.l.b16 %v4459
          %v5042 = vunpack.c.l.b16 %v4460
          %v5043 = vunpack.c.l.b16 %v4461
          %v5044 = vunpack.c.l.b16 %v4462
          %v5045 = vunpack.c.l.b16 %v4463
          %v5046 = vunpack.c.l.b16 %v4464
          %v5047 = vunpack.c.l.b16 %v4465
          %v5048 = vunpack.c.l.b16 %v4466
          %v5049 = vunpack.c.l.b16 %v4467
          %v5050 = vunpack.c.l.b16 %v4468
          %v5051 = vunpack.c.l.b16 %v4469
          %v5052 = vunpack.c.l.b16 %v4470
          %v5053 = vunpack.c.l.b16 %v4471
          %v5054 = vunpack.c.l.b16 %v4472
          %v5055 = vunpack.c.l.b16 %v4473
          %v5056 = vunpack.c.l.b16 %v4474
          %v5057 = vunpack.c.l.b16 %v4475
          %v5058 = vunpack.c.l.b16 %v4476
          %v5059 = vunpack.c.l.b16 %v4477
          %v5060 = vunpack.c.l.b16 %v4478
          %v5061 = vunpack.c.l.b16 %v4479
          %v5062 = vunpack.c.l.b16 %v4480
          %v5063 = vunpack.c.l.b16 %v4481
          %v5064 = vunpack.c.l.b16 %v4482
          %v5065 = vunpack.c.l.b16 %v4483
          %v5066 = vunpack.c.l.b16 %v4484
          %v5067 = vunpack.c.l.b16 %v4485
          %v5068 = vunpack.c.l.b16 %v4486
          %v5069 = vunpack.c.l.b16 %v4487
          %v5070 = vunpack.c.l.b16 %v4488
          %v5071 = vunpack.c.l.b16 %v4489
          %v5072 = vunpack.c.l.b16 %v4490
          %v5073 = vunpack.c.l.b16 %v4491
          %v5074 = vunpack.c.l.b16 %v4492
          %v5075 = vunpack.c.l.b16 %v4493
          %v5076 = vunpack.c.l.b16 %v4494
          %v5077 = vunpack.c.l.b16 %v4495
          %v5078 = vunpack.c.l.b16 %v4496
          %v5079 = vunpack.c.l.b16 %v4497
          %v5080 = vunpack.c.l.b16 %v4498
          %v5081 = vunpack.c.l.b16 %v4499
          %v5082 = vunpack.c.l.b16 %v4500
          %v5083 = vunpack.c.l.b16 %v4501
          %v5084 = vunpack.c.l.b16 %v4502
          %v5085 = vunpack.c.l.b16 %v4503
          %v5086 = vunpack.c.l.b16 %v4504
          %v5087 = vunpack.c.l.b16 %v4505
          %v5088 = vunpack.c.l.b16 %v4506
          %v5089 = vunpack.c.l.b16 %v4507
          %v5090 = vunpack.c.l.b16 %v4508
          %v5091 = vunpack.c.l.b16 %v4509
          %v5092 = vunpack.c.l.b16 %v4510
          %v5093 = vunpack.c.l.b16 %v4511
          %v5094 = vunpack.c.l.b16 %v4512
          %v5095 = vunpack.c.l.b16 %v4513
          %v5096 = vunpack.c.l.b16 %v4514
          %v5097 = vunpack.c.l.b16 %v4515
          %v5098 = vunpack.c.l.b16 %v4516
          %v5099 = vunpack.c.l.b16 %v4517
          %v5100 = vunpack.c.l.b16 %v4518
          %v5101 = vunpack.c.l.b16 %v4519
          %v5102 = vunpack.c.l.b16 %v4520
          %v5103 = vunpack.c.l.b16 %v4521
          %v5104 = vunpack.c.l.b16 %v4522
          %v5105 = vunpack.c.l.b16 %v4523
          %v5106 = vunpack.c.l.b16 %v4524
          %v5107 = vunpack.c.l.b16 %v4525
          %v5108 = vunpack.c.l.b16 %v4526
          %v5109 = vunpack.c.l.b16 %v4527
          %v5110 = vunpack.c.l.b16 %v4528
          %v5111 = vunpack.c.l.b16 %v4529
          %v5112 = vunpack.c.l.b16 %v4530
          %v5113 = vunpack.c.l.b16 %v4531
          %v5114 = vunpack.c.l.b16 %v4532
          %v5115 = vunpack.c.l.b16 %v4533
          %v5116 = vunpack.c.l.b16 %v4534
          %v5117 = vunpack.c.l.b16 %v4535
          %v5118 = vunpack.c.l.b16 %v4536
          %v5119 = vunpack.c.l.b16 %v4537
          %v5120 = vunpack.c.l.b16 %v4538
          %v5121 = vunpack.c.l.b16 %v4539
          %v5122 = vunpack.c.l.b16 %v4540
          %v5123 = vunpack.c.l.b16 %v4541
          %v5124 = vunpack.c.l.b16 %v4542
          %v5125 = vunpack.c.l.b16 %v4543
          %v5126 = vunpack.c.l.b16 %v4544
          %v5127 = vunpack.c.l.b16 %v4545
          %v5128 = vunpack.c.l.b16 %v4546
          %v5129 = vunpack.c.l.b16 %v4547
          %v5130 = vunpack.c.l.b16 %v4548
          %v5131 = vunpack.c.l.b16 %v4549
          %v5132 = vunpack.c.l.b16 %v4550
          %v5133 = vunpack.c.l.b16 %v4551
          %v5134 = vunpack.c.l.b16 %v4552
          %v5135 = vunpack.c.l.b16 %v4553
          %v5136 = vunpack.c.l.b16 %v4554
          %v5137 = vunpack.c.l.b16 %v4555
          %v5138 = vunpack.c.l.b16 %v4556
          %v5139 = vunpack.c.l.b16 %v4557
          %v5140 = vunpack.c.l.b16 %v4558
          %v5141 = vunpack.c.l.b16 %v4559
          %v5142 = vunpack.c.l.b16 %v4560
          %v5143 = vunpack.c.l.b16 %v4561
          %v5144 = vunpack.c.l.b16 %v4562
          %v5145 = vunpack.c.l.b16 %v4563
          %v5146 = vunpack.c.l.b16 %v4564
          %v5147 = vunpack.c.l.b16 %v4565
          %v5148 = vunpack.c.l.b16 %v4566
          %v5149 = vunpack.c.l.b16 %v4567
          %v5150 = vunpack.c.l.b16 %v4568
          %v5151 = vunpack.c.l.b16 %v4569
          %v5152 = vunpack.c.l.b16 %v4570
          %v5153 = vunpack.c.l.b16 %v4571
          %v5154 = vunpack.c.l.b16 %v4572
          %v5155 = vunpack.c.l.b16 %v4573
          %v5156 = vunpack.c.l.b16 %v4574
          %v5157 = vunpack.c.l.b16 %v4575
          %v5158 = vunpack.c.l.b16 %v4576
          %v5159 = vunpack.c.l.b16 %v4577
          %v5160 = vunpack.c.l.b16 %v4578
          %v5161 = vunpack.c.l.b16 %v4579
          %v5162 = vunpack.c.l.b16 %v4580
          %v5163 = vunpack.c.l.b16 %v4581
          %v5164 = vunpack.c.l.b16 %v4582
          %v5165 = vunpack.c.l.b16 %v4583
          %v5166 = vunpack.c.l.b16 %v4584
          %v5167 = vunpack.c.l.b16 %v4585
          %v5168 = vunpack.c.l.b16 %v4586
          %v5169 = vunpack.c.l.b16 %v4587
          %v5170 = vunpack.c.l.b16 %v4588
          %v5171 = vunpack.c.l.b16 %v4589
          %v5172 = vunpack.c.l.b16 %v4590
          %v5173 = vunpack.c.l.b16 %v4591
          %v5174 = vunpack.c.l.b16 %v4592
          %v5175 = vunpack.c.l.b16 %v4593
          %v5176 = vunpack.c.l.b16 %v4594
          %v5177 = vunpack.c.l.b16 %v4595
          %v5178 = vunpack.c.l.b16 %v4596
          %v5179 = vunpack.c.l.b16 %v4597
          %v5180 = vunpack.c.l.b16 %v4598
          %v5181 = vunpack.c.l.b16 %v4599
          %v5182 = vunpack.c.l.b16 %v4600
          %v5183 = vunpack.c.l.b16 %v4601
          %v5184 = vunpack.c.l.b16 %v4602
          %v5185 = vunpack.c.l.b16 %v4603
          %v5186 = vunpack.c.l.b16 %v4604
          %v5187 = vunpack.c.l.b16 %v4605
          %v5188 = vunpack.c.l.b16 %v4606
          %v5189 = vunpack.c.l.b16 %v4607
          %v5190 = vunpack.c.l.b16 %v4608
          %v5191 = vunpack.c.l.b16 %v4609
          %v5192 = vunpack.c.l.b16 %v4610
          %v5193 = vunpack.c.l.b16 %v4611
          %v5194 = vunpack.c.l.b16 %v4612
          %v5195 = vunpack.c.l.b16 %v4613
          %v5196 = vunpack.c.l.b16 %v4614
          %v5197 = vunpack.c.l.b16 %v4615
          %v5198 = vunpack.c.l.b16 %v4616
          %v5199 = vunpack.c.l.b16 %v4617
          %v5200 = vunpack.c.l.b16 %v4618
          %v5201 = vunpack.c.l.b16 %v4619
          %v5202 = vunpack.c.l.b16 %v4620
          %v5203 = vunpack.c.l.b16 %v4621
          %v5204 = vunpack.c.l.b16 %v4622
          %v5205 = vunpack.c.l.b16 %v4623
          %v5206 = vunpack.c.l.b16 %v4624
          %v5207 = vunpack.c.l.b16 %v4625
          %v5208 = vunpack.c.l.b16 %v4626
          %v5209 = vunpack.c.l.b16 %v4627
          %v5210 = vunpack.c.l.b16 %v4628
          %v5211 = vunpack.c.l.b16 %v4629
          %v5212 = vunpack.c.l.b16 %v4630
          %v5213 = vunpack.c.l.b16 %v4631
          %v5214 = vunpack.c.l.b16 %v4632
          %v5215 = vunpack.c.l.b16 %v4633
          %v5216 = vunpack.c.l.b16 %v4634
          %v5217 = vunpack.c.l.b16 %v4635
          %v5218 = vunpack.c.l.b16 %v4636
          %v5219 = vunpack.c.l.b16 %v4637
          %v5220 = vunpack.c.l.b16 %v4638
          %v5221 = vunpack.c.l.b16 %v4639
          %v5222 = vunpack.c.l.b16 %v4640
          %v5223 = vunpack.c.l.b16 %v4641
          %v5224 = vunpack.c.l.b16 %v4642
          %v5225 = vunpack.c.l.b16 %v4643
          %v5226 = vunpack.c.l.b16 %v4644
          %v5227 = vunpack.c.l.b16 %v4645
          %v5228 = vunpack.c.l.b16 %v4646
          %v5229 = vunpack.c.l.b16 %v4647
          %v5230 = vunpack.c.l.b16 %v4648
          %v5231 = vunpack.c.l.b16 %v4649
          %v5232 = vunpack.c.l.b16 %v4650
          %v5233 = vunpack.c.l.b16 %v4651
          %v5234 = vunpack.c.l.b16 %v4652
          %v5235 = vunpack.c.l.b16 %v4653
          %v5236 = vunpack.c.l.b16 %v4654
          %v5237 = vunpack.c.l.b16 %v4655
          %v5238 = vunpack.c.l.b16 %v4656
          %v5239 = vunpack.c.l.b16 %v4657
          %v5240 = vunpack.c.l.b16 %v4658
          %v5241 = vunpack.c.l.b16 %v4659
          %v5242 = vunpack.c.l.b16 %v4660
          %v5243 = vunpack.c.l.b16 %v4661
          %v5244 = vunpack.c.l.b16 %v4662
          %v5245 = vunpack.c.l.b16 %v4663
          %v5246 = vunpack.c.l.b16 %v4664
          %v5247 = vunpack.c.l.b16 %v4665
          %v5248 = vunpack.c.l.b16 %v4666
          %v5249 = vunpack.c.l.b16 %v4667
          %v5250 = vunpack.c.l.b16 %v4668
          %v5251 = vunpack.c.l.b16 %v4669
          %v5252 = vunpack.c.l.b16 %v4670
          %v5253 = vunpack.c.l.b16 %v4671
          %v5254 = vunpack.c.l.b16 %v4672
          %v5255 = vunpack.c.l.b16 %v4673
          %v5256 = vunpack.c.l.b16 %v4674
          %v5257 = vunpack.c.l.b16 %v4675
          %v5258 = vunpack.c.l.b16 %v4676
          %v5259 = vunpack.c.l.b16 %v4677
          %v5260 = vunpack.c.l.b16 %v4678
          %v5261 = vunpack.c.l.b16 %v4679
          %v5262 = vunpack.c.l.b16 %v4680
          %v5263 = vunpack.c.l.b16 %v4681
          %v5264 = vunpack.c.l.b16 %v4682
          %v5265 = vunpack.c.l.b16 %v4683
          %v5266 = vunpack.c.l.b16 %v4684
          %v5267 = vunpack.c.l.b16 %v4685
          %v5268 = vunpack.c.l.b16 %v4686
          %v5269 = vunpack.c.l.b16 %v4687
          %v5270 = vunpack.c.l.b16 %v4688
          %v5271 = vunpack.c.l.b16 %v4689
          %v5272 = vunpack.c.l.b16 %v4690
          %v5273 = vunpack.c.l.b16 %v4691
          %v5274 = vunpack.c.l.b16 %v4692
          %v5275 = vunpack.c.l.b16 %v4693
          %v5276 = vunpack.c.l.b16 %v4694
          %v5277 = vunpack.c.l.b16 %v4695
          %v5278 = vunpack.c.l.b16 %v4696
          %v5279 = vunpack.c.l.b16 %v4697
          %v5280 = vunpack.c.l.b16 %v4698
          %v5281 = vunpack.c.l.b16 %v4699
          %v5282 = vunpack.c.l.b16 %v4700
          %v5283 = vunpack.c.l.b16 %v4701
          %v5284 = vunpack.c.l.b16 %v4702
          %v5285 = vunpack.c.l.b16 %v4703
          %v5286 = vunpack.c.l.b16 %v4704
          %v5287 = vunpack.c.l.b16 %v4705
          %v5288 = vunpack.c.l.b16 %v4706
          %v5289 = vunpack.c.l.b16 %v4707
          %v5290 = vunpack.c.l.b16 %v4708
          %v5291 = vunpack.c.l.b16 %v4709
          %v5292 = vunpack.c.l.b16 %v4710
          %v5293 = vunpack.c.l.b16 %v4711
          %v5294 = vunpack.c.l.b16 %v4712
          %v5295 = vunpack.c.l.b16 %v4713
          %v5296 = vunpack.c.l.b16 %v4714
          %v5297 = vunpack.c.l.b16 %v4715
          %v5298 = vunpack.c.l.b16 %v4716
          %v5299 = vpack.c.b16 %v5012, %v5011
          %v5300 = vpack.c.b16 %v5014, %v5013
          %v5301 = vpack.c.b16 %v5016, %v5015
          %v5302 = vpack.c.b16 %v5018, %v5017
          %v5303 = vpack.c.b16 %v5020, %v5019
          %v5304 = vpack.c.b16 %v5022, %v5021
          %v5305 = vpack.c.b16 %v5024, %v5023
          %v5306 = vpack.c.b16 %v5026, %v5025
          %v5307 = vpack.c.b16 %v5028, %v5027
          %v5308 = vpack.c.b16 %v5030, %v5029
          %v5309 = vpack.c.b16 %v5032, %v5031
          %v5310 = vpack.c.b16 %v5034, %v5033
          %v5311 = vpack.c.b16 %v5036, %v5035
          %v5312 = vpack.c.b16 %v5038, %v5037
          %v5313 = vpack.c.b16 %v5040, %v5039
          %v5314 = vpack.c.b16 %v5042, %v5041
          %v5315 = vpack.c.b16 %v5044, %v5043
          %v5316 = vpack.c.b16 %v5046, %v5045
          %v5317 = vpack.c.b16 %v5048, %v5047
          %v5318 = vpack.c.b16 %v5050, %v5049
          %v5319 = vpack.c.b16 %v5052, %v5051
          %v5320 = vpack.c.b16 %v5054, %v5053
          %v5321 = vpack.c.b16 %v5056, %v5055
          %v5322 = vpack.c.b16 %v5058, %v5057
          %v5323 = vpack.c.b16 %v5060, %v5059
          %v5324 = vpack.c.b16 %v5062, %v5061
          %v5325 = vpack.c.b16 %v5064, %v5063
          %v5326 = vpack.c.b16 %v5066, %v5065
          %v5327 = vpack.c.b16 %v5068, %v5067
          %v5328 = vpack.c.b16 %v5070, %v5069
          %v5329 = vpack.c.b16 %v5072, %v5071
          %v5330 = vpack.c.b16 %v5074, %v5073
          %v5331 = vpack.c.b16 %v5076, %v5075
          %v5332 = vpack.c.b16 %v5078, %v5077
          %v5333 = vpack.c.b16 %v5080, %v5079
          %v5334 = vpack.c.b16 %v5082, %v5081
          %v5335 = vpack.c.b16 %v5084, %v5083
          %v5336 = vpack.c.b16 %v5086, %v5085
          %v5337 = vpack.c.b16 %v5088, %v5087
          %v5338 = vpack.c.b16 %v5090, %v5089
          %v5339 = vpack.c.b16 %v5092, %v5091
          %v5340 = vpack.c.b16 %v5094, %v5093
          %v5341 = vpack.c.b16 %v5096, %v5095
          %v5342 = vpack.c.b16 %v5098, %v5097
          %v5343 = vpack.c.b16 %v5100, %v5099
          %v5344 = vpack.c.b16 %v5102, %v5101
          %v5345 = vpack.c.b16 %v5104, %v5103
          %v5346 = vpack.c.b16 %v5106, %v5105
          %v5347 = vpack.c.b16 %v5108, %v5107
          %v5348 = vpack.c.b16 %v5110, %v5109
          %v5349 = vpack.c.b16 %v5112, %v5111
          %v5350 = vpack.c.b16 %v5114, %v5113
          %v5351 = vpack.c.b16 %v5116, %v5115
          %v5352 = vpack.c.b16 %v5118, %v5117
          %v5353 = vpack.c.b16 %v5120, %v5119
          %v5354 = vpack.c.b16 %v5122, %v5121
          %v5355 = vpack.c.b16 %v5124, %v5123
          %v5356 = vpack.c.b16 %v5126, %v5125
          %v5357 = vpack.c.b16 %v5128, %v5127
          %v5358 = vpack.c.b16 %v5130, %v5129
          %v5359 = vpack.c.b16 %v5132, %v5131
          %v5360 = vpack.c.b16 %v5134, %v5133
          %v5361 = vpack.c.b16 %v5136, %v5135
          %v5362 = vpack.c.b16 %v5138, %v5137
          %v5363 = vpack.c.b16 %v5140, %v5139
          %v5364 = vpack.c.b16 %v5142, %v5141
          %v5365 = vpack.c.b16 %v5144, %v5143
          %v5366 = vpack.c.b16 %v5146, %v5145
          %v5367 = vpack.c.b16 %v5148, %v5147
          %v5368 = vpack.c.b16 %v5150, %v5149
          %v5369 = vpack.c.b16 %v5152, %v5151
          %v5370 = vpack.c.b16 %v5154, %v5153
          %v5371 = vpack.c.b16 %v5156, %v5155
          %v5372 = vpack.c.b16 %v5158, %v5157
          %v5373 = vpack.c.b16 %v5160, %v5159
          %v5374 = vpack.c.b16 %v5162, %v5161
          %v5375 = vpack.c.b16 %v5164, %v5163
          %v5376 = vpack.c.b16 %v5166, %v5165
          %v5377 = vpack.c.b16 %v5168, %v5167
          %v5378 = vpack.c.b16 %v5170, %v5169
          %v5379 = vpack.c.b16 %v5172, %v5171
          %v5380 = vpack.c.b16 %v5174, %v5173
          %v5381 = vpack.c.b16 %v5176, %v5175
          %v5382 = vpack.c.b16 %v5178, %v5177
          %v5383 = vpack.c.b16 %v5180, %v5179
          %v5384 = vpack.c.b16 %v5182, %v5181
          %v5385 = vpack.c.b16 %v5184, %v5183
          %v5386 = vpack.c.b16 %v5186, %v5185
          %v5387 = vpack.c.b16 %v5188, %v5187
          %v5388 = vpack.c.b16 %v5190, %v5189
          %v5389 = vpack.c.b16 %v5192, %v5191
          %v5390 = vpack.c.b16 %v5194, %v5193
          %v5391 = vpack.c.b16 %v5196, %v5195
          %v5392 = vpack.c.b16 %v5198, %v5197
          %v5393 = vpack.c.b16 %v5200, %v5199
          %v5394 = vpack.c.b16 %v5202, %v5201
          %v5395 = vpack.c.b16 %v5204, %v5203
          %v5396 = vpack.c.b16 %v5206, %v5205
          %v5397 = vpack.c.b16 %v5208, %v5207
          %v5398 = vpack.c.b16 %v5210, %v5209
          %v5399 = vpack.c.b16 %v5212, %v5211
          %v5400 = vpack.c.b16 %v5214, %v5213
          %v5401 = vpack.c.b16 %v5216, %v5215
          %v5402 = vpack.c.b16 %v5218, %v5217
          %v5403 = vpack.c.b16 %v5220, %v5219
          %v5404 = vpack.c.b16 %v5222, %v5221
          %v5405 = vpack.c.b16 %v5224, %v5223
          %v5406 = vpack.c.b16 %v5226, %v5225
          %v5407 = vpack.c.b16 %v5228, %v5227
          %v5408 = vpack.c.b16 %v5230, %v5229
          %v5409 = vpack.c.b16 %v5232, %v5231
          %v5410 = vpack.c.b16 %v5234, %v5233
          %v5411 = vpack.c.b16 %v5236, %v5235
          %v5412 = vpack.c.b16 %v5238, %v5237
          %v5413 = vpack.c.b16 %v5240, %v5239
          %v5414 = vpack.c.b16 %v5242, %v5241
          %v5415 = vpack.c.b16 %v5244, %v5243
          %v5416 = vpack.c.b16 %v5246, %v5245
          %v5417 = vpack.c.b16 %v5248, %v5247
          %v5418 = vpack.c.b16 %v5250, %v5249
          %v5419 = vpack.c.b16 %v5252, %v5251
          %v5420 = vpack.c.b16 %v5254, %v5253
          %v5421 = vpack.c.b16 %v5256, %v5255
          %v5422 = vpack.c.b16 %v5258, %v5257
          %v5423 = vpack.c.b16 %v5260, %v5259
          %v5424 = vpack.c.b16 %v5262, %v5261
          %v5425 = vpack.c.b16 %v5264, %v5263
          %v5426 = vpack.c.b16 %v5266, %v5265
          %v5427 = vpack.c.b16 %v5268, %v5267
          %v5428 = vpack.c.b16 %v5270, %v5269
          %v5429 = vpack.c.b16 %v5272, %v5271
          %v5430 = vpack.c.b16 %v5274, %v5273
          %v5431 = vpack.c.b16 %v5276, %v5275
          %v5432 = vpack.c.b16 %v5278, %v5277
          %v5433 = vpack.c.b16 %v5280, %v5279
          %v5434 = vpack.c.b16 %v5282, %v5281
          %v5435 = vpack.c.b16 %v5284, %v5283
          %v5436 = vpack.c.b16 %v5286, %v5285
          %v5437 = vpack.c.b16 %v5288, %v5287
          %v5438 = vpack.c.b16 %v5290, %v5289
          %v5439 = vpack.c.b16 %v5292, %v5291
          %v5440 = vpack.c.b16 %v5294, %v5293
          %v5441 = vpack.c.b16 %v5296, %v5295
          %v5442 = vpack.c.b16 %v5298, %v5297
          %5587 = vmatprep.subr.bf16.mxu0 0
          %5588 = vmatpush1.bf16.msra.mxu0 %v5306
          %5589 = vmatprep.subr.bf16.mxu0 0
          %5590 = vmatpush1.bf16.msra.mxu0 %v5305
          %5591 = vmatprep.subr.bf16.mxu0 0
          %5592 = vmatpush1.bf16.msra.mxu0 %v5304
          %5593 = vmatprep.subr.bf16.mxu0 0
          %5594 = vmatpush1.bf16.msra.mxu0 %v5303
          %5595 = vmatprep.subr.bf16.mxu0 0
          %5596 = vmatpush1.bf16.msra.mxu0 %v5302
          %5597 = vmatprep.subr.bf16.mxu0 0
          %5598 = vmatpush1.bf16.msra.mxu0 %v5301
          %5599 = vmatprep.subr.bf16.mxu0 0
          %5600 = vmatpush1.bf16.msra.mxu0 %v5300
          %5601 = vmatprep.subr.bf16.mxu0 0
          %5602 = vmatpush1.bf16.msra.mxu0 %v5299
          %5603 = vmatprep.subr.bf16.mxu0 0
          %5604 = vmatpush2.bf16.msra.mxu0 %v5314
          %5605 = vmatprep.subr.bf16.mxu0 0
          %5606 = vmatpush2.bf16.msra.mxu0 %v5313
          %5607 = vmatprep.subr.bf16.mxu0 0
          %5608 = vmatpush2.bf16.msra.mxu0 %v5312
          %5609 = vmatprep.subr.bf16.mxu0 0
          %5610 = vmatpush2.bf16.msra.mxu0 %v5311
          %5611 = vmatprep.subr.bf16.mxu0 0
          %5612 = vmatpush2.bf16.msra.mxu0 %v5310
          %5613 = vmatprep.subr.bf16.mxu0 0
          %5614 = vmatpush2.bf16.msra.mxu0 %v5309
          %5615 = vmatprep.subr.bf16.mxu0 0
          %5616 = vmatpush2.bf16.msra.mxu0 %v5308
          %5617 = vmatprep.subr.bf16.mxu0 0
          %5618 = vmatpush2.bf16.msra.mxu0 %v5307
          %5619 = vmatprep.mubr.bf16.mxu0 %v3758
          %5620 = vmatmul.mubr.bf16.gmra.mxu0 %v3757
          %v5621 = vpop.f32.mrf.mxu0
          %v5622 = vadd.f32 %v4721, %v5621
          %v5623 = vpop.f32.mrf.mxu0
          %v5624 = vpop.f32.mrf.mxu0
          %v5625 = vadd.f32 %v4721, %v5624
          %v5626 = vpop.f32.mrf.mxu0
          %5627 = vmatprep.mubr.bf16.mxu0 %v3760
          %5628 = vmatmul.mubr.bf16.gmra.mxu0 %v3759
          %v5629 = vpop.f32.mrf.mxu0
          %v5630 = vadd.f32 %v4721, %v5629
          %v5631 = vpop.f32.mrf.mxu0
          %v5632 = vpop.f32.mrf.mxu0
          %v5633 = vadd.f32 %v4721, %v5632
          %v5634 = vpop.f32.mrf.mxu0
          %5635 = vmatprep.mubr.bf16.mxu0 %v3762
          %5636 = vmatmul.mubr.bf16.gmra.mxu0 %v3761
          %v5637 = vpop.f32.mrf.mxu0
          %v5638 = vadd.f32 %v4721, %v5637
          %v5639 = vpop.f32.mrf.mxu0
          %v5640 = vpop.f32.mrf.mxu0
          %v5641 = vadd.f32 %v4721, %v5640
          %v5642 = vpop.f32.mrf.mxu0
          %5643 = vmatprep.mubr.bf16.mxu0 %v3764
          %5644 = vmatmul.mubr.bf16.gmra.mxu0 %v3763
          %v5645 = vpop.f32.mrf.mxu0
          %v5646 = vadd.f32 %v4721, %v5645
          %v5647 = vpop.f32.mrf.mxu0
          %v5648 = vpop.f32.mrf.mxu0
          %v5649 = vadd.f32 %v4721, %v5648
          %v5650 = vpop.f32.mrf.mxu0
          %5651 = vmatprep.mubr.bf16.mxu0 %v3766
          %5652 = vmatmul.mubr.bf16.gmra.mxu0 %v3765
          %v5653 = vpop.f32.mrf.mxu0
          %v5654 = vadd.f32 %v4721, %v5653
          %v5655 = vpop.f32.mrf.mxu0
          %v5656 = vpop.f32.mrf.mxu0
          %v5657 = vadd.f32 %v4721, %v5656
          %v5658 = vpop.f32.mrf.mxu0
          %5659 = vmatprep.mubr.bf16.mxu0 %v3768
          %5660 = vmatmul.mubr.bf16.gmra.mxu0 %v3767
          %v5661 = vpop.f32.mrf.mxu0
          %v5662 = vadd.f32 %v4721, %v5661
          %v5663 = vpop.f32.mrf.mxu0
          %v5664 = vpop.f32.mrf.mxu0
          %v5665 = vadd.f32 %v4721, %v5664
          %v5666 = vpop.f32.mrf.mxu0
          %5667 = vmatprep.mubr.bf16.mxu0 %v3770
          %5668 = vmatmul.mubr.bf16.gmra.mxu0 %v3769
          %v5669 = vpop.f32.mrf.mxu0
          %v5670 = vadd.f32 %v4721, %v5669
          %v5671 = vpop.f32.mrf.mxu0
          %v5672 = vpop.f32.mrf.mxu0
          %v5673 = vadd.f32 %v4721, %v5672
          %v5674 = vpop.f32.mrf.mxu0
          %5675 = vmatprep.mubr.bf16.mxu0 %v3772
          %5676 = vmatmul.mubr.bf16.gmra.mxu0 %v3771
          %v5677 = vpop.f32.mrf.mxu0
          %v5678 = vadd.f32 %v4721, %v5677
          %v5679 = vpop.f32.mrf.mxu0
          %v5680 = vpop.f32.mrf.mxu0
          %v5681 = vadd.f32 %v4721, %v5680
          %v5682 = vpop.f32.mrf.mxu0
          %5683 = vdwg.mxu0
          %5684 = vmatprep.subr.bf16.mxu0 0
          %5685 = vmatpush1.bf16.msra.mxu0 %v5322
          %5686 = vmatprep.subr.bf16.mxu0 0
          %5687 = vmatpush1.bf16.msra.mxu0 %v5321
          %5688 = vmatprep.subr.bf16.mxu0 0
          %5689 = vmatpush1.bf16.msra.mxu0 %v5320
          %5690 = vmatprep.subr.bf16.mxu0 0
          %5691 = vmatpush1.bf16.msra.mxu0 %v5319
          %5692 = vmatprep.subr.bf16.mxu0 0
          %5693 = vmatpush1.bf16.msra.mxu0 %v5318
          %5694 = vmatprep.subr.bf16.mxu0 0
          %5695 = vmatpush1.bf16.msra.mxu0 %v5317
          %5696 = vmatprep.subr.bf16.mxu0 0
          %5697 = vmatpush1.bf16.msra.mxu0 %v5316
          %5698 = vmatprep.subr.bf16.mxu0 0
          %5699 = vmatpush1.bf16.msra.mxu0 %v5315
          %5700 = vmatprep.subr.bf16.mxu0 0
          %5701 = vmatpush2.bf16.msra.mxu0 %v5330
          %5702 = vmatprep.subr.bf16.mxu0 0
          %5703 = vmatpush2.bf16.msra.mxu0 %v5329
          %5704 = vmatprep.subr.bf16.mxu0 0
          %5705 = vmatpush2.bf16.msra.mxu0 %v5328
          %5706 = vmatprep.subr.bf16.mxu0 0
          %5707 = vmatpush2.bf16.msra.mxu0 %v5327
          %5708 = vmatprep.subr.bf16.mxu0 0
          %5709 = vmatpush2.bf16.msra.mxu0 %v5326
          %5710 = vmatprep.subr.bf16.mxu0 0
          %5711 = vmatpush2.bf16.msra.mxu0 %v5325
          %5712 = vmatprep.subr.bf16.mxu0 0
          %5713 = vmatpush2.bf16.msra.mxu0 %v5324
          %5714 = vmatprep.subr.bf16.mxu0 0
          %5715 = vmatpush2.bf16.msra.mxu0 %v5323
          %5716 = vmatprep.mubr.bf16.mxu0 %v3838
          %5717 = vmatmul.mubr.bf16.gmra.mxu0 %v3837
          %v5718 = vpop.f32.mrf.mxu0
          %v5719 = vadd.f32 %v5622, %v5718
          %v5720 = vpop.f32.mrf.mxu0
          %v5721 = vpop.f32.mrf.mxu0
          %v5722 = vadd.f32 %v5625, %v5721
          %v5723 = vpop.f32.mrf.mxu0
          %5724 = vmatprep.mubr.bf16.mxu0 %v3840
          %5725 = vmatmul.mubr.bf16.gmra.mxu0 %v3839
          %v5726 = vpop.f32.mrf.mxu0
          %v5727 = vadd.f32 %v5630, %v5726
          %v5728 = vpop.f32.mrf.mxu0
          %v5729 = vpop.f32.mrf.mxu0
          %v5730 = vadd.f32 %v5633, %v5729
          %v5731 = vpop.f32.mrf.mxu0
          %5732 = vmatprep.mubr.bf16.mxu0 %v3842
          %5733 = vmatmul.mubr.bf16.gmra.mxu0 %v3841
          %v5734 = vpop.f32.mrf.mxu0
          %v5735 = vadd.f32 %v5638, %v5734
          %v5736 = vpop.f32.mrf.mxu0
          %v5737 = vpop.f32.mrf.mxu0
          %v5738 = vadd.f32 %v5641, %v5737
          %v5739 = vpop.f32.mrf.mxu0
          %5740 = vmatprep.mubr.bf16.mxu0 %v3844
          %5741 = vmatmul.mubr.bf16.gmra.mxu0 %v3843
          %v5742 = vpop.f32.mrf.mxu0
          %v5743 = vadd.f32 %v5646, %v5742
          %v5744 = vpop.f32.mrf.mxu0
          %v5745 = vpop.f32.mrf.mxu0
          %v5746 = vadd.f32 %v5649, %v5745
          %v5747 = vpop.f32.mrf.mxu0
          %5748 = vmatprep.mubr.bf16.mxu0 %v3846
          %5749 = vmatmul.mubr.bf16.gmra.mxu0 %v3845
          %v5750 = vpop.f32.mrf.mxu0
          %v5751 = vadd.f32 %v5654, %v5750
          %v5752 = vpop.f32.mrf.mxu0
          %v5753 = vpop.f32.mrf.mxu0
          %v5754 = vadd.f32 %v5657, %v5753
          %v5755 = vpop.f32.mrf.mxu0
          %5756 = vmatprep.mubr.bf16.mxu0 %v3848
          %5757 = vmatmul.mubr.bf16.gmra.mxu0 %v3847
          %v5758 = vpop.f32.mrf.mxu0
          %v5759 = vadd.f32 %v5662, %v5758
          %v5760 = vpop.f32.mrf.mxu0
          %v5761 = vpop.f32.mrf.mxu0
          %v5762 = vadd.f32 %v5665, %v5761
          %v5763 = vpop.f32.mrf.mxu0
          %5764 = vmatprep.mubr.bf16.mxu0 %v3850
          %5765 = vmatmul.mubr.bf16.gmra.mxu0 %v3849
          %v5766 = vpop.f32.mrf.mxu0
          %v5767 = vadd.f32 %v5670, %v5766
          %v5768 = vpop.f32.mrf.mxu0
          %v5769 = vpop.f32.mrf.mxu0
          %v5770 = vadd.f32 %v5673, %v5769
          %v5771 = vpop.f32.mrf.mxu0
          %5772 = vmatprep.mubr.bf16.mxu0 %v3852
          %5773 = vmatmul.mubr.bf16.gmra.mxu0 %v3851
          %v5774 = vpop.f32.mrf.mxu0
          %v5775 = vadd.f32 %v5678, %v5774
          %v5776 = vpop.f32.mrf.mxu0
          %v5777 = vpop.f32.mrf.mxu0
          %v5778 = vadd.f32 %v5681, %v5777
          %v5779 = vpop.f32.mrf.mxu0
          %5780 = vdwg.mxu0
          %5781 = vmatprep.subr.bf16.mxu0 0
          %5782 = vmatpush1.bf16.msra.mxu0 %v5338
          %5783 = vmatprep.subr.bf16.mxu0 0
          %5784 = vmatpush1.bf16.msra.mxu0 %v5337
          %5785 = vmatprep.subr.bf16.mxu0 0
          %5786 = vmatpush1.bf16.msra.mxu0 %v5336
          %5787 = vmatprep.subr.bf16.mxu0 0
          %5788 = vmatpush1.bf16.msra.mxu0 %v5335
          %5789 = vmatprep.subr.bf16.mxu0 0
          %5790 = vmatpush1.bf16.msra.mxu0 %v5334
          %5791 = vmatprep.subr.bf16.mxu0 0
          %5792 = vmatpush1.bf16.msra.mxu0 %v5333
          %5793 = vmatprep.subr.bf16.mxu0 0
          %5794 = vmatpush1.bf16.msra.mxu0 %v5332
          %5795 = vmatprep.subr.bf16.mxu0 0
          %5796 = vmatpush1.bf16.msra.mxu0 %v5331
          %5797 = vmatprep.subr.bf16.mxu0 0
          %5798 = vmatpush2.bf16.msra.mxu0 %v5346
          %5799 = vmatprep.subr.bf16.mxu0 0
          %5800 = vmatpush2.bf16.msra.mxu0 %v5345
          %5801 = vmatprep.subr.bf16.mxu0 0
          %5802 = vmatpush2.bf16.msra.mxu0 %v5344
          %5803 = vmatprep.subr.bf16.mxu0 0
          %5804 = vmatpush2.bf16.msra.mxu0 %v5343
          %5805 = vmatprep.subr.bf16.mxu0 0
          %5806 = vmatpush2.bf16.msra.mxu0 %v5342
          %5807 = vmatprep.subr.bf16.mxu0 0
          %5808 = vmatpush2.bf16.msra.mxu0 %v5341
          %5809 = vmatprep.subr.bf16.mxu0 0
          %5810 = vmatpush2.bf16.msra.mxu0 %v5340
          %5811 = vmatprep.subr.bf16.mxu0 0
          %5812 = vmatpush2.bf16.msra.mxu0 %v5339
          %5813 = vmatprep.mubr.bf16.mxu0 %v3918
          %5814 = vmatmul.mubr.bf16.gmra.mxu0 %v3917
          %v5815 = vpop.f32.mrf.mxu0
          %v5816 = vadd.f32 %v5719, %v5815
          %v5817 = vpop.f32.mrf.mxu0
          %v5818 = vpop.f32.mrf.mxu0
          %v5819 = vadd.f32 %v5722, %v5818
          %v5820 = vpop.f32.mrf.mxu0
          %5821 = vmatprep.mubr.bf16.mxu0 %v3920
          %5822 = vmatmul.mubr.bf16.gmra.mxu0 %v3919
          %v5823 = vpop.f32.mrf.mxu0
          %v5824 = vadd.f32 %v5727, %v5823
          %v5825 = vpop.f32.mrf.mxu0
          %v5826 = vpop.f32.mrf.mxu0
          %v5827 = vadd.f32 %v5730, %v5826
          %v5828 = vpop.f32.mrf.mxu0
          %5829 = vmatprep.mubr.bf16.mxu0 %v3922
          %5830 = vmatmul.mubr.bf16.gmra.mxu0 %v3921
          %v5831 = vpop.f32.mrf.mxu0
          %v5832 = vadd.f32 %v5735, %v5831
          %v5833 = vpop.f32.mrf.mxu0
          %v5834 = vpop.f32.mrf.mxu0
          %v5835 = vadd.f32 %v5738, %v5834
          %v5836 = vpop.f32.mrf.mxu0
          %5837 = vmatprep.mubr.bf16.mxu0 %v3924
          %5838 = vmatmul.mubr.bf16.gmra.mxu0 %v3923
          %v5839 = vpop.f32.mrf.mxu0
          %v5840 = vadd.f32 %v5743, %v5839
          %v5841 = vpop.f32.mrf.mxu0
          %v5842 = vpop.f32.mrf.mxu0
          %v5843 = vadd.f32 %v5746, %v5842
          %v5844 = vpop.f32.mrf.mxu0
          %5845 = vmatprep.mubr.bf16.mxu0 %v3926
          %5846 = vmatmul.mubr.bf16.gmra.mxu0 %v3925
          %v5847 = vpop.f32.mrf.mxu0
          %v5848 = vadd.f32 %v5751, %v5847
          %v5849 = vpop.f32.mrf.mxu0
          %v5850 = vpop.f32.mrf.mxu0
          %v5851 = vadd.f32 %v5754, %v5850
          %v5852 = vpop.f32.mrf.mxu0
          %5853 = vmatprep.mubr.bf16.mxu0 %v3928
          %5854 = vmatmul.mubr.bf16.gmra.mxu0 %v3927
          %v5855 = vpop.f32.mrf.mxu0
          %v5856 = vadd.f32 %v5759, %v5855
          %v5857 = vpop.f32.mrf.mxu0
          %v5858 = vpop.f32.mrf.mxu0
          %v5859 = vadd.f32 %v5762, %v5858
          %v5860 = vpop.f32.mrf.mxu0
          %5861 = vmatprep.mubr.bf16.mxu0 %v3930
          %5862 = vmatmul.mubr.bf16.gmra.mxu0 %v3929
          %v5863 = vpop.f32.mrf.mxu0
          %v5864 = vadd.f32 %v5767, %v5863
          %v5865 = vpop.f32.mrf.mxu0
          %v5866 = vpop.f32.mrf.mxu0
          %v5867 = vadd.f32 %v5770, %v5866
          %v5868 = vpop.f32.mrf.mxu0
          %5869 = vmatprep.mubr.bf16.mxu0 %v3932
          %5870 = vmatmul.mubr.bf16.gmra.mxu0 %v3931
          %v5871 = vpop.f32.mrf.mxu0
          %v5872 = vadd.f32 %v5775, %v5871
          %v5873 = vpop.f32.mrf.mxu0
          %v5874 = vpop.f32.mrf.mxu0
          %v5875 = vadd.f32 %v5778, %v5874
          %v5876 = vpop.f32.mrf.mxu0
          %5877 = vdwg.mxu0
          %5878 = vmatprep.subr.bf16.mxu0 0
          %5879 = vmatpush1.bf16.msra.mxu0 %v5354
          %5880 = vmatprep.subr.bf16.mxu0 0
          %5881 = vmatpush1.bf16.msra.mxu0 %v5353
          %5882 = vmatprep.subr.bf16.mxu0 0
          %5883 = vmatpush1.bf16.msra.mxu0 %v5352
          %5884 = vmatprep.subr.bf16.mxu0 0
          %5885 = vmatpush1.bf16.msra.mxu0 %v5351
          %5886 = vmatprep.subr.bf16.mxu0 0
          %5887 = vmatpush1.bf16.msra.mxu0 %v5350
          %5888 = vmatprep.subr.bf16.mxu0 0
          %5889 = vmatpush1.bf16.msra.mxu0 %v5349
          %5890 = vmatprep.subr.bf16.mxu0 0
          %5891 = vmatpush1.bf16.msra.mxu0 %v5348
          %5892 = vmatprep.subr.bf16.mxu0 0
          %5893 = vmatpush1.bf16.msra.mxu0 %v5347
          %5894 = vmatprep.subr.bf16.mxu0 0
          %5895 = vmatpush2.bf16.msra.mxu0 %v5362
          %5896 = vmatprep.subr.bf16.mxu0 0
          %5897 = vmatpush2.bf16.msra.mxu0 %v5361
          %5898 = vmatprep.subr.bf16.mxu0 0
          %5899 = vmatpush2.bf16.msra.mxu0 %v5360
          %5900 = vmatprep.subr.bf16.mxu0 0
          %5901 = vmatpush2.bf16.msra.mxu0 %v5359
          %5902 = vmatprep.subr.bf16.mxu0 0
          %5903 = vmatpush2.bf16.msra.mxu0 %v5358
          %5904 = vmatprep.subr.bf16.mxu0 0
          %5905 = vmatpush2.bf16.msra.mxu0 %v5357
          %5906 = vmatprep.subr.bf16.mxu0 0
          %5907 = vmatpush2.bf16.msra.mxu0 %v5356
          %5908 = vmatprep.subr.bf16.mxu0 0
          %5909 = vmatpush2.bf16.msra.mxu0 %v5355
          %5910 = vmatprep.mubr.bf16.mxu0 %v3998
          %5911 = vmatmul.mubr.bf16.gmra.mxu0 %v3997
          %v5912 = vpop.f32.mrf.mxu0
          %v5913 = vadd.f32 %v5816, %v5912
          %v5914 = vpop.f32.mrf.mxu0
          %v5915 = vpop.f32.mrf.mxu0
          %v5916 = vadd.f32 %v5819, %v5915
          %v5917 = vpop.f32.mrf.mxu0
          %5918 = vmatprep.mubr.bf16.mxu0 %v4000
          %5919 = vmatmul.mubr.bf16.gmra.mxu0 %v3999
          %v5920 = vpop.f32.mrf.mxu0
          %v5921 = vadd.f32 %v5824, %v5920
          %v5922 = vpop.f32.mrf.mxu0
          %v5923 = vpop.f32.mrf.mxu0
          %v5924 = vadd.f32 %v5827, %v5923
          %v5925 = vpop.f32.mrf.mxu0
          %5926 = vmatprep.mubr.bf16.mxu0 %v4002
          %5927 = vmatmul.mubr.bf16.gmra.mxu0 %v4001
          %v5928 = vpop.f32.mrf.mxu0
          %v5929 = vadd.f32 %v5832, %v5928
          %v5930 = vpop.f32.mrf.mxu0
          %v5931 = vpop.f32.mrf.mxu0
          %v5932 = vadd.f32 %v5835, %v5931
          %v5933 = vpop.f32.mrf.mxu0
          %5934 = vmatprep.mubr.bf16.mxu0 %v4004
          %5935 = vmatmul.mubr.bf16.gmra.mxu0 %v4003
          %v5936 = vpop.f32.mrf.mxu0
          %v5937 = vadd.f32 %v5840, %v5936
          %v5938 = vpop.f32.mrf.mxu0
          %v5939 = vpop.f32.mrf.mxu0
          %v5940 = vadd.f32 %v5843, %v5939
          %v5941 = vpop.f32.mrf.mxu0
          %5942 = vmatprep.mubr.bf16.mxu0 %v4006
          %5943 = vmatmul.mubr.bf16.gmra.mxu0 %v4005
          %v5944 = vpop.f32.mrf.mxu0
          %v5945 = vadd.f32 %v5848, %v5944
          %v5946 = vpop.f32.mrf.mxu0
          %v5947 = vpop.f32.mrf.mxu0
          %v5948 = vadd.f32 %v5851, %v5947
          %v5949 = vpop.f32.mrf.mxu0
          %5950 = vmatprep.mubr.bf16.mxu0 %v4008
          %5951 = vmatmul.mubr.bf16.gmra.mxu0 %v4007
          %v5952 = vpop.f32.mrf.mxu0
          %v5953 = vadd.f32 %v5856, %v5952
          %v5954 = vpop.f32.mrf.mxu0
          %v5955 = vpop.f32.mrf.mxu0
          %v5956 = vadd.f32 %v5859, %v5955
          %v5957 = vpop.f32.mrf.mxu0
          %5958 = vmatprep.mubr.bf16.mxu0 %v4010
          %5959 = vmatmul.mubr.bf16.gmra.mxu0 %v4009
          %v5960 = vpop.f32.mrf.mxu0
          %v5961 = vadd.f32 %v5864, %v5960
          %v5962 = vpop.f32.mrf.mxu0
          %v5963 = vpop.f32.mrf.mxu0
          %v5964 = vadd.f32 %v5867, %v5963
          %v5965 = vpop.f32.mrf.mxu0
          %5966 = vmatprep.mubr.bf16.mxu0 %v4012
          %5967 = vmatmul.mubr.bf16.gmra.mxu0 %v4011
          %v5968 = vpop.f32.mrf.mxu0
          %v5969 = vadd.f32 %v5872, %v5968
          %v5970 = vpop.f32.mrf.mxu0
          %v5971 = vpop.f32.mrf.mxu0
          %v5972 = vadd.f32 %v5875, %v5971
          %v5973 = vpop.f32.mrf.mxu0
          %5974 = vdwg.mxu0
          %5975 = vmatprep.subr.bf16.mxu0 0
          %5976 = vmatpush1.bf16.msra.mxu0 %v5370
          %5977 = vmatprep.subr.bf16.mxu0 0
          %5978 = vmatpush1.bf16.msra.mxu0 %v5369
          %5979 = vmatprep.subr.bf16.mxu0 0
          %5980 = vmatpush1.bf16.msra.mxu0 %v5368
          %5981 = vmatprep.subr.bf16.mxu0 0
          %5982 = vmatpush1.bf16.msra.mxu0 %v5367
          %5983 = vmatprep.subr.bf16.mxu0 0
          %5984 = vmatpush1.bf16.msra.mxu0 %v5366
          %5985 = vmatprep.subr.bf16.mxu0 0
          %5986 = vmatpush1.bf16.msra.mxu0 %v5365
          %5987 = vmatprep.subr.bf16.mxu0 0
          %5988 = vmatpush1.bf16.msra.mxu0 %v5364
          %5989 = vmatprep.subr.bf16.mxu0 0
          %5990 = vmatpush1.bf16.msra.mxu0 %v5363
          %5991 = vmatprep.subr.bf16.mxu0 0
          %5992 = vmatpush2.bf16.msra.mxu0 %v5378
          %5993 = vmatprep.subr.bf16.mxu0 0
          %5994 = vmatpush2.bf16.msra.mxu0 %v5377
          %5995 = vmatprep.subr.bf16.mxu0 0
          %5996 = vmatpush2.bf16.msra.mxu0 %v5376
          %5997 = vmatprep.subr.bf16.mxu0 0
          %5998 = vmatpush2.bf16.msra.mxu0 %v5375
          %5999 = vmatprep.subr.bf16.mxu0 0
          %6000 = vmatpush2.bf16.msra.mxu0 %v5374
          %6001 = vmatprep.subr.bf16.mxu0 0
          %6002 = vmatpush2.bf16.msra.mxu0 %v5373
          %6003 = vmatprep.subr.bf16.mxu0 0
          %6004 = vmatpush2.bf16.msra.mxu0 %v5372
          %6005 = vmatprep.subr.bf16.mxu0 0
          %6006 = vmatpush2.bf16.msra.mxu0 %v5371
          %6007 = vmatprep.mubr.bf16.mxu0 %v4078
          %6008 = vmatmul.mubr.bf16.gmra.mxu0 %v4077
          %v6009 = vpop.f32.mrf.mxu0
          %v6010 = vadd.f32 %v5913, %v6009
          %v6011 = vpop.f32.mrf.mxu0
          %v6012 = vpop.f32.mrf.mxu0
          %v6013 = vadd.f32 %v5916, %v6012
          %v6014 = vpop.f32.mrf.mxu0
          %6015 = vmatprep.mubr.bf16.mxu0 %v4080
          %6016 = vmatmul.mubr.bf16.gmra.mxu0 %v4079
          %v6017 = vpop.f32.mrf.mxu0
          %v6018 = vadd.f32 %v5921, %v6017
          %v6019 = vpop.f32.mrf.mxu0
          %v6020 = vpop.f32.mrf.mxu0
          %v6021 = vadd.f32 %v5924, %v6020
          %v6022 = vpop.f32.mrf.mxu0
          %6023 = vmatprep.mubr.bf16.mxu0 %v4082
          %6024 = vmatmul.mubr.bf16.gmra.mxu0 %v4081
          %v6025 = vpop.f32.mrf.mxu0
          %v6026 = vadd.f32 %v5929, %v6025
          %v6027 = vpop.f32.mrf.mxu0
          %v6028 = vpop.f32.mrf.mxu0
          %v6029 = vadd.f32 %v5932, %v6028
          %v6030 = vpop.f32.mrf.mxu0
          %6031 = vmatprep.mubr.bf16.mxu0 %v4084
          %6032 = vmatmul.mubr.bf16.gmra.mxu0 %v4083
          %v6033 = vpop.f32.mrf.mxu0
          %v6034 = vadd.f32 %v5937, %v6033
          %v6035 = vpop.f32.mrf.mxu0
          %v6036 = vpop.f32.mrf.mxu0
          %v6037 = vadd.f32 %v5940, %v6036
          %v6038 = vpop.f32.mrf.mxu0
          %6039 = vmatprep.mubr.bf16.mxu0 %v4086
          %6040 = vmatmul.mubr.bf16.gmra.mxu0 %v4085
          %v6041 = vpop.f32.mrf.mxu0
          %v6042 = vadd.f32 %v5945, %v6041
          %v6043 = vpop.f32.mrf.mxu0
          %v6044 = vpop.f32.mrf.mxu0
          %v6045 = vadd.f32 %v5948, %v6044
          %v6046 = vpop.f32.mrf.mxu0
          %6047 = vmatprep.mubr.bf16.mxu0 %v4088
          %6048 = vmatmul.mubr.bf16.gmra.mxu0 %v4087
          %v6049 = vpop.f32.mrf.mxu0
          %v6050 = vadd.f32 %v5953, %v6049
          %v6051 = vpop.f32.mrf.mxu0
          %v6052 = vpop.f32.mrf.mxu0
          %v6053 = vadd.f32 %v5956, %v6052
          %v6054 = vpop.f32.mrf.mxu0
          %6055 = vmatprep.mubr.bf16.mxu0 %v4090
          %6056 = vmatmul.mubr.bf16.gmra.mxu0 %v4089
          %v6057 = vpop.f32.mrf.mxu0
          %v6058 = vadd.f32 %v5961, %v6057
          %v6059 = vpop.f32.mrf.mxu0
          %v6060 = vpop.f32.mrf.mxu0
          %v6061 = vadd.f32 %v5964, %v6060
          %v6062 = vpop.f32.mrf.mxu0
          %6063 = vmatprep.mubr.bf16.mxu0 %v4092
          %6064 = vmatmul.mubr.bf16.gmra.mxu0 %v4091
          %v6065 = vpop.f32.mrf.mxu0
          %v6066 = vadd.f32 %v5969, %v6065
          %v6067 = vpop.f32.mrf.mxu0
          %v6068 = vpop.f32.mrf.mxu0
          %v6069 = vadd.f32 %v5972, %v6068
          %v6070 = vpop.f32.mrf.mxu0
          %6071 = vdwg.mxu0
          %6072 = vmatprep.subr.bf16.mxu0 0
          %6073 = vmatpush1.bf16.msra.mxu0 %v5386
          %6074 = vmatprep.subr.bf16.mxu0 0
          %6075 = vmatpush1.bf16.msra.mxu0 %v5385
          %6076 = vmatprep.subr.bf16.mxu0 0
          %6077 = vmatpush1.bf16.msra.mxu0 %v5384
          %6078 = vmatprep.subr.bf16.mxu0 0
          %6079 = vmatpush1.bf16.msra.mxu0 %v5383
          %6080 = vmatprep.subr.bf16.mxu0 0
          %6081 = vmatpush1.bf16.msra.mxu0 %v5382
          %6082 = vmatprep.subr.bf16.mxu0 0
          %6083 = vmatpush1.bf16.msra.mxu0 %v5381
          %6084 = vmatprep.subr.bf16.mxu0 0
          %6085 = vmatpush1.bf16.msra.mxu0 %v5380
          %6086 = vmatprep.subr.bf16.mxu0 0
          %6087 = vmatpush1.bf16.msra.mxu0 %v5379
          %6088 = vmatprep.subr.bf16.mxu0 0
          %6089 = vmatpush2.bf16.msra.mxu0 %v5394
          %6090 = vmatprep.subr.bf16.mxu0 0
          %6091 = vmatpush2.bf16.msra.mxu0 %v5393
          %6092 = vmatprep.subr.bf16.mxu0 0
          %6093 = vmatpush2.bf16.msra.mxu0 %v5392
          %6094 = vmatprep.subr.bf16.mxu0 0
          %6095 = vmatpush2.bf16.msra.mxu0 %v5391
          %6096 = vmatprep.subr.bf16.mxu0 0
          %6097 = vmatpush2.bf16.msra.mxu0 %v5390
          %6098 = vmatprep.subr.bf16.mxu0 0
          %6099 = vmatpush2.bf16.msra.mxu0 %v5389
          %6100 = vmatprep.subr.bf16.mxu0 0
          %6101 = vmatpush2.bf16.msra.mxu0 %v5388
          %6102 = vmatprep.subr.bf16.mxu0 0
          %6103 = vmatpush2.bf16.msra.mxu0 %v5387
          %6104 = vmatprep.mubr.bf16.mxu0 %v4158
          %6105 = vmatmul.mubr.bf16.gmra.mxu0 %v4157
          %v6106 = vpop.f32.mrf.mxu0
          %v6107 = vadd.f32 %v6010, %v6106
          %v6108 = vpop.f32.mrf.mxu0
          %v6109 = vpop.f32.mrf.mxu0
          %v6110 = vadd.f32 %v6013, %v6109
          %v6111 = vpop.f32.mrf.mxu0
          %6112 = vmatprep.mubr.bf16.mxu0 %v4160
          %6113 = vmatmul.mubr.bf16.gmra.mxu0 %v4159
          %v6114 = vpop.f32.mrf.mxu0
          %v6115 = vadd.f32 %v6018, %v6114
          %v6116 = vpop.f32.mrf.mxu0
          %v6117 = vpop.f32.mrf.mxu0
          %v6118 = vadd.f32 %v6021, %v6117
          %v6119 = vpop.f32.mrf.mxu0
          %6120 = vmatprep.mubr.bf16.mxu0 %v4162
          %6121 = vmatmul.mubr.bf16.gmra.mxu0 %v4161
          %v6122 = vpop.f32.mrf.mxu0
          %v6123 = vadd.f32 %v6026, %v6122
          %v6124 = vpop.f32.mrf.mxu0
          %v6125 = vpop.f32.mrf.mxu0
          %v6126 = vadd.f32 %v6029, %v6125
          %v6127 = vpop.f32.mrf.mxu0
          %6128 = vmatprep.mubr.bf16.mxu0 %v4164
          %6129 = vmatmul.mubr.bf16.gmra.mxu0 %v4163
          %v6130 = vpop.f32.mrf.mxu0
          %v6131 = vadd.f32 %v6034, %v6130
          %v6132 = vpop.f32.mrf.mxu0
          %v6133 = vpop.f32.mrf.mxu0
          %v6134 = vadd.f32 %v6037, %v6133
          %v6135 = vpop.f32.mrf.mxu0
          %6136 = vmatprep.mubr.bf16.mxu0 %v4166
          %6137 = vmatmul.mubr.bf16.gmra.mxu0 %v4165
          %v6138 = vpop.f32.mrf.mxu0
          %v6139 = vadd.f32 %v6042, %v6138
          %v6140 = vpop.f32.mrf.mxu0
          %v6141 = vpop.f32.mrf.mxu0
          %v6142 = vadd.f32 %v6045, %v6141
          %v6143 = vpop.f32.mrf.mxu0
          %6144 = vmatprep.mubr.bf16.mxu0 %v4168
          %6145 = vmatmul.mubr.bf16.gmra.mxu0 %v4167
          %v6146 = vpop.f32.mrf.mxu0
          %v6147 = vadd.f32 %v6050, %v6146
          %v6148 = vpop.f32.mrf.mxu0
          %v6149 = vpop.f32.mrf.mxu0
          %v6150 = vadd.f32 %v6053, %v6149
          %v6151 = vpop.f32.mrf.mxu0
          %6152 = vmatprep.mubr.bf16.mxu0 %v4170
          %6153 = vmatmul.mubr.bf16.gmra.mxu0 %v4169
          %v6154 = vpop.f32.mrf.mxu0
          %v6155 = vadd.f32 %v6058, %v6154
          %v6156 = vpop.f32.mrf.mxu0
          %v6157 = vpop.f32.mrf.mxu0
          %v6158 = vadd.f32 %v6061, %v6157
          %v6159 = vpop.f32.mrf.mxu0
          %6160 = vmatprep.mubr.bf16.mxu0 %v4172
          %6161 = vmatmul.mubr.bf16.gmra.mxu0 %v4171
          %v6162 = vpop.f32.mrf.mxu0
          %v6163 = vadd.f32 %v6066, %v6162
          %v6164 = vpop.f32.mrf.mxu0
          %v6165 = vpop.f32.mrf.mxu0
          %v6166 = vadd.f32 %v6069, %v6165
          %v6167 = vpop.f32.mrf.mxu0
          %6168 = vdwg.mxu0
          %6169 = vmatprep.subr.bf16.mxu0 0
          %6170 = vmatpush1.bf16.msra.mxu0 %v5402
          %6171 = vmatprep.subr.bf16.mxu0 0
          %6172 = vmatpush1.bf16.msra.mxu0 %v5401
          %6173 = vmatprep.subr.bf16.mxu0 0
          %6174 = vmatpush1.bf16.msra.mxu0 %v5400
          %6175 = vmatprep.subr.bf16.mxu0 0
          %6176 = vmatpush1.bf16.msra.mxu0 %v5399
          %6177 = vmatprep.subr.bf16.mxu0 0
          %6178 = vmatpush1.bf16.msra.mxu0 %v5398
          %6179 = vmatprep.subr.bf16.mxu0 0
          %6180 = vmatpush1.bf16.msra.mxu0 %v5397
          %6181 = vmatprep.subr.bf16.mxu0 0
          %6182 = vmatpush1.bf16.msra.mxu0 %v5396
          %6183 = vmatprep.subr.bf16.mxu0 0
          %6184 = vmatpush1.bf16.msra.mxu0 %v5395
          %6185 = vmatprep.subr.bf16.mxu0 0
          %6186 = vmatpush2.bf16.msra.mxu0 %v5410
          %6187 = vmatprep.subr.bf16.mxu0 0
          %6188 = vmatpush2.bf16.msra.mxu0 %v5409
          %6189 = vmatprep.subr.bf16.mxu0 0
          %6190 = vmatpush2.bf16.msra.mxu0 %v5408
          %6191 = vmatprep.subr.bf16.mxu0 0
          %6192 = vmatpush2.bf16.msra.mxu0 %v5407
          %6193 = vmatprep.subr.bf16.mxu0 0
          %6194 = vmatpush2.bf16.msra.mxu0 %v5406
          %6195 = vmatprep.subr.bf16.mxu0 0
          %6196 = vmatpush2.bf16.msra.mxu0 %v5405
          %6197 = vmatprep.subr.bf16.mxu0 0
          %6198 = vmatpush2.bf16.msra.mxu0 %v5404
          %6199 = vmatprep.subr.bf16.mxu0 0
          %6200 = vmatpush2.bf16.msra.mxu0 %v5403
          %6201 = vmatprep.mubr.bf16.mxu0 %v4238
          %6202 = vmatmul.mubr.bf16.gmra.mxu0 %v4237
          %v6203 = vpop.f32.mrf.mxu0
          %v6204 = vadd.f32 %v6107, %v6203
          %v6205 = vpop.f32.mrf.mxu0
          %v6206 = vpop.f32.mrf.mxu0
          %v6207 = vadd.f32 %v6110, %v6206
          %v6208 = vpop.f32.mrf.mxu0
          %6209 = vmatprep.mubr.bf16.mxu0 %v4240
          %6210 = vmatmul.mubr.bf16.gmra.mxu0 %v4239
          %v6211 = vpop.f32.mrf.mxu0
          %v6212 = vadd.f32 %v6115, %v6211
          %v6213 = vpop.f32.mrf.mxu0
          %v6214 = vpop.f32.mrf.mxu0
          %v6215 = vadd.f32 %v6118, %v6214
          %v6216 = vpop.f32.mrf.mxu0
          %6217 = vmatprep.mubr.bf16.mxu0 %v4242
          %6218 = vmatmul.mubr.bf16.gmra.mxu0 %v4241
          %v6219 = vpop.f32.mrf.mxu0
          %v6220 = vadd.f32 %v6123, %v6219
          %v6221 = vpop.f32.mrf.mxu0
          %v6222 = vpop.f32.mrf.mxu0
          %v6223 = vadd.f32 %v6126, %v6222
          %v6224 = vpop.f32.mrf.mxu0
          %6225 = vmatprep.mubr.bf16.mxu0 %v4244
          %6226 = vmatmul.mubr.bf16.gmra.mxu0 %v4243
          %v6227 = vpop.f32.mrf.mxu0
          %v6228 = vadd.f32 %v6131, %v6227
          %v6229 = vpop.f32.mrf.mxu0
          %v6230 = vpop.f32.mrf.mxu0
          %v6231 = vadd.f32 %v6134, %v6230
          %v6232 = vpop.f32.mrf.mxu0
          %6233 = vmatprep.mubr.bf16.mxu0 %v4246
          %6234 = vmatmul.mubr.bf16.gmra.mxu0 %v4245
          %v6235 = vpop.f32.mrf.mxu0
          %v6236 = vadd.f32 %v6139, %v6235
          %v6237 = vpop.f32.mrf.mxu0
          %v6238 = vpop.f32.mrf.mxu0
          %v6239 = vadd.f32 %v6142, %v6238
          %v6240 = vpop.f32.mrf.mxu0
          %6241 = vmatprep.mubr.bf16.mxu0 %v4248
          %6242 = vmatmul.mubr.bf16.gmra.mxu0 %v4247
          %v6243 = vpop.f32.mrf.mxu0
          %v6244 = vadd.f32 %v6147, %v6243
          %v6245 = vpop.f32.mrf.mxu0
          %v6246 = vpop.f32.mrf.mxu0
          %v6247 = vadd.f32 %v6150, %v6246
          %v6248 = vpop.f32.mrf.mxu0
          %6249 = vmatprep.mubr.bf16.mxu0 %v4250
          %6250 = vmatmul.mubr.bf16.gmra.mxu0 %v4249
          %v6251 = vpop.f32.mrf.mxu0
          %v6252 = vadd.f32 %v6155, %v6251
          %v6253 = vpop.f32.mrf.mxu0
          %v6254 = vpop.f32.mrf.mxu0
          %v6255 = vadd.f32 %v6158, %v6254
          %v6256 = vpop.f32.mrf.mxu0
          %6257 = vmatprep.mubr.bf16.mxu0 %v4252
          %6258 = vmatmul.mubr.bf16.gmra.mxu0 %v4251
          %v6259 = vpop.f32.mrf.mxu0
          %v6260 = vadd.f32 %v6163, %v6259
          %v6261 = vpop.f32.mrf.mxu0
          %v6262 = vpop.f32.mrf.mxu0
          %v6263 = vadd.f32 %v6166, %v6262
          %v6264 = vpop.f32.mrf.mxu0
          %6265 = vdwg.mxu0
          %6266 = vmatprep.subr.bf16.mxu0 0
          %6267 = vmatpush1.bf16.msra.mxu0 %v5418
          %6268 = vmatprep.subr.bf16.mxu0 0
          %6269 = vmatpush1.bf16.msra.mxu0 %v5417
          %6270 = vmatprep.subr.bf16.mxu0 0
          %6271 = vmatpush1.bf16.msra.mxu0 %v5416
          %6272 = vmatprep.subr.bf16.mxu0 0
          %6273 = vmatpush1.bf16.msra.mxu0 %v5415
          %6274 = vmatprep.subr.bf16.mxu0 0
          %6275 = vmatpush1.bf16.msra.mxu0 %v5414
          %6276 = vmatprep.subr.bf16.mxu0 0
          %6277 = vmatpush1.bf16.msra.mxu0 %v5413
          %6278 = vmatprep.subr.bf16.mxu0 0
          %6279 = vmatpush1.bf16.msra.mxu0 %v5412
          %6280 = vmatprep.subr.bf16.mxu0 0
          %6281 = vmatpush1.bf16.msra.mxu0 %v5411
          %6282 = vmatprep.subr.bf16.mxu0 0
          %6283 = vmatpush2.bf16.msra.mxu0 %v5426
          %6284 = vmatprep.subr.bf16.mxu0 0
          %6285 = vmatpush2.bf16.msra.mxu0 %v5425
          %6286 = vmatprep.subr.bf16.mxu0 0
          %6287 = vmatpush2.bf16.msra.mxu0 %v5424
          %6288 = vmatprep.subr.bf16.mxu0 0
          %6289 = vmatpush2.bf16.msra.mxu0 %v5423
          %6290 = vmatprep.subr.bf16.mxu0 0
          %6291 = vmatpush2.bf16.msra.mxu0 %v5422
          %6292 = vmatprep.subr.bf16.mxu0 0
          %6293 = vmatpush2.bf16.msra.mxu0 %v5421
          %6294 = vmatprep.subr.bf16.mxu0 0
          %6295 = vmatpush2.bf16.msra.mxu0 %v5420
          %6296 = vmatprep.subr.bf16.mxu0 0
          %6297 = vmatpush2.bf16.msra.mxu0 %v5419
          %6298 = vmatprep.mubr.bf16.mxu0 %v4318
          %6299 = vmatmul.mubr.bf16.gmra.mxu0 %v4317
          %v6300 = vpop.f32.mrf.mxu0
          %v6301 = vadd.f32 %v6204, %v6300
          %v6302 = vpop.f32.mrf.mxu0
          %v6303 = vpop.f32.mrf.mxu0
          %v6304 = vadd.f32 %v6207, %v6303
          %v6305 = vpop.f32.mrf.mxu0
          %6306 = vmatprep.mubr.bf16.mxu0 %v4320
          %6307 = vmatmul.mubr.bf16.gmra.mxu0 %v4319
          %v6308 = vpop.f32.mrf.mxu0
          %v6309 = vadd.f32 %v6212, %v6308
          %v6310 = vpop.f32.mrf.mxu0
          %v6311 = vpop.f32.mrf.mxu0
          %v6312 = vadd.f32 %v6215, %v6311
          %v6313 = vpop.f32.mrf.mxu0
          %6314 = vmatprep.mubr.bf16.mxu0 %v4322
          %6315 = vmatmul.mubr.bf16.gmra.mxu0 %v4321
          %v6316 = vpop.f32.mrf.mxu0
          %v6317 = vadd.f32 %v6220, %v6316
          %v6318 = vpop.f32.mrf.mxu0
          %v6319 = vpop.f32.mrf.mxu0
          %v6320 = vadd.f32 %v6223, %v6319
          %v6321 = vpop.f32.mrf.mxu0
          %6322 = vmatprep.mubr.bf16.mxu0 %v4324
          %6323 = vmatmul.mubr.bf16.gmra.mxu0 %v4323
          %v6324 = vpop.f32.mrf.mxu0
          %v6325 = vadd.f32 %v6228, %v6324
          %v6326 = vpop.f32.mrf.mxu0
          %v6327 = vpop.f32.mrf.mxu0
          %v6328 = vadd.f32 %v6231, %v6327
          %v6329 = vpop.f32.mrf.mxu0
          %6330 = vmatprep.mubr.bf16.mxu0 %v4326
          %6331 = vmatmul.mubr.bf16.gmra.mxu0 %v4325
          %v6332 = vpop.f32.mrf.mxu0
          %v6333 = vadd.f32 %v6236, %v6332
          %v6334 = vpop.f32.mrf.mxu0
          %v6335 = vpop.f32.mrf.mxu0
          %v6336 = vadd.f32 %v6239, %v6335
          %v6337 = vpop.f32.mrf.mxu0
          %6338 = vmatprep.mubr.bf16.mxu0 %v4328
          %6339 = vmatmul.mubr.bf16.gmra.mxu0 %v4327
          %v6340 = vpop.f32.mrf.mxu0
          %v6341 = vadd.f32 %v6244, %v6340
          %v6342 = vpop.f32.mrf.mxu0
          %v6343 = vpop.f32.mrf.mxu0
          %v6344 = vadd.f32 %v6247, %v6343
          %v6345 = vpop.f32.mrf.mxu0
          %6346 = vmatprep.mubr.bf16.mxu0 %v4330
          %6347 = vmatmul.mubr.bf16.gmra.mxu0 %v4329
          %v6348 = vpop.f32.mrf.mxu0
          %v6349 = vadd.f32 %v6252, %v6348
          %v6350 = vpop.f32.mrf.mxu0
          %v6351 = vpop.f32.mrf.mxu0
          %v6352 = vadd.f32 %v6255, %v6351
          %v6353 = vpop.f32.mrf.mxu0
          %6354 = vmatprep.mubr.bf16.mxu0 %v4332
          %6355 = vmatmul.mubr.bf16.gmra.mxu0 %v4331
          %v6356 = vpop.f32.mrf.mxu0
          %v6357 = vadd.f32 %v6260, %v6356
          %v6358 = vpop.f32.mrf.mxu0
          %v6359 = vpop.f32.mrf.mxu0
          %v6360 = vadd.f32 %v6263, %v6359
          %v6361 = vpop.f32.mrf.mxu0
          %6362 = vdwg.mxu0
          %6363 = vmatprep.subr.bf16.mxu0 0
          %6364 = vmatpush1.bf16.msra.mxu0 %v5434
          %6365 = vmatprep.subr.bf16.mxu0 0
          %6366 = vmatpush1.bf16.msra.mxu0 %v5433
          %6367 = vmatprep.subr.bf16.mxu0 0
          %6368 = vmatpush1.bf16.msra.mxu0 %v5432
          %6369 = vmatprep.subr.bf16.mxu0 0
          %6370 = vmatpush1.bf16.msra.mxu0 %v5431
          %6371 = vmatprep.subr.bf16.mxu0 0
          %6372 = vmatpush1.bf16.msra.mxu0 %v5430
          %6373 = vmatprep.subr.bf16.mxu0 0
          %6374 = vmatpush1.bf16.msra.mxu0 %v5429
          %6375 = vmatprep.subr.bf16.mxu0 0
          %6376 = vmatpush1.bf16.msra.mxu0 %v5428
          %6377 = vmatprep.subr.bf16.mxu0 0
          %6378 = vmatpush1.bf16.msra.mxu0 %v5427
          %6379 = vmatprep.subr.bf16.mxu0 0
          %6380 = vmatpush2.bf16.msra.mxu0 %v5442
          %6381 = vmatprep.subr.bf16.mxu0 0
          %6382 = vmatpush2.bf16.msra.mxu0 %v5441
          %6383 = vmatprep.subr.bf16.mxu0 0
          %6384 = vmatpush2.bf16.msra.mxu0 %v5440
          %6385 = vmatprep.subr.bf16.mxu0 0
          %6386 = vmatpush2.bf16.msra.mxu0 %v5439
          %6387 = vmatprep.subr.bf16.mxu0 0
          %6388 = vmatpush2.bf16.msra.mxu0 %v5438
          %6389 = vmatprep.subr.bf16.mxu0 0
          %6390 = vmatpush2.bf16.msra.mxu0 %v5437
          %6391 = vmatprep.subr.bf16.mxu0 0
          %6392 = vmatpush2.bf16.msra.mxu0 %v5436
          %6393 = vmatprep.subr.bf16.mxu0 0
          %6394 = vmatpush2.bf16.msra.mxu0 %v5435
          %6395 = vmatprep.mubr.bf16.mxu0 %v4398
          %6396 = vmatmul.mubr.bf16.gmra.mxu0 %v4397
          %v6397 = vpop.f32.mrf.mxu0
          %v6398 = vadd.f32 %v6301, %v6397
          %v6399 = vpop.f32.mrf.mxu0
          %v6400 = vpop.f32.mrf.mxu0
          %v6401 = vadd.f32 %v6304, %v6400
          %v6402 = vpop.f32.mrf.mxu0
          %6403 = vmatprep.mubr.bf16.mxu0 %v4400
          %6404 = vmatmul.mubr.bf16.gmra.mxu0 %v4399
          %v6405 = vpop.f32.mrf.mxu0
          %v6406 = vadd.f32 %v6309, %v6405
          %v6407 = vpop.f32.mrf.mxu0
          %v6408 = vpop.f32.mrf.mxu0
          %v6409 = vadd.f32 %v6312, %v6408
          %v6410 = vpop.f32.mrf.mxu0
          %6411 = vmatprep.mubr.bf16.mxu0 %v4402
          %6412 = vmatmul.mubr.bf16.gmra.mxu0 %v4401
          %v6413 = vpop.f32.mrf.mxu0
          %v6414 = vadd.f32 %v6317, %v6413
          %v6415 = vpop.f32.mrf.mxu0
          %v6416 = vpop.f32.mrf.mxu0
          %v6417 = vadd.f32 %v6320, %v6416
          %v6418 = vpop.f32.mrf.mxu0
          %6419 = vmatprep.mubr.bf16.mxu0 %v4404
          %6420 = vmatmul.mubr.bf16.gmra.mxu0 %v4403
          %v6421 = vpop.f32.mrf.mxu0
          %v6422 = vadd.f32 %v6325, %v6421
          %v6423 = vpop.f32.mrf.mxu0
          %v6424 = vpop.f32.mrf.mxu0
          %v6425 = vadd.f32 %v6328, %v6424
          %v6426 = vpop.f32.mrf.mxu0
          %6427 = vmatprep.mubr.bf16.mxu0 %v4406
          %6428 = vmatmul.mubr.bf16.gmra.mxu0 %v4405
          %v6429 = vpop.f32.mrf.mxu0
          %v6430 = vadd.f32 %v6333, %v6429
          %v6431 = vpop.f32.mrf.mxu0
          %v6432 = vpop.f32.mrf.mxu0
          %v6433 = vadd.f32 %v6336, %v6432
          %v6434 = vpop.f32.mrf.mxu0
          %6435 = vmatprep.mubr.bf16.mxu0 %v4408
          %6436 = vmatmul.mubr.bf16.gmra.mxu0 %v4407
          %v6437 = vpop.f32.mrf.mxu0
          %v6438 = vadd.f32 %v6341, %v6437
          %v6439 = vpop.f32.mrf.mxu0
          %v6440 = vpop.f32.mrf.mxu0
          %v6441 = vadd.f32 %v6344, %v6440
          %v6442 = vpop.f32.mrf.mxu0
          %6443 = vmatprep.mubr.bf16.mxu0 %v4410
          %6444 = vmatmul.mubr.bf16.gmra.mxu0 %v4409
          %v6445 = vpop.f32.mrf.mxu0
          %v6446 = vadd.f32 %v6349, %v6445
          %v6447 = vpop.f32.mrf.mxu0
          %v6448 = vpop.f32.mrf.mxu0
          %v6449 = vadd.f32 %v6352, %v6448
          %v6450 = vpop.f32.mrf.mxu0
          %6451 = vmatprep.mubr.bf16.mxu0 %v4412
          %6452 = vmatmul.mubr.bf16.gmra.mxu0 %v4411
          %v6453 = vpop.f32.mrf.mxu0
          %v6454 = vadd.f32 %v6357, %v6453
          %v6455 = vpop.f32.mrf.mxu0
          %v6456 = vpop.f32.mrf.mxu0
          %v6457 = vadd.f32 %v6360, %v6456
          %v6458 = vpop.f32.mrf.mxu0
          %6459 = vdwg.mxu0
          %v6460 = vmax.f32 %v6398, 0.0
          %v6461 = vmax.f32 %v6401, 0.0
          %v6462 = vmax.f32 %v6406, 0.0
          %v6463 = vmax.f32 %v6409, 0.0
          %v6464 = vmax.f32 %v6414, 0.0
          %v6465 = vmax.f32 %v6417, 0.0
          %v6466 = vmax.f32 %v6422, 0.0
          %v6467 = vmax.f32 %v6425, 0.0
          %v6468 = vmax.f32 %v6430, 0.0
          %v6469 = vmax.f32 %v6433, 0.0
          %v6470 = vmax.f32 %v6438, 0.0
          %v6471 = vmax.f32 %v6441, 0.0
          %v6472 = vmax.f32 %v6446, 0.0
          %v6473 = vmax.f32 %v6449, 0.0
          %v6474 = vmax.f32 %v6454, 0.0
          %v6475 = vmax.f32 %v6457, 0.0
          %v6476 = vmax.f32 %v6460, %v6462
          %v6477 = vmax.f32 %v6461, %v6463
          %v6478 = vmax.f32 %v6464, %v6466
          %v6479 = vmax.f32 %v6465, %v6467
          %v6480 = vmax.f32 %v6468, %v6470
          %v6481 = vmax.f32 %v6469, %v6471
          %v6482 = vmax.f32 %v6472, %v6474
          %v6483 = vmax.f32 %v6473, %v6475
          %v6492 = vcombine.high %v6476, %v6476
          %v6494 = vunpack.c.l.s4 1983009808
          %v6495 = vunpack.c.0.s8 %v6494
          %v6496 = vlaneseq
          %v6497 = vshrl.u32 %v6496, 7
          %v6498 = vsub.s32 %v6495, %v6497
          %v6499 = vrot.slane %v6476, %v6498
          %v6501 = vunpack.c.l.s4 1983009808
          %v6502 = vunpack.c.0.s8 %v6501
          %v6503 = vlaneseq
          %v6504 = vshrl.u32 %v6503, 7
          %v6505 = vsub.s32 %v6502, %v6504
          %v6506 = vrot.slane %v6492, %v6505
          %v6507 = vcombine.high %v6499, %v6499
          %v6508 = vcombine.high %v6506, %v6506
          %v6509 = vcombine.high %v6477, %v6477
          %v6511 = vunpack.c.l.s4 1983009808
          %v6512 = vunpack.c.0.s8 %v6511
          %v6513 = vlaneseq
          %v6514 = vshrl.u32 %v6513, 7
          %v6515 = vsub.s32 %v6512, %v6514
          %v6516 = vrot.slane %v6477, %v6515
          %v6518 = vunpack.c.l.s4 1983009808
          %v6519 = vunpack.c.0.s8 %v6518
          %v6520 = vlaneseq
          %v6521 = vshrl.u32 %v6520, 7
          %v6522 = vsub.s32 %v6519, %v6521
          %v6523 = vrot.slane %v6509, %v6522
          %v6524 = vcombine.high %v6516, %v6516
          %v6525 = vcombine.high %v6523, %v6523
          %v6526 = vcombine.high %v6478, %v6478
          %v6528 = vunpack.c.l.s4 1983009808
          %v6529 = vunpack.c.0.s8 %v6528
          %v6530 = vlaneseq
          %v6531 = vshrl.u32 %v6530, 7
          %v6532 = vsub.s32 %v6529, %v6531
          %v6533 = vrot.slane %v6478, %v6532
          %v6535 = vunpack.c.l.s4 1983009808
          %v6536 = vunpack.c.0.s8 %v6535
          %v6537 = vlaneseq
          %v6538 = vshrl.u32 %v6537, 7
          %v6539 = vsub.s32 %v6536, %v6538
          %v6540 = vrot.slane %v6526, %v6539
          %v6541 = vcombine.high %v6533, %v6533
          %v6542 = vcombine.high %v6540, %v6540
          %v6543 = vcombine.high %v6479, %v6479
          %v6545 = vunpack.c.l.s4 1983009808
          %v6546 = vunpack.c.0.s8 %v6545
          %v6547 = vlaneseq
          %v6548 = vshrl.u32 %v6547, 7
          %v6549 = vsub.s32 %v6546, %v6548
          %v6550 = vrot.slane %v6479, %v6549
          %v6552 = vunpack.c.l.s4 1983009808
          %v6553 = vunpack.c.0.s8 %v6552
          %v6554 = vlaneseq
          %v6555 = vshrl.u32 %v6554, 7
          %v6556 = vsub.s32 %v6553, %v6555
          %v6557 = vrot.slane %v6543, %v6556
          %v6558 = vcombine.high %v6550, %v6550
          %v6559 = vcombine.high %v6557, %v6557
          %v6560 = vcombine.high %v6480, %v6480
          %v6562 = vunpack.c.l.s4 1983009808
          %v6563 = vunpack.c.0.s8 %v6562
          %v6564 = vlaneseq
          %v6565 = vshrl.u32 %v6564, 7
          %v6566 = vsub.s32 %v6563, %v6565
          %v6567 = vrot.slane %v6480, %v6566
          %v6569 = vunpack.c.l.s4 1983009808
          %v6570 = vunpack.c.0.s8 %v6569
          %v6571 = vlaneseq
          %v6572 = vshrl.u32 %v6571, 7
          %v6573 = vsub.s32 %v6570, %v6572
          %v6574 = vrot.slane %v6560, %v6573
          %v6575 = vcombine.high %v6567, %v6567
          %v6576 = vcombine.high %v6574, %v6574
          %v6577 = vcombine.high %v6481, %v6481
          %v6579 = vunpack.c.l.s4 1983009808
          %v6580 = vunpack.c.0.s8 %v6579
          %v6581 = vlaneseq
          %v6582 = vshrl.u32 %v6581, 7
          %v6583 = vsub.s32 %v6580, %v6582
          %v6584 = vrot.slane %v6481, %v6583
          %v6586 = vunpack.c.l.s4 1983009808
          %v6587 = vunpack.c.0.s8 %v6586
          %v6588 = vlaneseq
          %v6589 = vshrl.u32 %v6588, 7
          %v6590 = vsub.s32 %v6587, %v6589
          %v6591 = vrot.slane %v6577, %v6590
          %v6592 = vcombine.high %v6584, %v6584
          %v6593 = vcombine.high %v6591, %v6591
          %v6594 = vcombine.high %v6482, %v6482
          %v6596 = vunpack.c.l.s4 1983009808
          %v6597 = vunpack.c.0.s8 %v6596
          %v6598 = vlaneseq
          %v6599 = vshrl.u32 %v6598, 7
          %v6600 = vsub.s32 %v6597, %v6599
          %v6601 = vrot.slane %v6482, %v6600
          %v6603 = vunpack.c.l.s4 1983009808
          %v6604 = vunpack.c.0.s8 %v6603
          %v6605 = vlaneseq
          %v6606 = vshrl.u32 %v6605, 7
          %v6607 = vsub.s32 %v6604, %v6606
          %v6608 = vrot.slane %v6594, %v6607
          %v6609 = vcombine.high %v6601, %v6601
          %v6610 = vcombine.high %v6608, %v6608
          %v6611 = vcombine.high %v6483, %v6483
          %v6613 = vunpack.c.l.s4 1983009808
          %v6614 = vunpack.c.0.s8 %v6613
          %v6615 = vlaneseq
          %v6616 = vshrl.u32 %v6615, 7
          %v6617 = vsub.s32 %v6614, %v6616
          %v6618 = vrot.slane %v6483, %v6617
          %v6620 = vunpack.c.l.s4 1983009808
          %v6621 = vunpack.c.0.s8 %v6620
          %v6622 = vlaneseq
          %v6623 = vshrl.u32 %v6622, 7
          %v6624 = vsub.s32 %v6621, %v6623
          %v6625 = vrot.slane %v6611, %v6624
          %v6626 = vcombine.high %v6618, %v6618
          %v6627 = vcombine.high %v6625, %v6625
          %vm6660 = vcmask 1041408
          %v6661 = vsel %vm6660, %v6499, -inf
          %v6662 = vrot.slane %v6661, 4
          %v6663 = vmax.f32 %v6661, %v6662
          %v6664 = vrot.slane %v6663, 2
          %v6665 = vmax.f32 %v6663, %v6664
          %v6666 = vrot.slane %v6665, 1
          %v6667 = vmax.f32 %v6665, %v6666
          %v6668 = vsel %vm6660, %v6507, -inf
          %v6669 = vrot.slane %v6668, 4
          %v6670 = vmax.f32 %v6668, %v6669
          %v6671 = vrot.slane %v6670, 2
          %v6672 = vmax.f32 %v6670, %v6671
          %v6673 = vrot.slane %v6672, 1
          %v6674 = vmax.f32 %v6672, %v6673
          %v6675 = vsel %vm6660, %v6506, -inf
          %v6676 = vrot.slane %v6675, 4
          %v6677 = vmax.f32 %v6675, %v6676
          %v6678 = vrot.slane %v6677, 2
          %v6679 = vmax.f32 %v6677, %v6678
          %v6680 = vrot.slane %v6679, 1
          %v6681 = vmax.f32 %v6679, %v6680
          %v6682 = vsel %vm6660, %v6508, -inf
          %v6683 = vrot.slane %v6682, 4
          %v6684 = vmax.f32 %v6682, %v6683
          %v6685 = vrot.slane %v6684, 2
          %v6686 = vmax.f32 %v6684, %v6685
          %v6687 = vrot.slane %v6686, 1
          %v6688 = vmax.f32 %v6686, %v6687
          %v6689 = vsel %vm6660, %v6516, -inf
          %v6690 = vrot.slane %v6689, 4
          %v6691 = vmax.f32 %v6689, %v6690
          %v6692 = vrot.slane %v6691, 2
          %v6693 = vmax.f32 %v6691, %v6692
          %v6694 = vrot.slane %v6693, 1
          %v6695 = vmax.f32 %v6693, %v6694
          %v6696 = vsel %vm6660, %v6524, -inf
          %v6697 = vrot.slane %v6696, 4
          %v6698 = vmax.f32 %v6696, %v6697
          %v6699 = vrot.slane %v6698, 2
          %v6700 = vmax.f32 %v6698, %v6699
          %v6701 = vrot.slane %v6700, 1
          %v6702 = vmax.f32 %v6700, %v6701
          %v6703 = vsel %vm6660, %v6523, -inf
          %v6704 = vrot.slane %v6703, 4
          %v6705 = vmax.f32 %v6703, %v6704
          %v6706 = vrot.slane %v6705, 2
          %v6707 = vmax.f32 %v6705, %v6706
          %v6708 = vrot.slane %v6707, 1
          %v6709 = vmax.f32 %v6707, %v6708
          %v6710 = vsel %vm6660, %v6525, -inf
          %v6711 = vrot.slane %v6710, 4
          %v6712 = vmax.f32 %v6710, %v6711
          %v6713 = vrot.slane %v6712, 2
          %v6714 = vmax.f32 %v6712, %v6713
          %v6715 = vrot.slane %v6714, 1
          %v6716 = vmax.f32 %v6714, %v6715
          %v6717 = vsel %vm6660, %v6533, -inf
          %v6718 = vrot.slane %v6717, 4
          %v6719 = vmax.f32 %v6717, %v6718
          %v6720 = vrot.slane %v6719, 2
          %v6721 = vmax.f32 %v6719, %v6720
          %v6722 = vrot.slane %v6721, 1
          %v6723 = vmax.f32 %v6721, %v6722
          %v6724 = vsel %vm6660, %v6541, -inf
          %v6725 = vrot.slane %v6724, 4
          %v6726 = vmax.f32 %v6724, %v6725
          %v6727 = vrot.slane %v6726, 2
          %v6728 = vmax.f32 %v6726, %v6727
          %v6729 = vrot.slane %v6728, 1
          %v6730 = vmax.f32 %v6728, %v6729
          %v6731 = vsel %vm6660, %v6540, -inf
          %v6732 = vrot.slane %v6731, 4
          %v6733 = vmax.f32 %v6731, %v6732
          %v6734 = vrot.slane %v6733, 2
          %v6735 = vmax.f32 %v6733, %v6734
          %v6736 = vrot.slane %v6735, 1
          %v6737 = vmax.f32 %v6735, %v6736
          %v6738 = vsel %vm6660, %v6542, -inf
          %v6739 = vrot.slane %v6738, 4
          %v6740 = vmax.f32 %v6738, %v6739
          %v6741 = vrot.slane %v6740, 2
          %v6742 = vmax.f32 %v6740, %v6741
          %v6743 = vrot.slane %v6742, 1
          %v6744 = vmax.f32 %v6742, %v6743
          %v6745 = vsel %vm6660, %v6550, -inf
          %v6746 = vrot.slane %v6745, 4
          %v6747 = vmax.f32 %v6745, %v6746
          %v6748 = vrot.slane %v6747, 2
          %v6749 = vmax.f32 %v6747, %v6748
          %v6750 = vrot.slane %v6749, 1
          %v6751 = vmax.f32 %v6749, %v6750
          %v6752 = vsel %vm6660, %v6558, -inf
          %v6753 = vrot.slane %v6752, 4
          %v6754 = vmax.f32 %v6752, %v6753
          %v6755 = vrot.slane %v6754, 2
          %v6756 = vmax.f32 %v6754, %v6755
          %v6757 = vrot.slane %v6756, 1
          %v6758 = vmax.f32 %v6756, %v6757
          %v6759 = vsel %vm6660, %v6557, -inf
          %v6760 = vrot.slane %v6759, 4
          %v6761 = vmax.f32 %v6759, %v6760
          %v6762 = vrot.slane %v6761, 2
          %v6763 = vmax.f32 %v6761, %v6762
          %v6764 = vrot.slane %v6763, 1
          %v6765 = vmax.f32 %v6763, %v6764
          %v6766 = vsel %vm6660, %v6559, -inf
          %v6767 = vrot.slane %v6766, 4
          %v6768 = vmax.f32 %v6766, %v6767
          %v6769 = vrot.slane %v6768, 2
          %v6770 = vmax.f32 %v6768, %v6769
          %v6771 = vrot.slane %v6770, 1
          %v6772 = vmax.f32 %v6770, %v6771
          %v6773 = vsel %vm6660, %v6567, -inf
          %v6774 = vrot.slane %v6773, 4
          %v6775 = vmax.f32 %v6773, %v6774
          %v6776 = vrot.slane %v6775, 2
          %v6777 = vmax.f32 %v6775, %v6776
          %v6778 = vrot.slane %v6777, 1
          %v6779 = vmax.f32 %v6777, %v6778
          %v6780 = vsel %vm6660, %v6575, -inf
          %v6781 = vrot.slane %v6780, 4
          %v6782 = vmax.f32 %v6780, %v6781
          %v6783 = vrot.slane %v6782, 2
          %v6784 = vmax.f32 %v6782, %v6783
          %v6785 = vrot.slane %v6784, 1
          %v6786 = vmax.f32 %v6784, %v6785
          %v6787 = vsel %vm6660, %v6574, -inf
          %v6788 = vrot.slane %v6787, 4
          %v6789 = vmax.f32 %v6787, %v6788
          %v6790 = vrot.slane %v6789, 2
          %v6791 = vmax.f32 %v6789, %v6790
          %v6792 = vrot.slane %v6791, 1
          %v6793 = vmax.f32 %v6791, %v6792
          %v6794 = vsel %vm6660, %v6576, -inf
          %v6795 = vrot.slane %v6794, 4
          %v6796 = vmax.f32 %v6794, %v6795
          %v6797 = vrot.slane %v6796, 2
          %v6798 = vmax.f32 %v6796, %v6797
          %v6799 = vrot.slane %v6798, 1
          %v6800 = vmax.f32 %v6798, %v6799
          %v6801 = vsel %vm6660, %v6584, -inf
          %v6802 = vrot.slane %v6801, 4
          %v6803 = vmax.f32 %v6801, %v6802
          %v6804 = vrot.slane %v6803, 2
          %v6805 = vmax.f32 %v6803, %v6804
          %v6806 = vrot.slane %v6805, 1
          %v6807 = vmax.f32 %v6805, %v6806
          %v6808 = vsel %vm6660, %v6592, -inf
          %v6809 = vrot.slane %v6808, 4
          %v6810 = vmax.f32 %v6808, %v6809
          %v6811 = vrot.slane %v6810, 2
          %v6812 = vmax.f32 %v6810, %v6811
          %v6813 = vrot.slane %v6812, 1
          %v6814 = vmax.f32 %v6812, %v6813
          %v6815 = vsel %vm6660, %v6591, -inf
          %v6816 = vrot.slane %v6815, 4
          %v6817 = vmax.f32 %v6815, %v6816
          %v6818 = vrot.slane %v6817, 2
          %v6819 = vmax.f32 %v6817, %v6818
          %v6820 = vrot.slane %v6819, 1
          %v6821 = vmax.f32 %v6819, %v6820
          %v6822 = vsel %vm6660, %v6593, -inf
          %v6823 = vrot.slane %v6822, 4
          %v6824 = vmax.f32 %v6822, %v6823
          %v6825 = vrot.slane %v6824, 2
          %v6826 = vmax.f32 %v6824, %v6825
          %v6827 = vrot.slane %v6826, 1
          %v6828 = vmax.f32 %v6826, %v6827
          %v6829 = vsel %vm6660, %v6601, -inf
          %v6830 = vrot.slane %v6829, 4
          %v6831 = vmax.f32 %v6829, %v6830
          %v6832 = vrot.slane %v6831, 2
          %v6833 = vmax.f32 %v6831, %v6832
          %v6834 = vrot.slane %v6833, 1
          %v6835 = vmax.f32 %v6833, %v6834
          %v6836 = vsel %vm6660, %v6609, -inf
          %v6837 = vrot.slane %v6836, 4
          %v6838 = vmax.f32 %v6836, %v6837
          %v6839 = vrot.slane %v6838, 2
          %v6840 = vmax.f32 %v6838, %v6839
          %v6841 = vrot.slane %v6840, 1
          %v6842 = vmax.f32 %v6840, %v6841
          %v6843 = vsel %vm6660, %v6608, -inf
          %v6844 = vrot.slane %v6843, 4
          %v6845 = vmax.f32 %v6843, %v6844
          %v6846 = vrot.slane %v6845, 2
          %v6847 = vmax.f32 %v6845, %v6846
          %v6848 = vrot.slane %v6847, 1
          %v6849 = vmax.f32 %v6847, %v6848
          %v6850 = vsel %vm6660, %v6610, -inf
          %v6851 = vrot.slane %v6850, 4
          %v6852 = vmax.f32 %v6850, %v6851
          %v6853 = vrot.slane %v6852, 2
          %v6854 = vmax.f32 %v6852, %v6853
          %v6855 = vrot.slane %v6854, 1
          %v6856 = vmax.f32 %v6854, %v6855
          %v6857 = vsel %vm6660, %v6618, -inf
          %v6858 = vrot.slane %v6857, 4
          %v6859 = vmax.f32 %v6857, %v6858
          %v6860 = vrot.slane %v6859, 2
          %v6861 = vmax.f32 %v6859, %v6860
          %v6862 = vrot.slane %v6861, 1
          %v6863 = vmax.f32 %v6861, %v6862
          %v6864 = vsel %vm6660, %v6626, -inf
          %v6865 = vrot.slane %v6864, 4
          %v6866 = vmax.f32 %v6864, %v6865
          %v6867 = vrot.slane %v6866, 2
          %v6868 = vmax.f32 %v6866, %v6867
          %v6869 = vrot.slane %v6868, 1
          %v6870 = vmax.f32 %v6868, %v6869
          %v6871 = vsel %vm6660, %v6625, -inf
          %v6872 = vrot.slane %v6871, 4
          %v6873 = vmax.f32 %v6871, %v6872
          %v6874 = vrot.slane %v6873, 2
          %v6875 = vmax.f32 %v6873, %v6874
          %v6876 = vrot.slane %v6875, 1
          %v6877 = vmax.f32 %v6875, %v6876
          %v6878 = vsel %vm6660, %v6627, -inf
          %v6879 = vrot.slane %v6878, 4
          %v6880 = vmax.f32 %v6878, %v6879
          %v6881 = vrot.slane %v6880, 2
          %v6882 = vmax.f32 %v6880, %v6881
          %v6883 = vrot.slane %v6882, 1
          %v6884 = vmax.f32 %v6882, %v6883
          %s6885 = smul.u32 %s3530, 4
          %vm6918 = vcmask 1041409
          %v6919 = vsel %vm6918, %v6674, %v6667
          %vm6920 = vcmask 1042434
          %v6921 = vsel %vm6920, %v6681, %v6919
          %vm6922 = vcmask 1043459
          %v6923 = vsel %vm6922, %v6688, %v6921
          %vm6924 = vcmask 1044484
          %v6925 = vsel %vm6924, %v6695, %v6923
          %vm6926 = vcmask 1045509
          %v6927 = vsel %vm6926, %v6702, %v6925
          %vm6928 = vcmask 1046534
          %v6929 = vsel %vm6928, %v6709, %v6927
          %vm6930 = vcmask 1047559
          %v6931 = vsel %vm6930, %v6716, %v6929
          %v6932 = vsel %vm6918, %v6730, %v6723
          %v6933 = vsel %vm6920, %v6737, %v6932
          %v6934 = vsel %vm6922, %v6744, %v6933
          %v6935 = vsel %vm6924, %v6751, %v6934
          %v6936 = vsel %vm6926, %v6758, %v6935
          %v6937 = vsel %vm6928, %v6765, %v6936
          %v6938 = vsel %vm6930, %v6772, %v6937
          %v6939 = vsel %vm6918, %v6786, %v6779
          %v6940 = vsel %vm6920, %v6793, %v6939
          %v6941 = vsel %vm6922, %v6800, %v6940
          %v6942 = vsel %vm6924, %v6807, %v6941
          %v6943 = vsel %vm6926, %v6814, %v6942
          %v6944 = vsel %vm6928, %v6821, %v6943
          %v6945 = vsel %vm6930, %v6828, %v6944
          %v6946 = vsel %vm6918, %v6842, %v6835
          %v6947 = vsel %vm6920, %v6849, %v6946
          %v6948 = vsel %vm6922, %v6856, %v6947
          %v6949 = vsel %vm6924, %v6863, %v6948
          %v6950 = vsel %vm6926, %v6870, %v6949
          %v6951 = vsel %vm6928, %v6877, %v6950
          %v6952 = vsel %vm6930, %v6884, %v6951
          %s6957 = smul.u32 %s6885, 8
          %s6958 = scalar_lea.vmem %s271, %s6957 [#allocation4]
          %6959 = vst [vmem:[%s6958] sm:$0xff] %v6931
          %6960 = vst [vmem:[%s6958 + $0x8] sm:$0xff] %v6938
          %6961 = vst [vmem:[%s6958 + $0x10] sm:$0xff] %v6945
          %6962 = vst [vmem:[%s6958 + $0x18] sm:$0xff] %v6952
        $region67: #{down_forward.1} parent=47 // loop_footer
          %s3534 = sadd.s32 1, %s3530
        $region68: #{down_forward.1} parent=47 // loop_footer_branch
          %3529 = sbr.rel target = $region64
        $region69: #{down_forward.1} parent=47 // loop_exit
          _
        %s6963 = sand.u32 %s181, 1
        %s6964 = scalar_lea.sflag [#allocation5], %s6963
        %s6965 = sand.u32 %s181, 1
        %s6966 = smul.addr %s6965, 64
        %s6967 = scalar_lea.vmem [#allocation4], %s6966
        // Predicated region
        $region70: #{down_forward.1} parent=47 // pred_check
          %p6968 = pneg %p191
        $region71: #{down_forward.1} parent=47 // pred_check_branch
          %6970 = sbr.rel (%p6968) target = $region73
        $region72: #{down_forward.1} parent=47 // pred_region
          %s6972 = ssub.s32 1024, 1024
          %6973 = vsyncadd %s6964, %s6972
          %s6974 = smul.addr %s21, 8
          %s6975 = smul.addr %s6974, 128
          %s6976 = scalar_lea.hbm %s7, %s6975
          %s6977 = sshll.u32 %s6967, 4
          %s6978 = int_to_ptr.vmem [resolvable:$true] %s6977
          %6983 = dma.vmem_to_hbm [thread:$0]  %s6978, 1024, %s6976, %s6964, 128, 128, 8
        $region73: #{down_forward.1} parent=47 // pred_fallthru
          _
      $region48: #{down_forward.1} parent=5 // pred_fallthru
        _
      %p6984 = scmp.le.s32.totalorder 2, %s16
      // Predicated region
      $region74: #{down_forward.1} parent=5 // pred_check
        %p6985 = pneg %p6984
      $region75: #{down_forward.1} parent=5 // pred_check_branch
        %6987 = sbr.rel (%p6985) target = $region77
      $region76: #{down_forward.1} parent=5 // pred_region
        %s6988 = ssub.s32 %s16, 2
        // Predicated region
        $region78: #{down_forward.1} parent=76 // pred_check
          %p6989 = pneg %p197
        $region79: #{down_forward.1} parent=76 // pred_check_branch
          %6991 = sbr.rel (%p6989) target = $region81
        $region80: #{down_forward.1} parent=76 // pred_region
          %s6992 = sand.u32 %s182, 1
          %s6993 = scalar_lea.sflag [#allocation5], %s6992
          %s6994 = sand.u32 %s182, 1
          %s6995 = smul.addr %s6994, 64
          %s6996 = scalar_lea.vmem [#allocation4], %s6995
          %6997 = dma.done %s6993, 1024
        $region81: #{down_forward.1} parent=76 // pred_fallthru
          _
      $region77: #{down_forward.1} parent=5 // pred_fallthru
        _
    $region6: #{down_forward.1} parent=1 // loop_footer
      %s20 = sadd.s32 1, %s16
    $region7: #{down_forward.1} parent=1 // loop_footer_branch
      %15 = sbr.rel target = $region3
    $region8: #{down_forward.1} parent=1 // loop_exit
      _
    %6998 = vsyncpa [#allocation5], 1
    %s6999 = scalar_lea.sflag [#allocation5], 1
    %7000 = vsyncpa %s6999, 1

</llo_original>
